<compile_context>
chip_gen: v5e
topology: v5e:2x2
jax: 0.10.0
libtpu: 0.0.40
codegen_flags: <defaults>
</compile_context>

<pallas_src>
import jax
import jax.numpy as jnp
from jax.experimental import pallas as pl
from jax.experimental.pallas import tpu as pltpu

EPS = 1e-5          # torch.nn.InstanceNorm2d default eps
NEG_SLOPE = 0.01    # torch.nn.LeakyReLU default negative_slope


# ----------------------------------------------------------------------------
# In-kernel helpers (f32 elementwise; bf16 only at the dot inputs)
# ----------------------------------------------------------------------------

def _instance_norm(y):
    """InstanceNorm2d(affine=False): per-channel stats over the flattened spatial axis."""
    mean = jnp.mean(y, axis=-1, keepdims=True)
    c = y - mean                                      # centered tensor reused (one subtract)
    var = jnp.mean(c * c, axis=-1, keepdims=True)
    return c * jax.lax.rsqrt(var + EPS)


def _leaky_relu(y):
    return jnp.where(y >= 0.0, y, NEG_SLOPE * y)


# ----------------------------------------------------------------------------
# Kernel 1: everything before the FFTs, one pallas_call, one grid step.
#   t = W_comb @ x, W_comb rows: [Wl2l|Wg2l] (8), [Wl2g|0] (8), [0|Wst_conv1] (4)
#   out_xl = IN(t[0:8]) ; l2g = t[8:16] ; y = LeakyReLU(IN(t[16:20]))
# ----------------------------------------------------------------------------

def _pre_kernel(w_ref, x_ref, outxl_ref, l2g_ref, y_ref):
    w = w_ref[...].astype(jnp.bfloat16)               # (20, 16)
    ncl = outxl_ref.shape[1]                          # 8
    ncg = l2g_ref.shape[1]                            # 8
    for b in range(x_ref.shape[0]):                   # static B loop, single kernel invocation
        x = x_ref[b].astype(jnp.bfloat16)             # (16, HW)
        t = jnp.dot(w, x, preferred_element_type=jnp.float32)       # (20, HW) f32
        outxl_ref[b] = _instance_norm(t[0:ncl]).astype(outxl_ref.dtype)
        l2g_ref[b] = t[ncl:ncl + ncg].astype(l2g_ref.dtype)
        y_ref[b] = _leaky_relu(_instance_norm(t[ncl + ncg:])).astype(y_ref.dtype)


# ----------------------------------------------------------------------------
# Kernel 2: both FourierUnit 1x1 convs (fu + lfu), conv + IN + LeakyReLU fused.
# Inputs are real/imag halves (blocked channel layout) -> two dots, no interleave.
# Output rows [0:C] = real channels, [C:2C] = imag channels.
# ----------------------------------------------------------------------------

def _fourier_conv_kernel(wfu_re_ref, wfu_im_ref, wlfu_re_ref, wlfu_im_ref,
                         fu_re_ref, fu_im_ref, lfu_re_ref, lfu_im_ref,
                         fu_o_ref, lfu_o_ref):
    def fu_conv(wre_ref, wim_ref, re_ref, im_ref, o_ref):
        wre = wre_ref[...].astype(jnp.bfloat16)       # (2C, C)
        wim = wim_ref[...].astype(jnp.bfloat16)       # (2C, C)
        for b in range(re_ref.shape[0]):
            re = re_ref[b].astype(jnp.bfloat16)       # (C, S)
            im = im_ref[b].astype(jnp.bfloat16)       # (C, S)
            y = (jnp.dot(wre, re, preferred_element_type=jnp.float32)
                 + jnp.dot(wim, im, preferred_element_type=jnp.float32))   # (2C, S) f32
            o_ref[b] = _leaky_relu(_instance_norm(y)).astype(o_ref.dtype)

    fu_conv(wfu_re_ref, wfu_im_ref, fu_re_ref, fu_im_ref, fu_o_ref)
    fu_conv(wlfu_re_ref, wlfu_im_ref, lfu_re_ref, lfu_im_ref, lfu_o_ref)


# ----------------------------------------------------------------------------
# Kernel 3: SpectralTransform.conv2 on (y + fu_out + lfu_tiled), add convl2g,
# then InstanceNorm (FFC_ACT global branch; activation = Identity).
# ----------------------------------------------------------------------------

def _post_kernel(w2_ref, y_ref, fu_ref, xs_ref, l2g_ref, outxg_ref):
    w2 = w2_ref[...].astype(jnp.bfloat16)             # (8, 4)
    for b in range(y_ref.shape[0]):
        s = y_ref[b] + fu_ref[b] + xs_ref[b]          # (4, HW) f32
        g2g = jnp.dot(w2, s.astype(jnp.bfloat16),
                      preferred_element_type=jnp.float32)            # (8, HW)
        outxg_ref[b] = _instance_norm(l2g_ref[b] + g2g).astype(outxg_ref.dtype)


# ----------------------------------------------------------------------------
# pallas_call plumbing: single grid step, full-array blocks (satisfies the
# (8,128) rule because block == array extents).
# ----------------------------------------------------------------------------

def _spec(shape):
    n = len(shape)
    return pl.BlockSpec(shape, lambda i, n=n: (0,) * n)


def _call(kernel, inputs, out_shapes):
    return pl.pallas_call(
        kernel,
        out_shape=tuple(jax.ShapeDtypeStruct(s, jnp.float32) for s in out_shapes),
        grid=(1,),
        in_specs=[_spec(a.shape) for a in inputs],
        out_specs=tuple(_spec(s) for s in out_shapes),
        compiler_params=pltpu.CompilerParams(dimension_semantics=("arbitrary",)),
    )(*inputs)


# ----------------------------------------------------------------------------
# Forward pass (FFT + LFU shuffle stay in plain JAX)
# ----------------------------------------------------------------------------

def ffc_act_forward(x, params):
    """FFC_ACT forward. x: (B, 16, H, W) NCHW; first 8 channels local, last 8 global."""
    B, C, H, W = x.shape
    HW = H * W
    x_flat = x.reshape(B, C, HW)

    # Stack convl2l/convg2l/convl2g/SpectralTransform.conv1 into one (20, 16) matmul.
    w_comb = jnp.concatenate([
        jnp.concatenate([params["w_l2l"], params["w_g2l"]], axis=1),            # rows 0:8
        jnp.concatenate([params["w_l2g"], jnp.zeros((8, 8), jnp.float32)], axis=1),  # rows 8:16
        jnp.concatenate([jnp.zeros((4, 8), jnp.float32), params["w_st_conv1"]], axis=1),  # rows 16:20
    ], axis=0)

    out_xl_f, l2g_f, y_f = _call(_pre_kernel, (w_comb, x_flat),
                                 ((B, 8, HW), (B, 8, HW), (B, 4, HW)))

    # --- FFTs ---------------------------------------------------------------
    # TODO(synk): FFT has no Pallas/Mosaic primitive; rfftn/irfftn stay in plain JAX.
    y = y_f.reshape(B, 4, H, W)

    fu_f = jnp.fft.rfftn(y, axes=(-2, -1), norm="ortho")                 # (B, 4, H, Wf)
    Wf = fu_f.shape[-1]
    fu_re = jnp.real(fu_f).reshape(B, 4, H * Wf)
    fu_im = jnp.imag(fu_f).reshape(B, 4, H * Wf)

    # LFU branch: 2x2 spatial quadrants of y[:, :c//4] stacked onto channels.
    xt = y[:, :1]
    xs0 = jnp.concatenate(jnp.split(xt, 2, axis=-2), axis=1)             # (B, 2, H/2, W)
    xs0 = jnp.concatenate(jnp.split(xs0, 2, axis=-1), axis=1)            # (B, 4, H/2, W/2)
    Hh, Wh = H // 2, W // 2
    lfu_f = jnp.fft.rfftn(xs0, axes=(-2, -1), norm="ortho")              # (B, 4, Hh, Wfh)
    Wfh = lfu_f.shape[-1]
    lfu_re = jnp.real(lfu_f).reshape(B, 4, Hh * Wfh)
    lfu_im = jnp.imag(lfu_f).reshape(B, 4, Hh * Wfh)

    # --- fused FourierUnit convs (fu + lfu in one pallas_call) ---------------
    fu_o, lfu_o = _call(
        _fourier_conv_kernel,
        (params["w_fu"][:, :4], params["w_fu"][:, 4:],
         params["w_lfu"][:, :4], params["w_lfu"][:, 4:],
         fu_re, fu_im, lfu_re, lfu_im),
        ((B, 8, H * Wf), (B, 8, Hh * Wfh)))

    fu_c = jax.lax.complex(fu_o[:, :4], fu_o[:, 4:]).reshape(B, 4, H, Wf)
    fu_out = jnp.fft.irfftn(fu_c, s=(H, W), axes=(-2, -1), norm="ortho")       # (B,4,H,W)
    lfu_c = jax.lax.complex(lfu_o[:, :4], lfu_o[:, 4:]).reshape(B, 4, Hh, Wfh)
    lfu_out = jnp.fft.irfftn(lfu_c, s=(Hh, Wh), axes=(-2, -1), norm="ortho")   # (B,4,Hh,Wh)
    xs = jnp.tile(lfu_out, (1, 1, 2, 2))                                       # (B,4,H,W)

    # --- conv2 + l2g add + InstanceNorm (activation = Identity) --------------
    (out_xg_f,) = _call(
        _post_kernel,
        (params["w_st_conv2"], y_f, fu_out.reshape(B, 4, HW),
         xs.reshape(B, 4, HW), l2g_f),
        ((B, 8, HW),))

    return out_xl_f.reshape(B, 8, H, W), out_xg_f.reshape(B, 8, H, W)


def init_params(key):
    """Deterministic synthetic weights.

    PyTorch 1x1 conv weights (C_out, C_in, 1, 1) -> (C_out, C_in).  The FourierUnit
    conv weights (w_fu / w_lfu) are stored in a blocked real/imag channel layout
    (columns [re0..re3, im0..im3], rows likewise); this corresponds to a torch
    weight under a fixed channel permutation (re/im interleaved <-> blocked).
    """
    ks = jax.random.split(key, 7)

    def w(k, co, ci):
        return jax.random.normal(k, (co, ci), jnp.float32) * (1.0 / jnp.sqrt(ci))

    return {
        "w_l2l":      w(ks[0], 8, 8),   # convl2l
        "w_l2g":      w(ks[1], 8, 8),   # convl2g
        "w_g2l":      w(ks[2], 8, 8),   # convg2l
        "w_st_conv1": w(ks[3], 4, 8),   # SpectralTransform.conv1
        "w_fu":       w(ks[4], 8, 8),   # FourierUnit (fu) conv_layer (2*4 -> 2*4)
        "w_lfu":      w(ks[5], 8, 8),   # FourierUnit (lfu) conv_layer
        "w_st_conv2": w(ks[6], 8, 4),   # SpectralTransform.conv2
    }


if __name__ == "__main__":
    key = jax.random.PRNGKey(0)
    k_x, k_p = jax.random.split(key)

    x = jax.random.normal(k_x, (2, 16, 16, 16), jnp.float32)   # NCHW
    params = init_params(k_p)

    out_l, out_g = jax.jit(lambda xx: ffc_act_forward(xx, params))(x)
    jax.block_until_ready((out_l, out_g))

    assert out_l.shape == (2, 8, 16, 16) and out_g.shape == (2, 8, 16, 16)
    assert jnp.all(jnp.isfinite(out_l)) and jnp.all(jnp.isfinite(out_g))
    print("KERNEL_OK")
</pallas_src>

<mosaic_0001>
module attributes {stable_mosaic.version = 11 : i64} {
  func.func @_pre_kernel(%arg0: i32, %arg1: memref<20x16xf32, #tpu.memory_space<vmem>>, %arg2: memref<2x16x256xf32, #tpu.memory_space<vmem>>, %arg3: memref<2x8x256xf32, #tpu.memory_space<vmem>>, %arg4: memref<2x8x256xf32, #tpu.memory_space<vmem>>, %arg5: memref<2x4x256xf32, #tpu.memory_space<vmem>>) attributes {dimension_semantics = [#tpu.dimension_semantics<arbitrary>], iteration_bounds = array<i64: 1>, scalar_prefetch = 0 : i64, scratch_operands = 0 : i64, tpu.core_type = #tpu.core_type<tc>, window_params = [{pipeline_mode = #tpu.pipeline_mode<synchronous>, transform_indices = @transform_0, window_bounds = array<i64: 20, 16>}, {pipeline_mode = #tpu.pipeline_mode<synchronous>, transform_indices = @transform_1, window_bounds = array<i64: 2, 16, 256>}, {pipeline_mode = #tpu.pipeline_mode<synchronous>, transform_indices = @transform_2, window_bounds = array<i64: 2, 8, 256>}, {pipeline_mode = #tpu.pipeline_mode<synchronous>, transform_indices = @transform_3, window_bounds = array<i64: 2, 8, 256>}, {pipeline_mode = #tpu.pipeline_mode<synchronous>, transform_indices = @transform_4, window_bounds = array<i64: 2, 4, 256>}]} {
    %c0 = arith.constant 0 : index
    %c0_0 = arith.constant 0 : index
    %0 = vector.load %arg1[%c0, %c0_0] : memref<20x16xf32, #tpu.memory_space<vmem>>, vector<20x16xf32>
    %1 = arith.truncf %0 : vector<20x16xf32> to vector<20x16xbf16>
    %c0_1 = arith.constant 0 : index
    %c0_2 = arith.constant 0 : index
    %c0_3 = arith.constant 0 : index
    %2 = vector.load %arg2[%c0_1, %c0_2, %c0_3] : memref<2x16x256xf32, #tpu.memory_space<vmem>>, vector<1x16x256xf32>
    %3 = vector.shape_cast %2 : vector<1x16x256xf32> to vector<16x256xf32>
    %4 = arith.truncf %3 : vector<16x256xf32> to vector<16x256xbf16>
    %cst = arith.constant dense<0.000000e+00> : vector<20x256xf32>
    %5 = tpu.matmul %1, %4, %cst {dimension_numbers = #tpu.dot_dimension_numbers<[1], [0], [0], [1], [0, 0, 1, 1], [], []>} : vector<20x16xbf16>, vector<16x256xbf16>, vector<20x256xf32> -> vector<20x256xf32>
    %6 = vector.extract_strided_slice %5 {offsets = [0, 0], sizes = [8, 256], strides = [1, 1]} : vector<20x256xf32> to vector<8x256xf32>
    %cst_4 = arith.constant dense<0.000000e+00> : vector<8xf32>
    %7 = vector.multi_reduction <add>, %6, %cst_4 [1] : vector<8x256xf32> to vector<8xf32>
    %8 = vector.shape_cast %7 : vector<8xf32> to vector<8x1xf32>
    %cst_5 = arith.constant 2.560000e+02 : f32
    %9 = vector.broadcast %cst_5 : f32 to vector<8x1xf32>
    %10 = arith.divf %8, %9 : vector<8x1xf32>
    %11 = vector.broadcast %10 : vector<8x1xf32> to vector<8x256xf32>
    %12 = arith.subf %6, %11 : vector<8x256xf32>
    %13 = arith.mulf %12, %12 : vector<8x256xf32>
    %cst_6 = arith.constant dense<0.000000e+00> : vector<8xf32>
    %14 = vector.multi_reduction <add>, %13, %cst_6 [1] : vector<8x256xf32> to vector<8xf32>
    %15 = vector.shape_cast %14 : vector<8xf32> to vector<8x1xf32>
    %cst_7 = arith.constant 2.560000e+02 : f32
    %16 = vector.broadcast %cst_7 : f32 to vector<8x1xf32>
    %17 = arith.divf %15, %16 : vector<8x1xf32>
    %cst_8 = arith.constant 9.99999974E-6 : f32
    %18 = vector.broadcast %cst_8 : f32 to vector<8x1xf32>
    %19 = arith.addf %17, %18 : vector<8x1xf32>
    %20 = math.rsqrt %19 : vector<8x1xf32>
    %21 = vector.broadcast %20 : vector<8x1xf32> to vector<8x256xf32>
    %22 = arith.mulf %12, %21 : vector<8x256xf32>
    %c0_9 = arith.constant 0 : index
    %c0_10 = arith.constant 0 : index
    %c0_11 = arith.constant 0 : index
    %23 = vector.load %arg3[%c0_9, %c0_10, %c0_11] : memref<2x8x256xf32, #tpu.memory_space<vmem>>, vector<1x8x256xf32>
    %24 = vector.shape_cast %23 : vector<1x8x256xf32> to vector<8x256xf32>
    %25 = vector.shape_cast %22 : vector<8x256xf32> to vector<1x8x256xf32>
    tpu.vector_store %arg3[%c0_9, %c0_10, %c0_11], %25 {strides = array<i32>} : memref<2x8x256xf32, #tpu.memory_space<vmem>>, vector<1x8x256xf32>,
    %26 = vector.extract_strided_slice %5 {offsets = [8, 0], sizes = [8, 256], strides = [1, 1]} : vector<20x256xf32> to vector<8x256xf32>
    %c0_12 = arith.constant 0 : index
    %c0_13 = arith.constant 0 : index
    %c0_14 = arith.constant 0 : index
    %27 = vector.load %arg4[%c0_12, %c0_13, %c0_14] : memref<2x8x256xf32, #tpu.memory_space<vmem>>, vector<1x8x256xf32>
    %28 = vector.shape_cast %27 : vector<1x8x256xf32> to vector<8x256xf32>
    %29 = vector.shape_cast %26 : vector<8x256xf32> to vector<1x8x256xf32>
    tpu.vector_store %arg4[%c0_12, %c0_13, %c0_14], %29 {strides = array<i32>} : memref<2x8x256xf32, #tpu.memory_space<vmem>>, vector<1x8x256xf32>,
    %30 = vector.extract_strided_slice %5 {offsets = [16, 0], sizes = [4, 256], strides = [1, 1]} : vector<20x256xf32> to vector<4x256xf32>
    %cst_15 = arith.constant dense<0.000000e+00> : vector<4xf32>
    %31 = vector.multi_reduction <add>, %30, %cst_15 [1] : vector<4x256xf32> to vector<4xf32>
    %32 = vector.shape_cast %31 : vector<4xf32> to vector<4x1xf32>
    %cst_16 = arith.constant 2.560000e+02 : f32
    %33 = vector.broadcast %cst_16 : f32 to vector<4x1xf32>
    %34 = arith.divf %32, %33 : vector<4x1xf32>
    %35 = vector.broadcast %34 : vector<4x1xf32> to vector<4x256xf32>
    %36 = arith.subf %30, %35 : vector<4x256xf32>
    %37 = arith.mulf %36, %36 : vector<4x256xf32>
    %cst_17 = arith.constant dense<0.000000e+00> : vector<4xf32>
    %38 = vector.multi_reduction <add>, %37, %cst_17 [1] : vector<4x256xf32> to vector<4xf32>
    %39 = vector.shape_cast %38 : vector<4xf32> to vector<4x1xf32>
    %cst_18 = arith.constant 2.560000e+02 : f32
    %40 = vector.broadcast %cst_18 : f32 to vector<4x1xf32>
    %41 = arith.divf %39, %40 : vector<4x1xf32>
    %cst_19 = arith.constant 9.99999974E-6 : f32
    %42 = vector.broadcast %cst_19 : f32 to vector<4x1xf32>
    %43 = arith.addf %41, %42 : vector<4x1xf32>
    %44 = math.rsqrt %43 : vector<4x1xf32>
    %45 = vector.broadcast %44 : vector<4x1xf32> to vector<4x256xf32>
    %46 = arith.mulf %36, %45 : vector<4x256xf32>
    %cst_20 = arith.constant 0.000000e+00 : f32
    %47 = vector.broadcast %cst_20 : f32 to vector<4x256xf32>
    %48 = arith.cmpf oge, %46, %47 : vector<4x256xf32>
    %cst_21 = arith.constant 0.00999999977 : f32
    %49 = vector.broadcast %cst_21 : f32 to vector<4x256xf32>
    %50 = arith.mulf %49, %46 : vector<4x256xf32>
    %51 = arith.select %48, %46, %50 : vector<4x256xi1>, vector<4x256xf32>
    %c0_22 = arith.constant 0 : index
    %c0_23 = arith.constant 0 : index
    %c0_24 = arith.constant 0 : index
    %52 = vector.load %arg5[%c0_22, %c0_23, %c0_24] : memref<2x4x256xf32, #tpu.memory_space<vmem>>, vector<1x4x256xf32>
    %53 = vector.shape_cast %52 : vector<1x4x256xf32> to vector<4x256xf32>
    %54 = vector.shape_cast %51 : vector<4x256xf32> to vector<1x4x256xf32>
    tpu.vector_store %arg5[%c0_22, %c0_23, %c0_24], %54 {strides = array<i32>} : memref<2x4x256xf32, #tpu.memory_space<vmem>>, vector<1x4x256xf32>,
    %c1 = arith.constant 1 : index
    %c0_25 = arith.constant 0 : index
    %c0_26 = arith.constant 0 : index
    %55 = vector.load %arg2[%c1, %c0_25, %c0_26] : memref<2x16x256xf32, #tpu.memory_space<vmem>>, vector<1x16x256xf32>
    %56 = vector.shape_cast %55 : vector<1x16x256xf32> to vector<16x256xf32>
    %57 = arith.truncf %56 : vector<16x256xf32> to vector<16x256xbf16>
    %cst_27 = arith.constant dense<0.000000e+00> : vector<20x256xf32>
    %58 = tpu.matmul %1, %57, %cst_27 {dimension_numbers = #tpu.dot_dimension_numbers<[1], [0], [0], [1], [0, 0, 1, 1], [], []>} : vector<20x16xbf16>, vector<16x256xbf16>, vector<20x256xf32> -> vector<20x256xf32>
    %59 = vector.extract_strided_slice %58 {offsets = [0, 0], sizes = [8, 256], strides = [1, 1]} : vector<20x256xf32> to vector<8x256xf32>
    %cst_28 = arith.constant dense<0.000000e+00> : vector<8xf32>
    %60 = vector.multi_reduction <add>, %59, %cst_28 [1] : vector<8x256xf32> to vector<8xf32>
    %61 = vector.shape_cast %60 : vector<8xf32> to vector<8x1xf32>
    %cst_29 = arith.constant 2.560000e+02 : f32
    %62 = vector.broadcast %cst_29 : f32 to vector<8x1xf32>
    %63 = arith.divf %61, %62 : vector<8x1xf32>
    %64 = vector.broadcast %63 : vector<8x1xf32> to vector<8x256xf32>
    %65 = arith.subf %59, %64 : vector<8x256xf32>
    %66 = arith.mulf %65, %65 : vector<8x256xf32>
    %cst_30 = arith.constant dense<0.000000e+00> : vector<8xf32>
    %67 = vector.multi_reduction <add>, %66, %cst_30 [1] : vector<8x256xf32> to vector<8xf32>
    %68 = vector.shape_cast %67 : vector<8xf32> to vector<8x1xf32>
    %cst_31 = arith.constant 2.560000e+02 : f32
    %69 = vector.broadcast %cst_31 : f32 to vector<8x1xf32>
    %70 = arith.divf %68, %69 : vector<8x1xf32>
    %cst_32 = arith.constant 9.99999974E-6 : f32
    %71 = vector.broadcast %cst_32 : f32 to vector<8x1xf32>
    %72 = arith.addf %70, %71 : vector<8x1xf32>
    %73 = math.rsqrt %72 : vector<8x1xf32>
    %74 = vector.broadcast %73 : vector<8x1xf32> to vector<8x256xf32>
    %75 = arith.mulf %65, %74 : vector<8x256xf32>
    %c1_33 = arith.constant 1 : index
    %c0_34 = arith.constant 0 : index
    %c0_35 = arith.constant 0 : index
    %76 = vector.load %arg3[%c1_33, %c0_34, %c0_35] : memref<2x8x256xf32, #tpu.memory_space<vmem>>, vector<1x8x256xf32>
    %77 = vector.shape_cast %76 : vector<1x8x256xf32> to vector<8x256xf32>
    %78 = vector.shape_cast %75 : vector<8x256xf32> to vector<1x8x256xf32>
    tpu.vector_store %arg3[%c1_33, %c0_34, %c0_35], %78 {strides = array<i32>} : memref<2x8x256xf32, #tpu.memory_space<vmem>>, vector<1x8x256xf32>,
    %79 = vector.extract_strided_slice %58 {offsets = [8, 0], sizes = [8, 256], strides = [1, 1]} : vector<20x256xf32> to vector<8x256xf32>
    %c1_36 = arith.constant 1 : index
    %c0_37 = arith.constant 0 : index
    %c0_38 = arith.constant 0 : index
    %80 = vector.load %arg4[%c1_36, %c0_37, %c0_38] : memref<2x8x256xf32, #tpu.memory_space<vmem>>, vector<1x8x256xf32>
    %81 = vector.shape_cast %80 : vector<1x8x256xf32> to vector<8x256xf32>
    %82 = vector.shape_cast %79 : vector<8x256xf32> to vector<1x8x256xf32>
    tpu.vector_store %arg4[%c1_36, %c0_37, %c0_38], %82 {strides = array<i32>} : memref<2x8x256xf32, #tpu.memory_space<vmem>>, vector<1x8x256xf32>,
    %83 = vector.extract_strided_slice %58 {offsets = [16, 0], sizes = [4, 256], strides = [1, 1]} : vector<20x256xf32> to vector<4x256xf32>
    %cst_39 = arith.constant dense<0.000000e+00> : vector<4xf32>
    %84 = vector.multi_reduction <add>, %83, %cst_39 [1] : vector<4x256xf32> to vector<4xf32>
    %85 = vector.shape_cast %84 : vector<4xf32> to vector<4x1xf32>
    %cst_40 = arith.constant 2.560000e+02 : f32
    %86 = vector.broadcast %cst_40 : f32 to vector<4x1xf32>
    %87 = arith.divf %85, %86 : vector<4x1xf32>
    %88 = vector.broadcast %87 : vector<4x1xf32> to vector<4x256xf32>
    %89 = arith.subf %83, %88 : vector<4x256xf32>
    %90 = arith.mulf %89, %89 : vector<4x256xf32>
    %cst_41 = arith.constant dense<0.000000e+00> : vector<4xf32>
    %91 = vector.multi_reduction <add>, %90, %cst_41 [1] : vector<4x256xf32> to vector<4xf32>
    %92 = vector.shape_cast %91 : vector<4xf32> to vector<4x1xf32>
    %cst_42 = arith.constant 2.560000e+02 : f32
    %93 = vector.broadcast %cst_42 : f32 to vector<4x1xf32>
    %94 = arith.divf %92, %93 : vector<4x1xf32>
    %cst_43 = arith.constant 9.99999974E-6 : f32
    %95 = vector.broadcast %cst_43 : f32 to vector<4x1xf32>
    %96 = arith.addf %94, %95 : vector<4x1xf32>
    %97 = math.rsqrt %96 : vector<4x1xf32>
    %98 = vector.broadcast %97 : vector<4x1xf32> to vector<4x256xf32>
    %99 = arith.mulf %89, %98 : vector<4x256xf32>
    %cst_44 = arith.constant 0.000000e+00 : f32
    %100 = vector.broadcast %cst_44 : f32 to vector<4x256xf32>
    %101 = arith.cmpf oge, %99, %100 : vector<4x256xf32>
    %cst_45 = arith.constant 0.00999999977 : f32
    %102 = vector.broadcast %cst_45 : f32 to vector<4x256xf32>
    %103 = arith.mulf %102, %99 : vector<4x256xf32>
    %104 = arith.select %101, %99, %103 : vector<4x256xi1>, vector<4x256xf32>
    %c1_46 = arith.constant 1 : index
    %c0_47 = arith.constant 0 : index
    %c0_48 = arith.constant 0 : index
    %105 = vector.load %arg5[%c1_46, %c0_47, %c0_48] : memref<2x4x256xf32, #tpu.memory_space<vmem>>, vector<1x4x256xf32>
    %106 = vector.shape_cast %105 : vector<1x4x256xf32> to vector<4x256xf32>
    %107 = vector.shape_cast %104 : vector<4x256xf32> to vector<1x4x256xf32>
    tpu.vector_store %arg5[%c1_46, %c0_47, %c0_48], %107 {strides = array<i32>} : memref<2x4x256xf32, #tpu.memory_space<vmem>>, vector<1x4x256xf32>,
    return
  }
  func.func @transform_0(%arg0: i32) -> (i32, i32) {
    %c0_i32 = arith.constant 0 : i32
    %c0_i32_0 = arith.constant 0 : i32
    %c0_i32_1 = arith.constant 0 : i32
    return %c0_i32, %c0_i32_0 : i32, i32
  }
  func.func @transform_1(%arg0: i32) -> (i32, i32, i32) {
    %c0_i32 = arith.constant 0 : i32
    %c0_i32_0 = arith.constant 0 : i32
    %c0_i32_1 = arith.constant 0 : i32
    %c0_i32_2 = arith.constant 0 : i32
    return %c0_i32, %c0_i32_0, %c0_i32_1 : i32, i32, i32
  }
  func.func @transform_2(%arg0: i32) -> (i32, i32, i32) {
    %c0_i32 = arith.constant 0 : i32
    %c0_i32_0 = arith.constant 0 : i32
    %c0_i32_1 = arith.constant 0 : i32
    %c0_i32_2 = arith.constant 0 : i32
    return %c0_i32, %c0_i32_0, %c0_i32_1 : i32, i32, i32
  }
  func.func @transform_3(%arg0: i32) -> (i32, i32, i32) {
    %c0_i32 = arith.constant 0 : i32
    %c0_i32_0 = arith.constant 0 : i32
    %c0_i32_1 = arith.constant 0 : i32
    %c0_i32_2 = arith.constant 0 : i32
    return %c0_i32, %c0_i32_0, %c0_i32_1 : i32, i32, i32
  }
  func.func @transform_4(%arg0: i32) -> (i32, i32, i32) {
    %c0_i32 = arith.constant 0 : i32
    %c0_i32_0 = arith.constant 0 : i32
    %c0_i32_1 = arith.constant 0 : i32
    %c0_i32_2 = arith.constant 0 : i32
    return %c0_i32, %c0_i32_0, %c0_i32_1 : i32, i32, i32
  }
}

module attributes {stable_mosaic.version = 11 : i64} {
  func.func @_fourier_conv_kernel(%arg0: i32, %arg1: memref<8x4xf32, #tpu.memory_space<vmem>>, %arg2: memref<8x4xf32, #tpu.memory_space<vmem>>, %arg3: memref<8x4xf32, #tpu.memory_space<vmem>>, %arg4: memref<8x4xf32, #tpu.memory_space<vmem>>, %arg5: memref<2x4x144xf32, #tpu.memory_space<vmem>>, %arg6: memref<2x4x144xf32, #tpu.memory_space<vmem>>, %arg7: memref<2x4x40xf32, #tpu.memory_space<vmem>>, %arg8: memref<2x4x40xf32, #tpu.memory_space<vmem>>, %arg9: memref<2x8x144xf32, #tpu.memory_space<vmem>>, %arg10: memref<2x8x40xf32, #tpu.memory_space<vmem>>) attributes {dimension_semantics = [#tpu.dimension_semantics<arbitrary>], iteration_bounds = array<i64: 1>, scalar_prefetch = 0 : i64, scratch_operands = 0 : i64, tpu.core_type = #tpu.core_type<tc>, window_params = [{pipeline_mode = #tpu.pipeline_mode<synchronous>, transform_indices = @transform_0, window_bounds = array<i64: 8, 4>}, {pipeline_mode = #tpu.pipeline_mode<synchronous>, transform_indices = @transform_1, window_bounds = array<i64: 8, 4>}, {pipeline_mode = #tpu.pipeline_mode<synchronous>, transform_indices = @transform_2, window_bounds = array<i64: 8, 4>}, {pipeline_mode = #tpu.pipeline_mode<synchronous>, transform_indices = @transform_3, window_bounds = array<i64: 8, 4>}, {pipeline_mode = #tpu.pipeline_mode<synchronous>, transform_indices = @transform_4, window_bounds = array<i64: 2, 4, 144>}, {pipeline_mode = #tpu.pipeline_mode<synchronous>, transform_indices = @transform_5, window_bounds = array<i64: 2, 4, 144>}, {pipeline_mode = #tpu.pipeline_mode<synchronous>, transform_indices = @transform_6, window_bounds = array<i64: 2, 4, 40>}, {pipeline_mode = #tpu.pipeline_mode<synchronous>, transform_indices = @transform_7, window_bounds = array<i64: 2, 4, 40>}, {pipeline_mode = #tpu.pipeline_mode<synchronous>, transform_indices = @transform_8, window_bounds = array<i64: 2, 8, 144>}, {pipeline_mode = #tpu.pipeline_mode<synchronous>, transform_indices = @transform_9, window_bounds = array<i64: 2, 8, 40>}]} {
    %c0 = arith.constant 0 : index
    %c0_0 = arith.constant 0 : index
    %0 = vector.load %arg1[%c0, %c0_0] : memref<8x4xf32, #tpu.memory_space<vmem>>, vector<8x4xf32>
    %1 = arith.truncf %0 : vector<8x4xf32> to vector<8x4xbf16>
    %c0_1 = arith.constant 0 : index
    %c0_2 = arith.constant 0 : index
    %2 = vector.load %arg2[%c0_1, %c0_2] : memref<8x4xf32, #tpu.memory_space<vmem>>, vector<8x4xf32>
    %3 = arith.truncf %2 : vector<8x4xf32> to vector<8x4xbf16>
    %c0_3 = arith.constant 0 : index
    %c0_4 = arith.constant 0 : index
    %c0_5 = arith.constant 0 : index
    %4 = vector.load %arg5[%c0_3, %c0_4, %c0_5] : memref<2x4x144xf32, #tpu.memory_space<vmem>>, vector<1x4x144xf32>
    %5 = vector.shape_cast %4 : vector<1x4x144xf32> to vector<4x144xf32>
    %6 = arith.truncf %5 : vector<4x144xf32> to vector<4x144xbf16>
    %c0_6 = arith.constant 0 : index
    %c0_7 = arith.constant 0 : index
    %c0_8 = arith.constant 0 : index
    %7 = vector.load %arg6[%c0_6, %c0_7, %c0_8] : memref<2x4x144xf32, #tpu.memory_space<vmem>>, vector<1x4x144xf32>
    %8 = vector.shape_cast %7 : vector<1x4x144xf32> to vector<4x144xf32>
    %9 = arith.truncf %8 : vector<4x144xf32> to vector<4x144xbf16>
    %cst = arith.constant dense<0.000000e+00> : vector<8x144xf32>
    %10 = tpu.matmul %1, %6, %cst {dimension_numbers = #tpu.dot_dimension_numbers<[1], [0], [0], [1], [0, 0, 1, 1], [], []>} : vector<8x4xbf16>, vector<4x144xbf16>, vector<8x144xf32> -> vector<8x144xf32>
    %cst_9 = arith.constant dense<0.000000e+00> : vector<8x144xf32>
    %11 = tpu.matmul %3, %9, %cst_9 {dimension_numbers = #tpu.dot_dimension_numbers<[1], [0], [0], [1], [0, 0, 1, 1], [], []>} : vector<8x4xbf16>, vector<4x144xbf16>, vector<8x144xf32> -> vector<8x144xf32>
    %12 = arith.addf %10, %11 : vector<8x144xf32>
    %cst_10 = arith.constant dense<0.000000e+00> : vector<8xf32>
    %13 = vector.multi_reduction <add>, %12, %cst_10 [1] : vector<8x144xf32> to vector<8xf32>
    %14 = vector.shape_cast %13 : vector<8xf32> to vector<8x1xf32>
    %cst_11 = arith.constant 1.440000e+02 : f32
    %15 = vector.broadcast %cst_11 : f32 to vector<8x1xf32>
    %16 = arith.divf %14, %15 : vector<8x1xf32>
    %17 = vector.broadcast %16 : vector<8x1xf32> to vector<8x144xf32>
    %18 = arith.subf %12, %17 : vector<8x144xf32>
    %19 = arith.mulf %18, %18 : vector<8x144xf32>
    %cst_12 = arith.constant dense<0.000000e+00> : vector<8xf32>
    %20 = vector.multi_reduction <add>, %19, %cst_12 [1] : vector<8x144xf32> to vector<8xf32>
    %21 = vector.shape_cast %20 : vector<8xf32> to vector<8x1xf32>
    %cst_13 = arith.constant 1.440000e+02 : f32
    %22 = vector.broadcast %cst_13 : f32 to vector<8x1xf32>
    %23 = arith.divf %21, %22 : vector<8x1xf32>
    %cst_14 = arith.constant 9.99999974E-6 : f32
    %24 = vector.broadcast %cst_14 : f32 to vector<8x1xf32>
    %25 = arith.addf %23, %24 : vector<8x1xf32>
    %26 = math.rsqrt %25 : vector<8x1xf32>
    %27 = vector.broadcast %26 : vector<8x1xf32> to vector<8x144xf32>
    %28 = arith.mulf %18, %27 : vector<8x144xf32>
    %cst_15 = arith.constant 0.000000e+00 : f32
    %29 = vector.broadcast %cst_15 : f32 to vector<8x144xf32>
    %30 = arith.cmpf oge, %28, %29 : vector<8x144xf32>
    %cst_16 = arith.constant 0.00999999977 : f32
    %31 = vector.broadcast %cst_16 : f32 to vector<8x144xf32>
    %32 = arith.mulf %31, %28 : vector<8x144xf32>
    %33 = arith.select %30, %28, %32 : vector<8x144xi1>, vector<8x144xf32>
    %c0_17 = arith.constant 0 : index
    %c0_18 = arith.constant 0 : index
    %c0_19 = arith.constant 0 : index
    %34 = vector.load %arg9[%c0_17, %c0_18, %c0_19] : memref<2x8x144xf32, #tpu.memory_space<vmem>>, vector<1x8x144xf32>
    %35 = vector.shape_cast %34 : vector<1x8x144xf32> to vector<8x144xf32>
    %36 = vector.shape_cast %33 : vector<8x144xf32> to vector<1x8x144xf32>
    tpu.vector_store %arg9[%c0_17, %c0_18, %c0_19], %36 {strides = array<i32>} : memref<2x8x144xf32, #tpu.memory_space<vmem>>, vector<1x8x144xf32>,
    %c1 = arith.constant 1 : index
    %c0_20 = arith.constant 0 : index
    %c0_21 = arith.constant 0 : index
    %37 = vector.load %arg5[%c1, %c0_20, %c0_21] : memref<2x4x144xf32, #tpu.memory_space<vmem>>, vector<1x4x144xf32>
    %38 = vector.shape_cast %37 : vector<1x4x144xf32> to vector<4x144xf32>
    %39 = arith.truncf %38 : vector<4x144xf32> to vector<4x144xbf16>
    %c1_22 = arith.constant 1 : index
    %c0_23 = arith.constant 0 : index
    %c0_24 = arith.constant 0 : index
    %40 = vector.load %arg6[%c1_22, %c0_23, %c0_24] : memref<2x4x144xf32, #tpu.memory_space<vmem>>, vector<1x4x144xf32>
    %41 = vector.shape_cast %40 : vector<1x4x144xf32> to vector<4x144xf32>
    %42 = arith.truncf %41 : vector<4x144xf32> to vector<4x144xbf16>
    %cst_25 = arith.constant dense<0.000000e+00> : vector<8x144xf32>
    %43 = tpu.matmul %1, %39, %cst_25 {dimension_numbers = #tpu.dot_dimension_numbers<[1], [0], [0], [1], [0, 0, 1, 1], [], []>} : vector<8x4xbf16>, vector<4x144xbf16>, vector<8x144xf32> -> vector<8x144xf32>
    %cst_26 = arith.constant dense<0.000000e+00> : vector<8x144xf32>
    %44 = tpu.matmul %3, %42, %cst_26 {dimension_numbers = #tpu.dot_dimension_numbers<[1], [0], [0], [1], [0, 0, 1, 1], [], []>} : vector<8x4xbf16>, vector<4x144xbf16>, vector<8x144xf32> -> vector<8x144xf32>
    %45 = arith.addf %43, %44 : vector<8x144xf32>
    %cst_27 = arith.constant dense<0.000000e+00> : vector<8xf32>
    %46 = vector.multi_reduction <add>, %45, %cst_27 [1] : vector<8x144xf32> to vector<8xf32>
    %47 = vector.shape_cast %46 : vector<8xf32> to vector<8x1xf32>
    %cst_28 = arith.constant 1.440000e+02 : f32
    %48 = vector.broadcast %cst_28 : f32 to vector<8x1xf32>
    %49 = arith.divf %47, %48 : vector<8x1xf32>
    %50 = vector.broadcast %49 : vector<8x1xf32> to vector<8x144xf32>
    %51 = arith.subf %45, %50 : vector<8x144xf32>
    %52 = arith.mulf %51, %51 : vector<8x144xf32>
    %cst_29 = arith.constant dense<0.000000e+00> : vector<8xf32>
    %53 = vector.multi_reduction <add>, %52, %cst_29 [1] : vector<8x144xf32> to vector<8xf32>
    %54 = vector.shape_cast %53 : vector<8xf32> to vector<8x1xf32>
    %cst_30 = arith.constant 1.440000e+02 : f32
    %55 = vector.broadcast %cst_30 : f32 to vector<8x1xf32>
    %56 = arith.divf %54, %55 : vector<8x1xf32>
    %cst_31 = arith.constant 9.99999974E-6 : f32
    %57 = vector.broadcast %cst_31 : f32 to vector<8x1xf32>
    %58 = arith.addf %56, %57 : vector<8x1xf32>
    %59 = math.rsqrt %58 : vector<8x1xf32>
    %60 = vector.broadcast %59 : vector<8x1xf32> to vector<8x144xf32>
    %61 = arith.mulf %51, %60 : vector<8x144xf32>
    %cst_32 = arith.constant 0.000000e+00 : f32
    %62 = vector.broadcast %cst_32 : f32 to vector<8x144xf32>
    %63 = arith.cmpf oge, %61, %62 : vector<8x144xf32>
    %cst_33 = arith.constant 0.00999999977 : f32
    %64 = vector.broadcast %cst_33 : f32 to vector<8x144xf32>
    %65 = arith.mulf %64, %61 : vector<8x144xf32>
    %66 = arith.select %63, %61, %65 : vector<8x144xi1>, vector<8x144xf32>
    %c1_34 = arith.constant 1 : index
    %c0_35 = arith.constant 0 : index
    %c0_36 = arith.constant 0 : index
    %67 = vector.load %arg9[%c1_34, %c0_35, %c0_36] : memref<2x8x144xf32, #tpu.memory_space<vmem>>, vector<1x8x144xf32>
    %68 = vector.shape_cast %67 : vector<1x8x144xf32> to vector<8x144xf32>
    %69 = vector.shape_cast %66 : vector<8x144xf32> to vector<1x8x144xf32>
    tpu.vector_store %arg9[%c1_34, %c0_35, %c0_36], %69 {strides = array<i32>} : memref<2x8x144xf32, #tpu.memory_space<vmem>>, vector<1x8x144xf32>,
    %c0_37 = arith.constant 0 : index
    %c0_38 = arith.constant 0 : index
    %70 = vector.load %arg3[%c0_37, %c0_38] : memref<8x4xf32, #tpu.memory_space<vmem>>, vector<8x4xf32>
    %71 = arith.truncf %70 : vector<8x4xf32> to vector<8x4xbf16>
    %c0_39 = arith.constant 0 : index
    %c0_40 = arith.constant 0 : index
    %72 = vector.load %arg4[%c0_39, %c0_40] : memref<8x4xf32, #tpu.memory_space<vmem>>, vector<8x4xf32>
    %73 = arith.truncf %72 : vector<8x4xf32> to vector<8x4xbf16>
    %c0_41 = arith.constant 0 : index
    %c0_42 = arith.constant 0 : index
    %c0_43 = arith.constant 0 : index
    %74 = vector.load %arg7[%c0_41, %c0_42, %c0_43] : memref<2x4x40xf32, #tpu.memory_space<vmem>>, vector<1x4x40xf32>
    %75 = vector.shape_cast %74 : vector<1x4x40xf32> to vector<4x40xf32>
    %76 = arith.truncf %75 : vector<4x40xf32> to vector<4x40xbf16>
    %c0_44 = arith.constant 0 : index
    %c0_45 = arith.constant 0 : index
    %c0_46 = arith.constant 0 : index
    %77 = vector.load %arg8[%c0_44, %c0_45, %c0_46] : memref<2x4x40xf32, #tpu.memory_space<vmem>>, vector<1x4x40xf32>
    %78 = vector.shape_cast %77 : vector<1x4x40xf32> to vector<4x40xf32>
    %79 = arith.truncf %78 : vector<4x40xf32> to vector<4x40xbf16>
    %cst_47 = arith.constant dense<0.000000e+00> : vector<8x40xf32>
    %80 = tpu.matmul %71, %76, %cst_47 {dimension_numbers = #tpu.dot_dimension_numbers<[1], [0], [0], [1], [0, 0, 1, 1], [], []>} : vector<8x4xbf16>, vector<4x40xbf16>, vector<8x40xf32> -> vector<8x40xf32>
    %cst_48 = arith.constant dense<0.000000e+00> : vector<8x40xf32>
    %81 = tpu.matmul %73, %79, %cst_48 {dimension_numbers = #tpu.dot_dimension_numbers<[1], [0], [0], [1], [0, 0, 1, 1], [], []>} : vector<8x4xbf16>, vector<4x40xbf16>, vector<8x40xf32> -> vector<8x40xf32>
    %82 = arith.addf %80, %81 : vector<8x40xf32>
    %cst_49 = arith.constant dense<0.000000e+00> : vector<8xf32>
    %83 = vector.multi_reduction <add>, %82, %cst_49 [1] : vector<8x40xf32> to vector<8xf32>
    %84 = vector.shape_cast %83 : vector<8xf32> to vector<8x1xf32>
    %cst_50 = arith.constant 4.000000e+01 : f32
    %85 = vector.broadcast %cst_50 : f32 to vector<8x1xf32>
    %86 = arith.divf %84, %85 : vector<8x1xf32>
    %87 = vector.broadcast %86 : vector<8x1xf32> to vector<8x40xf32>
    %88 = arith.subf %82, %87 : vector<8x40xf32>
    %89 = arith.mulf %88, %88 : vector<8x40xf32>
    %cst_51 = arith.constant dense<0.000000e+00> : vector<8xf32>
    %90 = vector.multi_reduction <add>, %89, %cst_51 [1] : vector<8x40xf32> to vector<8xf32>
    %91 = vector.shape_cast %90 : vector<8xf32> to vector<8x1xf32>
    %cst_52 = arith.constant 4.000000e+01 : f32
    %92 = vector.broadcast %cst_52 : f32 to vector<8x1xf32>
    %93 = arith.divf %91, %92 : vector<8x1xf32>
    %cst_53 = arith.constant 9.99999974E-6 : f32
    %94 = vector.broadcast %cst_53 : f32 to vector<8x1xf32>
    %95 = arith.addf %93, %94 : vector<8x1xf32>
    %96 = math.rsqrt %95 : vector<8x1xf32>
    %97 = vector.broadcast %96 : vector<8x1xf32> to vector<8x40xf32>
    %98 = arith.mulf %88, %97 : vector<8x40xf32>
    %cst_54 = arith.constant 0.000000e+00 : f32
    %99 = vector.broadcast %cst_54 : f32 to vector<8x40xf32>
    %100 = arith.cmpf oge, %98, %99 : vector<8x40xf32>
    %cst_55 = arith.constant 0.00999999977 : f32
    %101 = vector.broadcast %cst_55 : f32 to vector<8x40xf32>
    %102 = arith.mulf %101, %98 : vector<8x40xf32>
    %103 = arith.select %100, %98, %102 : vector<8x40xi1>, vector<8x40xf32>
    %c0_56 = arith.constant 0 : index
    %c0_57 = arith.constant 0 : index
    %c0_58 = arith.constant 0 : index
    %104 = vector.load %arg10[%c0_56, %c0_57, %c0_58] : memref<2x8x40xf32, #tpu.memory_space<vmem>>, vector<1x8x40xf32>
    %105 = vector.shape_cast %104 : vector<1x8x40xf32> to vector<8x40xf32>
    %106 = vector.shape_cast %103 : vector<8x40xf32> to vector<1x8x40xf32>
    tpu.vector_store %arg10[%c0_56, %c0_57, %c0_58], %106 {strides = array<i32>} : memref<2x8x40xf32, #tpu.memory_space<vmem>>, vector<1x8x40xf32>,
    %c1_59 = arith.constant 1 : index
    %c0_60 = arith.constant 0 : index
    %c0_61 = arith.constant 0 : index
    %107 = vector.load %arg7[%c1_59, %c0_60, %c0_61] : memref<2x4x40xf32, #tpu.memory_space<vmem>>, vector<1x4x40xf32>
    %108 = vector.shape_cast %107 : vector<1x4x40xf32> to vector<4x40xf32>
    %109 = arith.truncf %108 : vector<4x40xf32> to vector<4x40xbf16>
    %c1_62 = arith.constant 1 : index
    %c0_63 = arith.constant 0 : index
    %c0_64 = arith.constant 0 : index
    %110 = vector.load %arg8[%c1_62, %c0_63, %c0_64] : memref<2x4x40xf32, #tpu.memory_space<vmem>>, vector<1x4x40xf32>
    %111 = vector.shape_cast %110 : vector<1x4x40xf32> to vector<4x40xf32>
    %112 = arith.truncf %111 : vector<4x40xf32> to vector<4x40xbf16>
    %cst_65 = arith.constant dense<0.000000e+00> : vector<8x40xf32>
    %113 = tpu.matmul %71, %109, %cst_65 {dimension_numbers = #tpu.dot_dimension_numbers<[1], [0], [0], [1], [0, 0, 1, 1], [], []>} : vector<8x4xbf16>, vector<4x40xbf16>, vector<8x40xf32> -> vector<8x40xf32>
    %cst_66 = arith.constant dense<0.000000e+00> : vector<8x40xf32>
    %114 = tpu.matmul %73, %112, %cst_66 {dimension_numbers = #tpu.dot_dimension_numbers<[1], [0], [0], [1], [0, 0, 1, 1], [], []>} : vector<8x4xbf16>, vector<4x40xbf16>, vector<8x40xf32> -> vector<8x40xf32>
    %115 = arith.addf %113, %114 : vector<8x40xf32>
    %cst_67 = arith.constant dense<0.000000e+00> : vector<8xf32>
    %116 = vector.multi_reduction <add>, %115, %cst_67 [1] : vector<8x40xf32> to vector<8xf32>
    %117 = vector.shape_cast %116 : vector<8xf32> to vector<8x1xf32>
    %cst_68 = arith.constant 4.000000e+01 : f32
    %118 = vector.broadcast %cst_68 : f32 to vector<8x1xf32>
    %119 = arith.divf %117, %118 : vector<8x1xf32>
    %120 = vector.broadcast %119 : vector<8x1xf32> to vector<8x40xf32>
    %121 = arith.subf %115, %120 : vector<8x40xf32>
    %122 = arith.mulf %121, %121 : vector<8x40xf32>
    %cst_69 = arith.constant dense<0.000000e+00> : vector<8xf32>
    %123 = vector.multi_reduction <add>, %122, %cst_69 [1] : vector<8x40xf32> to vector<8xf32>
    %124 = vector.shape_cast %123 : vector<8xf32> to vector<8x1xf32>
    %cst_70 = arith.constant 4.000000e+01 : f32
    %125 = vector.broadcast %cst_70 : f32 to vector<8x1xf32>
    %126 = arith.divf %124, %125 : vector<8x1xf32>
    %cst_71 = arith.constant 9.99999974E-6 : f32
    %127 = vector.broadcast %cst_71 : f32 to vector<8x1xf32>
    %128 = arith.addf %126, %127 : vector<8x1xf32>
    %129 = math.rsqrt %128 : vector<8x1xf32>
    %130 = vector.broadcast %129 : vector<8x1xf32> to vector<8x40xf32>
    %131 = arith.mulf %121, %130 : vector<8x40xf32>
    %cst_72 = arith.constant 0.000000e+00 : f32
    %132 = vector.broadcast %cst_72 : f32 to vector<8x40xf32>
    %133 = arith.cmpf oge, %131, %132 : vector<8x40xf32>
    %cst_73 = arith.constant 0.00999999977 : f32
    %134 = vector.broadcast %cst_73 : f32 to vector<8x40xf32>
    %135 = arith.mulf %134, %131 : vector<8x40xf32>
    %136 = arith.select %133, %131, %135 : vector<8x40xi1>, vector<8x40xf32>
    %c1_74 = arith.constant 1 : index
    %c0_75 = arith.constant 0 : index
    %c0_76 = arith.constant 0 : index
    %137 = vector.load %arg10[%c1_74, %c0_75, %c0_76] : memref<2x8x40xf32, #tpu.memory_space<vmem>>, vector<1x8x40xf32>
    %138 = vector.shape_cast %137 : vector<1x8x40xf32> to vector<8x40xf32>
    %139 = vector.shape_cast %136 : vector<8x40xf32> to vector<1x8x40xf32>
    tpu.vector_store %arg10[%c1_74, %c0_75, %c0_76], %139 {strides = array<i32>} : memref<2x8x40xf32, #tpu.memory_space<vmem>>, vector<1x8x40xf32>,
    return
  }
  func.func @transform_0(%arg0: i32) -> (i32, i32) {
    %c0_i32 = arith.constant 0 : i32
    %c0_i32_0 = arith.constant 0 : i32
    %c0_i32_1 = arith.constant 0 : i32
    return %c0_i32, %c0_i32_0 : i32, i32
  }
  func.func @transform_1(%arg0: i32) -> (i32, i32) {
    %c0_i32 = arith.constant 0 : i32
    %c0_i32_0 = arith.constant 0 : i32
    %c0_i32_1 = arith.constant 0 : i32
    return %c0_i32, %c0_i32_0 : i32, i32
  }
  func.func @transform_2(%arg0: i32) -> (i32, i32) {
    %c0_i32 = arith.constant 0 : i32
    %c0_i32_0 = arith.constant 0 : i32
    %c0_i32_1 = arith.constant 0 : i32
    return %c0_i32, %c0_i32_0 : i32, i32
  }
  func.func @transform_3(%arg0: i32) -> (i32, i32) {
    %c0_i32 = arith.constant 0 : i32
    %c0_i32_0 = arith.constant 0 : i32
    %c0_i32_1 = arith.constant 0 : i32
    return %c0_i32, %c0_i32_0 : i32, i32
  }
  func.func @transform_4(%arg0: i32) -> (i32, i32, i32) {
    %c0_i32 = arith.constant 0 : i32
    %c0_i32_0 = arith.constant 0 : i32
    %c0_i32_1 = arith.constant 0 : i32
    %c0_i32_2 = arith.constant 0 : i32
    return %c0_i32, %c0_i32_0, %c0_i32_1 : i32, i32, i32
  }
  func.func @transform_5(%arg0: i32) -> (i32, i32, i32) {
    %c0_i32 = arith.constant 0 : i32
    %c0_i32_0 = arith.constant 0 : i32
    %c0_i32_1 = arith.constant 0 : i32
    %c0_i32_2 = arith.constant 0 : i32
    return %c0_i32, %c0_i32_0, %c0_i32_1 : i32, i32, i32
  }
  func.func @transform_6(%arg0: i32) -> (i32, i32, i32) {
    %c0_i32 = arith.constant 0 : i32
    %c0_i32_0 = arith.constant 0 : i32
    %c0_i32_1 = arith.constant 0 : i32
    %c0_i32_2 = arith.constant 0 : i32
    return %c0_i32, %c0_i32_0, %c0_i32_1 : i32, i32, i32
  }
  func.func @transform_7(%arg0: i32) -> (i32, i32, i32) {
    %c0_i32 = arith.constant 0 : i32
    %c0_i32_0 = arith.constant 0 : i32
    %c0_i32_1 = arith.constant 0 : i32
    %c0_i32_2 = arith.constant 0 : i32
    return %c0_i32, %c0_i32_0, %c0_i32_1 : i32, i32, i32
  }
  func.func @transform_8(%arg0: i32) -> (i32, i32, i32) {
    %c0_i32 = arith.constant 0 : i32
    %c0_i32_0 = arith.constant 0 : i32
    %c0_i32_1 = arith.constant 0 : i32
    %c0_i32_2 = arith.constant 0 : i32
    return %c0_i32, %c0_i32_0, %c0_i32_1 : i32, i32, i32
  }
  func.func @transform_9(%arg0: i32) -> (i32, i32, i32) {
    %c0_i32 = arith.constant 0 : i32
    %c0_i32_0 = arith.constant 0 : i32
    %c0_i32_1 = arith.constant 0 : i32
    %c0_i32_2 = arith.constant 0 : i32
    return %c0_i32, %c0_i32_0, %c0_i32_1 : i32, i32, i32
  }
}

module attributes {stable_mosaic.version = 11 : i64} {
  func.func @_post_kernel(%arg0: i32, %arg1: memref<8x4xf32, #tpu.memory_space<vmem>>, %arg2: memref<2x4x256xf32, #tpu.memory_space<vmem>>, %arg3: memref<2x4x256xf32, #tpu.memory_space<vmem>>, %arg4: memref<2x4x256xf32, #tpu.memory_space<vmem>>, %arg5: memref<2x8x256xf32, #tpu.memory_space<vmem>>, %arg6: memref<2x8x256xf32, #tpu.memory_space<vmem>>) attributes {dimension_semantics = [#tpu.dimension_semantics<arbitrary>], iteration_bounds = array<i64: 1>, scalar_prefetch = 0 : i64, scratch_operands = 0 : i64, tpu.core_type = #tpu.core_type<tc>, window_params = [{pipeline_mode = #tpu.pipeline_mode<synchronous>, transform_indices = @transform_0, window_bounds = array<i64: 8, 4>}, {pipeline_mode = #tpu.pipeline_mode<synchronous>, transform_indices = @transform_1, window_bounds = array<i64: 2, 4, 256>}, {pipeline_mode = #tpu.pipeline_mode<synchronous>, transform_indices = @transform_2, window_bounds = array<i64: 2, 4, 256>}, {pipeline_mode = #tpu.pipeline_mode<synchronous>, transform_indices = @transform_3, window_bounds = array<i64: 2, 4, 256>}, {pipeline_mode = #tpu.pipeline_mode<synchronous>, transform_indices = @transform_4, window_bounds = array<i64: 2, 8, 256>}, {pipeline_mode = #tpu.pipeline_mode<synchronous>, transform_indices = @transform_5, window_bounds = array<i64: 2, 8, 256>}]} {
    %c0 = arith.constant 0 : index
    %c0_0 = arith.constant 0 : index
    %0 = vector.load %arg1[%c0, %c0_0] : memref<8x4xf32, #tpu.memory_space<vmem>>, vector<8x4xf32>
    %1 = arith.truncf %0 : vector<8x4xf32> to vector<8x4xbf16>
    %c0_1 = arith.constant 0 : index
    %c0_2 = arith.constant 0 : index
    %c0_3 = arith.constant 0 : index
    %2 = vector.load %arg2[%c0_1, %c0_2, %c0_3] : memref<2x4x256xf32, #tpu.memory_space<vmem>>, vector<1x4x256xf32>
    %3 = vector.shape_cast %2 : vector<1x4x256xf32> to vector<4x256xf32>
    %c0_4 = arith.constant 0 : index
    %c0_5 = arith.constant 0 : index
    %c0_6 = arith.constant 0 : index
    %4 = vector.load %arg3[%c0_4, %c0_5, %c0_6] : memref<2x4x256xf32, #tpu.memory_space<vmem>>, vector<1x4x256xf32>
    %5 = vector.shape_cast %4 : vector<1x4x256xf32> to vector<4x256xf32>
    %6 = arith.addf %3, %5 : vector<4x256xf32>
    %c0_7 = arith.constant 0 : index
    %c0_8 = arith.constant 0 : index
    %c0_9 = arith.constant 0 : index
    %7 = vector.load %arg4[%c0_7, %c0_8, %c0_9] : memref<2x4x256xf32, #tpu.memory_space<vmem>>, vector<1x4x256xf32>
    %8 = vector.shape_cast %7 : vector<1x4x256xf32> to vector<4x256xf32>
    %9 = arith.addf %6, %8 : vector<4x256xf32>
    %10 = arith.truncf %9 : vector<4x256xf32> to vector<4x256xbf16>
    %cst = arith.constant dense<0.000000e+00> : vector<8x256xf32>
    %11 = tpu.matmul %1, %10, %cst {dimension_numbers = #tpu.dot_dimension_numbers<[1], [0], [0], [1], [0, 0, 1, 1], [], []>} : vector<8x4xbf16>, vector<4x256xbf16>, vector<8x256xf32> -> vector<8x256xf32>
    %c0_10 = arith.constant 0 : index
    %c0_11 = arith.constant 0 : index
    %c0_12 = arith.constant 0 : index
    %12 = vector.load %arg5[%c0_10, %c0_11, %c0_12] : memref<2x8x256xf32, #tpu.memory_space<vmem>>, vector<1x8x256xf32>
    %13 = vector.shape_cast %12 : vector<1x8x256xf32> to vector<8x256xf32>
    %14 = arith.addf %13, %11 : vector<8x256xf32>
    %cst_13 = arith.constant dense<0.000000e+00> : vector<8xf32>
    %15 = vector.multi_reduction <add>, %14, %cst_13 [1] : vector<8x256xf32> to vector<8xf32>
    %16 = vector.shape_cast %15 : vector<8xf32> to vector<8x1xf32>
    %cst_14 = arith.constant 2.560000e+02 : f32
    %17 = vector.broadcast %cst_14 : f32 to vector<8x1xf32>
    %18 = arith.divf %16, %17 : vector<8x1xf32>
    %19 = vector.broadcast %18 : vector<8x1xf32> to vector<8x256xf32>
    %20 = arith.subf %14, %19 : vector<8x256xf32>
    %21 = arith.mulf %20, %20 : vector<8x256xf32>
    %cst_15 = arith.constant dense<0.000000e+00> : vector<8xf32>
    %22 = vector.multi_reduction <add>, %21, %cst_15 [1] : vector<8x256xf32> to vector<8xf32>
    %23 = vector.shape_cast %22 : vector<8xf32> to vector<8x1xf32>
    %cst_16 = arith.constant 2.560000e+02 : f32
    %24 = vector.broadcast %cst_16 : f32 to vector<8x1xf32>
    %25 = arith.divf %23, %24 : vector<8x1xf32>
    %cst_17 = arith.constant 9.99999974E-6 : f32
    %26 = vector.broadcast %cst_17 : f32 to vector<8x1xf32>
    %27 = arith.addf %25, %26 : vector<8x1xf32>
    %28 = math.rsqrt %27 : vector<8x1xf32>
    %29 = vector.broadcast %28 : vector<8x1xf32> to vector<8x256xf32>
    %30 = arith.mulf %20, %29 : vector<8x256xf32>
    %c0_18 = arith.constant 0 : index
    %c0_19 = arith.constant 0 : index
    %c0_20 = arith.constant 0 : index
    %31 = vector.load %arg6[%c0_18, %c0_19, %c0_20] : memref<2x8x256xf32, #tpu.memory_space<vmem>>, vector<1x8x256xf32>
    %32 = vector.shape_cast %31 : vector<1x8x256xf32> to vector<8x256xf32>
    %33 = vector.shape_cast %30 : vector<8x256xf32> to vector<1x8x256xf32>
    tpu.vector_store %arg6[%c0_18, %c0_19, %c0_20], %33 {strides = array<i32>} : memref<2x8x256xf32, #tpu.memory_space<vmem>>, vector<1x8x256xf32>,
    %c1 = arith.constant 1 : index
    %c0_21 = arith.constant 0 : index
    %c0_22 = arith.constant 0 : index
    %34 = vector.load %arg2[%c1, %c0_21, %c0_22] : memref<2x4x256xf32, #tpu.memory_space<vmem>>, vector<1x4x256xf32>
    %35 = vector.shape_cast %34 : vector<1x4x256xf32> to vector<4x256xf32>
    %c1_23 = arith.constant 1 : index
    %c0_24 = arith.constant 0 : index
    %c0_25 = arith.constant 0 : index
    %36 = vector.load %arg3[%c1_23, %c0_24, %c0_25] : memref<2x4x256xf32, #tpu.memory_space<vmem>>, vector<1x4x256xf32>
    %37 = vector.shape_cast %36 : vector<1x4x256xf32> to vector<4x256xf32>
    %38 = arith.addf %35, %37 : vector<4x256xf32>
    %c1_26 = arith.constant 1 : index
    %c0_27 = arith.constant 0 : index
    %c0_28 = arith.constant 0 : index
    %39 = vector.load %arg4[%c1_26, %c0_27, %c0_28] : memref<2x4x256xf32, #tpu.memory_space<vmem>>, vector<1x4x256xf32>
    %40 = vector.shape_cast %39 : vector<1x4x256xf32> to vector<4x256xf32>
    %41 = arith.addf %38, %40 : vector<4x256xf32>
    %42 = arith.truncf %41 : vector<4x256xf32> to vector<4x256xbf16>
    %cst_29 = arith.constant dense<0.000000e+00> : vector<8x256xf32>
    %43 = tpu.matmul %1, %42, %cst_29 {dimension_numbers = #tpu.dot_dimension_numbers<[1], [0], [0], [1], [0, 0, 1, 1], [], []>} : vector<8x4xbf16>, vector<4x256xbf16>, vector<8x256xf32> -> vector<8x256xf32>
    %c1_30 = arith.constant 1 : index
    %c0_31 = arith.constant 0 : index
    %c0_32 = arith.constant 0 : index
    %44 = vector.load %arg5[%c1_30, %c0_31, %c0_32] : memref<2x8x256xf32, #tpu.memory_space<vmem>>, vector<1x8x256xf32>
    %45 = vector.shape_cast %44 : vector<1x8x256xf32> to vector<8x256xf32>
    %46 = arith.addf %45, %43 : vector<8x256xf32>
    %cst_33 = arith.constant dense<0.000000e+00> : vector<8xf32>
    %47 = vector.multi_reduction <add>, %46, %cst_33 [1] : vector<8x256xf32> to vector<8xf32>
    %48 = vector.shape_cast %47 : vector<8xf32> to vector<8x1xf32>
    %cst_34 = arith.constant 2.560000e+02 : f32
    %49 = vector.broadcast %cst_34 : f32 to vector<8x1xf32>
    %50 = arith.divf %48, %49 : vector<8x1xf32>
    %51 = vector.broadcast %50 : vector<8x1xf32> to vector<8x256xf32>
    %52 = arith.subf %46, %51 : vector<8x256xf32>
    %53 = arith.mulf %52, %52 : vector<8x256xf32>
    %cst_35 = arith.constant dense<0.000000e+00> : vector<8xf32>
    %54 = vector.multi_reduction <add>, %53, %cst_35 [1] : vector<8x256xf32> to vector<8xf32>
    %55 = vector.shape_cast %54 : vector<8xf32> to vector<8x1xf32>
    %cst_36 = arith.constant 2.560000e+02 : f32
    %56 = vector.broadcast %cst_36 : f32 to vector<8x1xf32>
    %57 = arith.divf %55, %56 : vector<8x1xf32>
    %cst_37 = arith.constant 9.99999974E-6 : f32
    %58 = vector.broadcast %cst_37 : f32 to vector<8x1xf32>
    %59 = arith.addf %57, %58 : vector<8x1xf32>
    %60 = math.rsqrt %59 : vector<8x1xf32>
    %61 = vector.broadcast %60 : vector<8x1xf32> to vector<8x256xf32>
    %62 = arith.mulf %52, %61 : vector<8x256xf32>
    %c1_38 = arith.constant 1 : index
    %c0_39 = arith.constant 0 : index
    %c0_40 = arith.constant 0 : index
    %63 = vector.load %arg6[%c1_38, %c0_39, %c0_40] : memref<2x8x256xf32, #tpu.memory_space<vmem>>, vector<1x8x256xf32>
    %64 = vector.shape_cast %63 : vector<1x8x256xf32> to vector<8x256xf32>
    %65 = vector.shape_cast %62 : vector<8x256xf32> to vector<1x8x256xf32>
    tpu.vector_store %arg6[%c1_38, %c0_39, %c0_40], %65 {strides = array<i32>} : memref<2x8x256xf32, #tpu.memory_space<vmem>>, vector<1x8x256xf32>,
    return
  }
  func.func @transform_0(%arg0: i32) -> (i32, i32) {
    %c0_i32 = arith.constant 0 : i32
    %c0_i32_0 = arith.constant 0 : i32
    %c0_i32_1 = arith.constant 0 : i32
    return %c0_i32, %c0_i32_0 : i32, i32
  }
  func.func @transform_1(%arg0: i32) -> (i32, i32, i32) {
    %c0_i32 = arith.constant 0 : i32
    %c0_i32_0 = arith.constant 0 : i32
    %c0_i32_1 = arith.constant 0 : i32
    %c0_i32_2 = arith.constant 0 : i32
    return %c0_i32, %c0_i32_0, %c0_i32_1 : i32, i32, i32
  }
  func.func @transform_2(%arg0: i32) -> (i32, i32, i32) {
    %c0_i32 = arith.constant 0 : i32
    %c0_i32_0 = arith.constant 0 : i32
    %c0_i32_1 = arith.constant 0 : i32
    %c0_i32_2 = arith.constant 0 : i32
    return %c0_i32, %c0_i32_0, %c0_i32_1 : i32, i32, i32
  }
  func.func @transform_3(%arg0: i32) -> (i32, i32, i32) {
    %c0_i32 = arith.constant 0 : i32
    %c0_i32_0 = arith.constant 0 : i32
    %c0_i32_1 = arith.constant 0 : i32
    %c0_i32_2 = arith.constant 0 : i32
    return %c0_i32, %c0_i32_0, %c0_i32_1 : i32, i32, i32
  }
  func.func @transform_4(%arg0: i32) -> (i32, i32, i32) {
    %c0_i32 = arith.constant 0 : i32
    %c0_i32_0 = arith.constant 0 : i32
    %c0_i32_1 = arith.constant 0 : i32
    %c0_i32_2 = arith.constant 0 : i32
    return %c0_i32, %c0_i32_0, %c0_i32_1 : i32, i32, i32
  }
  func.func @transform_5(%arg0: i32) -> (i32, i32, i32) {
    %c0_i32 = arith.constant 0 : i32
    %c0_i32_0 = arith.constant 0 : i32
    %c0_i32_1 = arith.constant 0 : i32
    %c0_i32_2 = arith.constant 0 : i32
    return %c0_i32, %c0_i32_0, %c0_i32_1 : i32, i32, i32
  }
}

</mosaic_0001>

<llo_original>
// kernel: _lambda_.3
$region0: #{_lambda_.3}
  #allocation0 [shape = 'u32[]', space=smem, size = 0x4, offset = 0x4, fixed_abs, tag = 'smem constant byte address 0x4 - core index']
  #allocation1 [shape = 'u32[72,128]{1,0:T(1,128)}', space=vmem, size = 0x9000, scoped, tag = 'internal scratch']
  %s0 = inlined_call_operand.vmem [shape: f32[20,16], index: 0, kind: input, shape index: {}]
  %s1 = inlined_call_operand.vmem [shape: f32[2,16,256], index: 1, kind: input, shape index: {}]
  %s2 = inlined_call_operand.vmem [shape: f32[2,8,256], index: 2, kind: output, shape index: {0}]
  %s3 = inlined_call_operand.vmem [shape: f32[2,8,256], index: 3, kind: output, shape index: {1}]
  %s4 = inlined_call_operand.vmem [shape: f32[2,4,256], index: 4, kind: output, shape index: {2}]
  %5 = xla_tuple %s2, %s3, %s4
  %s6 = sld [smem:[#allocation0]]
  $region34: #{_lambda_.3} parent=0
    _
  %s8 = ssub.s32 1, %s6
  %s9 = scalar_select 0, %s8, %s6
  // Predicated region
  $region2: #{_lambda_.3} parent=0 // pred_check
    _
  $region3: #{_lambda_.3} parent=0 // pred_check_branch
    %11 = sbr.rel (0) target = $region5
  $region4: #{_lambda_.3} parent=0 // pred_region
    _
  $region5: #{_lambda_.3} parent=0 // pred_fallthru
    _
  // Predicated region
  $region6: #{_lambda_.3} parent=0 // pred_check
    _
  $region7: #{_lambda_.3} parent=0 // pred_check_branch
    %13 = sbr.rel (0) target = $region9
  $region8: #{_lambda_.3} parent=0 // pred_region
    _
  $region9: #{_lambda_.3} parent=0 // pred_fallthru
    _
  %v15 = vld [vmem:[%s0] sm:$0xff]
  %v16 = vld [vmem:[%s0 + $0x8] sm:$0xff]
  %v17 = vld [vmem:[%s0 + $0x10] sm:$0xf]
  %v18 = vpack.c.bf16 %v16, %v15
  %v19 = vpack.c.bf16 %v17, %v17
  %v20 = vld [vmem:[%s1] sm:$0xff]
  %v21 = vld [vmem:[%s1 + $0x8] sm:$0xff]
  %v22 = vld [vmem:[%s1 + $0x10] sm:$0xff]
  %v23 = vld [vmem:[%s1 + $0x18] sm:$0xff]
  %v24 = vpack.c.bf16 %v22, %v20
  %v25 = vpack.c.bf16 %v23, %v21
  %vm26 = vcmask 130048
  %v28 = vsel %vm26, %v18, 0
  %v31 = vsel %vm26, %v19, 0
  %33 = vmatpush.bf16.msra.mxu0 0
  %34 = vmatpush.bf16.msra.mxu0 0
  %35 = vmatpush.bf16.msra.mxu0 0
  %36 = vmatpush.bf16.msra.mxu0 0
  %37 = vmatpush.bf16.msra.mxu0 0
  %38 = vmatpush.bf16.msra.mxu0 0
  %39 = vmatpush.bf16.msra.mxu0 0
  %40 = vmatpush.bf16.msra.mxu0 %v24
  %41 = vmatmul.bf16.gmra.mxu0 %v28
  %v42 = vpop.f32.mrf.mxu0
  %v43 = vadd.f32 0.0, %v42
  %v44 = vpop.f32.mrf.mxu0
  %v45 = vadd.f32 0.0, %v44
  %46 = vmatmul.bf16.gmra.mxu0 %v31
  %v47 = vpop.f32.mrf.mxu0
  %v48 = vadd.f32 0.0, %v47
  %v49 = vpop.f32.mrf.mxu0
  %50 = vdwg.mxu0
  %51 = vmatpush.bf16.msra.mxu0 0
  %52 = vmatpush.bf16.msra.mxu0 0
  %53 = vmatpush.bf16.msra.mxu0 0
  %54 = vmatpush.bf16.msra.mxu0 0
  %55 = vmatpush.bf16.msra.mxu0 0
  %56 = vmatpush.bf16.msra.mxu0 0
  %57 = vmatpush.bf16.msra.mxu0 0
  %58 = vmatpush.bf16.msra.mxu0 %v25
  %59 = vmatmul.bf16.gmra.mxu0 %v28
  %v60 = vpop.f32.mrf.mxu0
  %v61 = vadd.f32 0.0, %v60
  %v62 = vpop.f32.mrf.mxu0
  %v63 = vadd.f32 0.0, %v62
  %64 = vmatmul.bf16.gmra.mxu0 %v31
  %v65 = vpop.f32.mrf.mxu0
  %v66 = vadd.f32 0.0, %v65
  %v67 = vpop.f32.mrf.mxu0
  %68 = vdwg.mxu0
  %v69 = vadd.f32 %v43, %v61
  %70 = vadd.xlane.f32.xlu0 %v69
  %v71 = vpop.xlane.xlu0 %70
  %v72 = vrcp.pop 256.0
  %v73 = vmul.f32 256.0, %v72
  %v74 = vsub.f32 1.0, %v73
  %v75 = vmul.f32 %v72, %v74
  %v76 = vadd.f32 %v72, %v75
  %vm77 = vweird.f32 %v72
  %v78 = vsel %vm77, %v72, %v76
  %v79 = vmul.f32 %v71, %v78
  %v80 = vsub.f32 %v43, %v79
  %v81 = vsub.f32 %v61, %v79
  %v82 = vmul.f32 %v80, %v80
  %v83 = vmul.f32 %v81, %v81
  %v84 = vadd.f32 %v82, %v83
  %85 = vadd.xlane.f32.xlu0 %v84
  %v86 = vpop.xlane.xlu0 %85
  %v87 = vmul.f32 %v86, %v78
  %v88 = vadd.f32 %v87, 1e-05
  %v89 = vrsqrt.pop %v88
  %v90 = vmul.f32 %v89, %v88
  %v91 = vmul.f32 %v90, %v89
  %v92 = vmul.f32 0.5, %v91
  %v93 = vsub.f32 1.5, %v92
  %v94 = vmul.f32 %v89, %v93
  %vm95 = vweird.f32 %v88
  %vm96 = vweird.f32 %v89
  %vm97 = vmor %vm95, %vm96
  %v98 = vsel %vm97, %v89, %v94
  %v99 = vmul.f32 %v80, %v98
  %v100 = vmul.f32 %v81, %v98
  %101 = vst [vmem:[%s2] sm:$0xff] %v99
  %102 = vst [vmem:[%s2 + $0x8] sm:$0xff] %v100
  %103 = vst [vmem:[%s3] sm:$0xff] %v45
  %104 = vst [vmem:[%s3 + $0x8] sm:$0xff] %v63
  %vm105 = vcmask 1043456
  %v106 = vsel %vm105, %v48, 0.0
  %v107 = vsel %vm105, %v66, 0.0
  %v108 = vadd.f32 %v106, %v107
  %109 = vadd.xlane.f32.xlu0 %v108
  %v110 = vpop.xlane.xlu0 %109
  %v111 = vmul.f32 %v110, %v78
  %v112 = vsub.f32 %v48, %v111
  %v113 = vsub.f32 %v66, %v111
  %v114 = vmul.f32 %v112, %v112
  %v115 = vmul.f32 %v113, %v113
  %v116 = vsel %vm105, %v114, 0.0
  %v117 = vsel %vm105, %v115, 0.0
  %v118 = vadd.f32 %v116, %v117
  %119 = vadd.xlane.f32.xlu0 %v118
  %v120 = vpop.xlane.xlu0 %119
  %v121 = vmul.f32 %v120, %v78
  %v122 = vadd.f32 %v121, 1e-05
  %v123 = vrsqrt.pop %v122
  %v124 = vmul.f32 %v123, %v122
  %v125 = vmul.f32 %v124, %v123
  %v126 = vmul.f32 0.5, %v125
  %v127 = vsub.f32 1.5, %v126
  %v128 = vmul.f32 %v123, %v127
  %vm129 = vweird.f32 %v122
  %vm130 = vweird.f32 %v123
  %vm131 = vmor %vm129, %vm130
  %v132 = vsel %vm131, %v123, %v128
  %v133 = vmul.f32 %v112, %v132
  %v134 = vmul.f32 %v113, %v132
  %vm135 = vcmp.ge.f32.partialorder %v133, 0.0
  %vm136 = vcmp.ge.f32.partialorder %v134, 0.0
  %v137 = vmul.f32 %v133, 0.01
  %v138 = vmul.f32 %v134, 0.01
  %v139 = vsel %vm135, %v133, %v137
  %v140 = vsel %vm136, %v134, %v138
  %v143 = vrot.slane %v140, 4
  %v144 = vsel %vm105, %v139, %v143
  %146 = vst [vmem:[%s4] sm:$0xff] %v144
  %s147 = scalar_lea.vmem %s1, 32
  %v148 = vld [vmem:[%s147] sm:$0xff]
  %v149 = vld [vmem:[%s147 + $0x8] sm:$0xff]
  %v150 = vld [vmem:[%s147 + $0x10] sm:$0xff]
  %v151 = vld [vmem:[%s147 + $0x18] sm:$0xff]
  %v152 = vpack.c.bf16 %v150, %v148
  %v153 = vpack.c.bf16 %v151, %v149
  %154 = vmatpush.bf16.msra.mxu0 0
  %155 = vmatpush.bf16.msra.mxu0 0
  %156 = vmatpush.bf16.msra.mxu0 0
  %157 = vmatpush.bf16.msra.mxu0 0
  %158 = vmatpush.bf16.msra.mxu0 0
  %159 = vmatpush.bf16.msra.mxu0 0
  %160 = vmatpush.bf16.msra.mxu0 0
  %161 = vmatpush.bf16.msra.mxu0 %v152
  %162 = vmatmul.bf16.gmra.mxu0 %v28
  %v163 = vpop.f32.mrf.mxu0
  %v164 = vadd.f32 0.0, %v163
  %v165 = vpop.f32.mrf.mxu0
  %v166 = vadd.f32 0.0, %v165
  %167 = vmatmul.bf16.gmra.mxu0 %v31
  %v168 = vpop.f32.mrf.mxu0
  %v169 = vadd.f32 0.0, %v168
  %v170 = vpop.f32.mrf.mxu0
  %171 = vdwg.mxu0
  %172 = vmatpush.bf16.msra.mxu0 0
  %173 = vmatpush.bf16.msra.mxu0 0
  %174 = vmatpush.bf16.msra.mxu0 0
  %175 = vmatpush.bf16.msra.mxu0 0
  %176 = vmatpush.bf16.msra.mxu0 0
  %177 = vmatpush.bf16.msra.mxu0 0
  %178 = vmatpush.bf16.msra.mxu0 0
  %179 = vmatpush.bf16.msra.mxu0 %v153
  %180 = vmatmul.bf16.gmra.mxu0 %v28
  %v181 = vpop.f32.mrf.mxu0
  %v182 = vadd.f32 0.0, %v181
  %v183 = vpop.f32.mrf.mxu0
  %v184 = vadd.f32 0.0, %v183
  %185 = vmatmul.bf16.gmra.mxu0 %v31
  %v186 = vpop.f32.mrf.mxu0
  %v187 = vadd.f32 0.0, %v186
  %v188 = vpop.f32.mrf.mxu0
  %189 = vdwg.mxu0
  %v190 = vadd.f32 %v164, %v182
  %191 = vadd.xlane.f32.xlu0 %v190
  %v192 = vpop.xlane.xlu0 %191
  %v193 = vmul.f32 %v192, %v78
  %v194 = vsub.f32 %v164, %v193
  %v195 = vsub.f32 %v182, %v193
  %v196 = vmul.f32 %v194, %v194
  %v197 = vmul.f32 %v195, %v195
  %v198 = vadd.f32 %v196, %v197
  %199 = vadd.xlane.f32.xlu0 %v198
  %v200 = vpop.xlane.xlu0 %199
  %v201 = vmul.f32 %v200, %v78
  %v202 = vadd.f32 %v201, 1e-05
  %v203 = vrsqrt.pop %v202
  %v204 = vmul.f32 %v203, %v202
  %v205 = vmul.f32 %v204, %v203
  %v206 = vmul.f32 0.5, %v205
  %v207 = vsub.f32 1.5, %v206
  %v208 = vmul.f32 %v203, %v207
  %vm209 = vweird.f32 %v202
  %vm210 = vweird.f32 %v203
  %vm211 = vmor %vm209, %vm210
  %v212 = vsel %vm211, %v203, %v208
  %v213 = vmul.f32 %v194, %v212
  %v214 = vmul.f32 %v195, %v212
  %s215 = scalar_lea.vmem %s2, 16
  %216 = vst [vmem:[%s215] sm:$0xff] %v213
  %217 = vst [vmem:[%s215 + $0x8] sm:$0xff] %v214
  %s218 = scalar_lea.vmem %s3, 16
  %219 = vst [vmem:[%s218] sm:$0xff] %v166
  %220 = vst [vmem:[%s218 + $0x8] sm:$0xff] %v184
  %v221 = vsel %vm105, %v169, 0.0
  %v222 = vsel %vm105, %v187, 0.0
  %v223 = vadd.f32 %v221, %v222
  %224 = vadd.xlane.f32.xlu0 %v223
  %v225 = vpop.xlane.xlu0 %224
  %v226 = vmul.f32 %v225, %v78
  %v227 = vsub.f32 %v169, %v226
  %v228 = vsub.f32 %v187, %v226
  %v229 = vmul.f32 %v227, %v227
  %v230 = vmul.f32 %v228, %v228
  %v231 = vsel %vm105, %v229, 0.0
  %v232 = vsel %vm105, %v230, 0.0
  %v233 = vadd.f32 %v231, %v232
  %234 = vadd.xlane.f32.xlu0 %v233
  %v235 = vpop.xlane.xlu0 %234
  %v236 = vmul.f32 %v235, %v78
  %v237 = vadd.f32 %v236, 1e-05
  %v238 = vrsqrt.pop %v237
  %v239 = vmul.f32 %v238, %v237
  %v240 = vmul.f32 %v239, %v238
  %v241 = vmul.f32 0.5, %v240
  %v242 = vsub.f32 1.5, %v241
  %v243 = vmul.f32 %v238, %v242
  %vm244 = vweird.f32 %v237
  %vm245 = vweird.f32 %v238
  %vm246 = vmor %vm244, %vm245
  %v247 = vsel %vm246, %v238, %v243
  %v248 = vmul.f32 %v227, %v247
  %v249 = vmul.f32 %v228, %v247
  %vm250 = vcmp.ge.f32.partialorder %v248, 0.0
  %vm251 = vcmp.ge.f32.partialorder %v249, 0.0
  %v252 = vmul.f32 %v248, 0.01
  %v253 = vmul.f32 %v249, 0.01
  %v254 = vsel %vm250, %v248, %v252
  %v255 = vsel %vm251, %v249, %v253
  %v258 = vrot.slane %v255, 4
  %v259 = vsel %vm105, %v254, %v258
  %s261 = scalar_lea.vmem %s4, 8
  %262 = vst [vmem:[%s261] sm:$0xff] %v259
  // Predicated region
  $region10: #{_lambda_.3} parent=0 // pred_check
    _
  $region11: #{_lambda_.3} parent=0 // pred_check_branch
    %264 = sbr.rel (0) target = $region13
  $region12: #{_lambda_.3} parent=0 // pred_region
    _
  $region13: #{_lambda_.3} parent=0 // pred_fallthru
    _
  // Predicated region
  $region14: #{_lambda_.3} parent=0 // pred_check
    _
  $region15: #{_lambda_.3} parent=0 // pred_check_branch
    %266 = sbr.rel (0) target = $region17
  $region16: #{_lambda_.3} parent=0 // pred_region
    _
  $region17: #{_lambda_.3} parent=0 // pred_fallthru
    _
  // Predicated region
  $region18: #{_lambda_.3} parent=0 // pred_check
    _
  $region19: #{_lambda_.3} parent=0 // pred_check_branch
    %268 = sbr.rel (0) target = $region21
  $region20: #{_lambda_.3} parent=0 // pred_region
    _
  $region21: #{_lambda_.3} parent=0 // pred_fallthru
    _
  // Predicated region
  $region22: #{_lambda_.3} parent=0 // pred_check
    _
  $region23: #{_lambda_.3} parent=0 // pred_check_branch
    %270 = sbr.rel (0) target = $region25
  $region24: #{_lambda_.3} parent=0 // pred_region
    _
  $region25: #{_lambda_.3} parent=0 // pred_fallthru
    _
  // Predicated region
  $region26: #{_lambda_.3} parent=0 // pred_check
    _
  $region27: #{_lambda_.3} parent=0 // pred_check_branch
    %272 = sbr.rel (0) target = $region29
  $region28: #{_lambda_.3} parent=0 // pred_region
    _
  $region29: #{_lambda_.3} parent=0 // pred_fallthru
    _
  // Predicated region
  $region30: #{_lambda_.3} parent=0 // pred_check
    _
  $region31: #{_lambda_.3} parent=0 // pred_check_branch
    %274 = sbr.rel (0) target = $region33
  $region32: #{_lambda_.3} parent=0 // pred_region
    _
  $region33: #{_lambda_.3} parent=0 // pred_fallthru
    _

// kernel: reverse.1
$region0: #{reverse.1}
  %s0 = inlined_call_operand.vmem [shape: f32[2,4,8,3], index: 0, kind: input, shape index: {}]
  %s1 = inlined_call_operand.vmem [shape: f32[2,4,8,3], index: 1, kind: output, shape index: {}]
  $region1: #{reverse.1} parent=0
    #allocation0 [shape = 'u8[65536]{0}', space=vmem, size = 0x10000, scoped, tag = 'operand span for operand 0']
    #allocation1 [shape = 'u8[32768]{0}', space=vmem, size = 0x8000, scoped, tag = 'packed  for operand 0']
    #allocation2 [shape = 'u8[32768]{0}', space=vmem, size = 0x8000, scoped, tag = 'operand span for operand 1']
    #allocation3 [shape = 'u8[16384]{0}', space=vmem, size = 0x4000, scoped, tag = 'packed  for operand 1']
    %s2 = scalar_lea.vmem [#allocation1], 4
    // Predicated region
    $region2: #{reverse.1} parent=1 // pred_check
      _
    $region3: #{reverse.1} parent=1 // pred_check_branch
      %4 = sbr.rel (0) target = $region5
    $region4: #{reverse.1} parent=1 // pred_region
      // Predicated region
      $region6: #{reverse.1} parent=4 // pred_check
        _
      $region7: #{reverse.1} parent=4 // pred_check_branch
        %6 = sbr.rel target = $region9
      $region8: #{reverse.1} parent=4 // pred_region
        // Predicated region
        $region21: #{reverse.1} parent=8 // pred_check
          _
        $region22: #{reverse.1} parent=8 // pred_check_branch
          %36 = sbr.rel (0) target = $region24
        $region23: #{reverse.1} parent=8 // pred_region
          loop: start=0, step=1, limit=1
          $region25: #{reverse.1} parent=23 // loop_pre_header
            _
          $region26: #{reverse.1} parent=23 // loop_header
            %s38 = sphi 0, %s42
            %p39 = scmp.ge.s32.totalorder %s38, 1
            %s43 = sphi %s0, %s0
            %s44 = sphi %s2, %s2
          $region27: #{reverse.1} parent=23 // loop_header_branch
            %41 = sbr.rel (%p39) target = $region31
          $region28: #{reverse.1} parent=23 // loop_body
            _
          $region29: #{reverse.1} parent=23 // loop_footer
            %s42 = sadd.s32 1, %s38
          $region30: #{reverse.1} parent=23 // loop_footer_branch
            %37 = sbr.rel target = $region26
          $region31: #{reverse.1} parent=23 // loop_exit
            _
          %s46 = ssub.s32 16, 1
          loop: start=0, step=1, limit=1
          $region32: #{reverse.1} parent=23 // loop_pre_header
            _
          $region33: #{reverse.1} parent=23 // loop_header
            %s48 = sphi 0, %s52
            %p49 = scmp.ge.s32.totalorder %s48, 1
            %s53 = sphi %s0, %s0
            %s54 = sphi %s2, %s2
          $region34: #{reverse.1} parent=23 // loop_header_branch
            %51 = sbr.rel (%p49) target = $region38
          $region35: #{reverse.1} parent=23 // loop_body
            %v55 = vld [vmem:[%s53] sm:%s46]
            %56 = vst [vmem:[%s54] sm:%s46] %v55
            %v57 = vld [vmem:[%s53 + $0x4] sm:%s46]
            %58 = vst [vmem:[%s54 + $0x8] sm:%s46] %v57
            %v59 = vld [vmem:[%s53 + $0x8] sm:%s46]
            %60 = vst [vmem:[%s54 + $0x10] sm:%s46] %v59
            %v61 = vld [vmem:[%s53 + $0xc] sm:%s46]
            %62 = vst [vmem:[%s54 + $0x18] sm:%s46] %v61
            %v63 = vld [vmem:[%s53 + $0x10] sm:%s46]
            %64 = vst [vmem:[%s54 + $0x20] sm:%s46] %v63
            %v65 = vld [vmem:[%s53 + $0x14] sm:%s46]
            %66 = vst [vmem:[%s54 + $0x28] sm:%s46] %v65
            %v67 = vld [vmem:[%s53 + $0x18] sm:%s46]
            %68 = vst [vmem:[%s54 + $0x30] sm:%s46] %v67
            %v69 = vld [vmem:[%s53 + $0x1c] sm:%s46]
            %70 = vst [vmem:[%s54 + $0x38] sm:%s46] %v69
          $region36: #{reverse.1} parent=23 // loop_footer
            %s52 = sadd.s32 1, %s48
          $region37: #{reverse.1} parent=23 // loop_footer_branch
            %47 = sbr.rel target = $region33
          $region38: #{reverse.1} parent=23 // loop_exit
            _
        $region24: #{reverse.1} parent=8 // pred_fallthru
          _
      $region9: #{reverse.1} parent=4 // pred_fallthru
        _
      // Predicated region
      $region10: #{reverse.1} parent=4 // pred_check
        _
      $region11: #{reverse.1} parent=4 // pred_check_branch
        %8 = sbr.rel (0) target = $region13
      $region12: #{reverse.1} parent=4 // pred_region
        %s10 = ssub.s32 16, 1
        loop: start=0, step=1, limit=1
        $region14: #{reverse.1} parent=12 // loop_pre_header
          _
        $region15: #{reverse.1} parent=12 // loop_header
          %s12 = sphi 0, %s16
          %p13 = scmp.ge.s32.totalorder %s12, 1
          %s17 = sphi %s0, %s0
          %s18 = sphi %s2, %s2
        $region16: #{reverse.1} parent=12 // loop_header_branch
          %15 = sbr.rel (%p13) target = $region20
        $region17: #{reverse.1} parent=12 // loop_body
          %v19 = vld [vmem:[%s17] sm:%s10]
          %20 = vst [vmem:[%s18] sm:%s10] %v19
          %v21 = vld [vmem:[%s17 + $0x4] sm:%s10]
          %22 = vst [vmem:[%s18 + $0x8] sm:%s10] %v21
          %v23 = vld [vmem:[%s17 + $0x8] sm:%s10]
          %24 = vst [vmem:[%s18 + $0x10] sm:%s10] %v23
          %v25 = vld [vmem:[%s17 + $0xc] sm:%s10]
          %26 = vst [vmem:[%s18 + $0x18] sm:%s10] %v25
          %v27 = vld [vmem:[%s17 + $0x10] sm:%s10]
          %28 = vst [vmem:[%s18 + $0x20] sm:%s10] %v27
          %v29 = vld [vmem:[%s17 + $0x14] sm:%s10]
          %30 = vst [vmem:[%s18 + $0x28] sm:%s10] %v29
          %v31 = vld [vmem:[%s17 + $0x18] sm:%s10]
          %32 = vst [vmem:[%s18 + $0x30] sm:%s10] %v31
          %v33 = vld [vmem:[%s17 + $0x1c] sm:%s10]
          %34 = vst [vmem:[%s18 + $0x38] sm:%s10] %v33
        $region18: #{reverse.1} parent=12 // loop_footer
          %s16 = sadd.s32 1, %s12
        $region19: #{reverse.1} parent=12 // loop_footer_branch
          %11 = sbr.rel target = $region15
        $region20: #{reverse.1} parent=12 // loop_exit
          _
      $region13: #{reverse.1} parent=4 // pred_fallthru
        _
    $region5: #{reverse.1} parent=1 // pred_fallthru
      _
    %71 = vnop
    %s73 = ssub.s32 16, 1
    %s74 = scalar_lea.vmem [#allocation1], 60
    %v75 = vld [vmem:[%s74] sm:%s73]
    %s76 = scalar_lea.vmem [#allocation0], 120
    %77 = vst [vmem:[%s76] sm:%s73] %v75
    %s78 = scalar_lea.vmem [#allocation1], 56
    %v79 = vld [vmem:[%s78] sm:%s73]
    %s80 = scalar_lea.vmem [#allocation0], 112
    %81 = vst [vmem:[%s80] sm:%s73] %v79
    %s82 = scalar_lea.vmem [#allocation1], 52
    %v83 = vld [vmem:[%s82] sm:%s73]
    %s84 = scalar_lea.vmem [#allocation0], 104
    %85 = vst [vmem:[%s84] sm:%s73] %v83
    %s86 = scalar_lea.vmem [#allocation1], 48
    %v87 = vld [vmem:[%s86] sm:%s73]
    %s88 = scalar_lea.vmem [#allocation0], 96
    %89 = vst [vmem:[%s88] sm:%s73] %v87
    %s90 = scalar_lea.vmem [#allocation1], 44
    %v91 = vld [vmem:[%s90] sm:%s73]
    %s92 = scalar_lea.vmem [#allocation0], 88
    %93 = vst [vmem:[%s92] sm:%s73] %v91
    %s94 = scalar_lea.vmem [#allocation1], 40
    %v95 = vld [vmem:[%s94] sm:%s73]
    %s96 = scalar_lea.vmem [#allocation0], 80
    %97 = vst [vmem:[%s96] sm:%s73] %v95
    %s98 = scalar_lea.vmem [#allocation1], 36
    %v99 = vld [vmem:[%s98] sm:%s73]
    %s100 = scalar_lea.vmem [#allocation0], 72
    %101 = vst [vmem:[%s100] sm:%s73] %v99
    %s102 = scalar_lea.vmem [#allocation1], 32
    %v103 = vld [vmem:[%s102] sm:%s73]
    %s104 = scalar_lea.vmem [#allocation0], 64
    %105 = vst [vmem:[%s104] sm:%s73] %v103
    %s106 = scalar_lea.vmem [#allocation1], 28
    %v107 = vld [vmem:[%s106] sm:%s73]
    %s108 = scalar_lea.vmem [#allocation0], 56
    %109 = vst [vmem:[%s108] sm:%s73] %v107
    %s110 = scalar_lea.vmem [#allocation1], 24
    %v111 = vld [vmem:[%s110] sm:%s73]
    %s112 = scalar_lea.vmem [#allocation0], 48
    %113 = vst [vmem:[%s112] sm:%s73] %v111
    %s114 = scalar_lea.vmem [#allocation1], 20
    %v115 = vld [vmem:[%s114] sm:%s73]
    %s116 = scalar_lea.vmem [#allocation0], 40
    %117 = vst [vmem:[%s116] sm:%s73] %v115
    %s118 = scalar_lea.vmem [#allocation1], 16
    %v119 = vld [vmem:[%s118] sm:%s73]
    %s120 = scalar_lea.vmem [#allocation0], 32
    %121 = vst [vmem:[%s120] sm:%s73] %v119
    %s122 = scalar_lea.vmem [#allocation1], 12
    %v123 = vld [vmem:[%s122] sm:%s73]
    %s124 = scalar_lea.vmem [#allocation0], 24
    %125 = vst [vmem:[%s124] sm:%s73] %v123
    %s126 = scalar_lea.vmem [#allocation1], 8
    %v127 = vld [vmem:[%s126] sm:%s73]
    %s128 = scalar_lea.vmem [#allocation0], 16
    %129 = vst [vmem:[%s128] sm:%s73] %v127
    %s130 = scalar_lea.vmem [#allocation1], 4
    %v131 = vld [vmem:[%s130] sm:%s73]
    %s132 = scalar_lea.vmem [#allocation0], 8
    %133 = vst [vmem:[%s132] sm:%s73] %v131
    %v134 = vld [vmem:[#allocation1] sm:%s73]
    %135 = vst [vmem:[#allocation0] sm:%s73] %v134
    %s136 = scalar_lea.vmem [#allocation0], 7
    %v137 = vld [vmem:[%s136] ss:$-1 sm:$0xff]
    %v138 = vrot.slane %v137, 5
    %139 = vst [vmem:[#allocation2] sm:$0xff] %v138
    %s140 = scalar_lea.vmem [#allocation0], 8
    %s141 = scalar_lea.vmem %s140, 7 [#allocation0]
    %v142 = vld [vmem:[%s141] ss:$-1 sm:$0xff]
    %v143 = vrot.slane %v142, 5
    %v144 = vlaneseq
    %v145 = vshrl.u32 %v144, 7
    %vm146 = vcmp.lt.s32.totalorder %v145, 3
    %147 = vst.msk [vmem:[#allocation2] sm:$0xff] %vm146, %v143
    %s148 = scalar_lea.vmem [#allocation2], 8
    %s149 = scalar_lea.vmem [#allocation0], 16
    %s150 = scalar_lea.vmem %s149, 7 [#allocation0]
    %v151 = vld [vmem:[%s150] ss:$-1 sm:$0xff]
    %v152 = vrot.slane %v151, 5
    %153 = vst [vmem:[%s148] sm:$0xff] %v152
    %s154 = scalar_lea.vmem %s149, 8 [#allocation0]
    %s155 = scalar_lea.vmem %s154, 7 [#allocation0]
    %v156 = vld [vmem:[%s155] ss:$-1 sm:$0xff]
    %v157 = vrot.slane %v156, 5
    %v158 = vlaneseq
    %v159 = vshrl.u32 %v158, 7
    %vm160 = vcmp.lt.s32.totalorder %v159, 3
    %161 = vst.msk [vmem:[%s148] sm:$0xff] %vm160, %v157
    %s162 = scalar_lea.vmem [#allocation2], 16
    %s163 = scalar_lea.vmem [#allocation0], 32
    %s164 = scalar_lea.vmem %s163, 7 [#allocation0]
    %v165 = vld [vmem:[%s164] ss:$-1 sm:$0xff]
    %v166 = vrot.slane %v165, 5
    %167 = vst [vmem:[%s162] sm:$0xff] %v166
    %s168 = scalar_lea.vmem %s163, 8 [#allocation0]
    %s169 = scalar_lea.vmem %s168, 7 [#allocation0]
    %v170 = vld [vmem:[%s169] ss:$-1 sm:$0xff]
    %v171 = vrot.slane %v170, 5
    %v172 = vlaneseq
    %v173 = vshrl.u32 %v172, 7
    %vm174 = vcmp.lt.s32.totalorder %v173, 3
    %175 = vst.msk [vmem:[%s162] sm:$0xff] %vm174, %v171
    %s176 = scalar_lea.vmem [#allocation2], 24
    %s177 = scalar_lea.vmem [#allocation0], 48
    %s178 = scalar_lea.vmem %s177, 7 [#allocation0]
    %v179 = vld [vmem:[%s178] ss:$-1 sm:$0xff]
    %v180 = vrot.slane %v179, 5
    %181 = vst [vmem:[%s176] sm:$0xff] %v180
    %s182 = scalar_lea.vmem %s177, 8 [#allocation0]
    %s183 = scalar_lea.vmem %s182, 7 [#allocation0]
    %v184 = vld [vmem:[%s183] ss:$-1 sm:$0xff]
    %v185 = vrot.slane %v184, 5
    %v186 = vlaneseq
    %v187 = vshrl.u32 %v186, 7
    %vm188 = vcmp.lt.s32.totalorder %v187, 3
    %189 = vst.msk [vmem:[%s176] sm:$0xff] %vm188, %v185
    %s190 = scalar_lea.vmem [#allocation2], 32
    %s191 = scalar_lea.vmem [#allocation0], 64
    %s192 = scalar_lea.vmem %s191, 7 [#allocation0]
    %v193 = vld [vmem:[%s192] ss:$-1 sm:$0xff]
    %v194 = vrot.slane %v193, 5
    %195 = vst [vmem:[%s190] sm:$0xff] %v194
    %s196 = scalar_lea.vmem %s191, 8 [#allocation0]
    %s197 = scalar_lea.vmem %s196, 7 [#allocation0]
    %v198 = vld [vmem:[%s197] ss:$-1 sm:$0xff]
    %v199 = vrot.slane %v198, 5
    %v200 = vlaneseq
    %v201 = vshrl.u32 %v200, 7
    %vm202 = vcmp.lt.s32.totalorder %v201, 3
    %203 = vst.msk [vmem:[%s190] sm:$0xff] %vm202, %v199
    %s204 = scalar_lea.vmem [#allocation2], 40
    %s205 = scalar_lea.vmem [#allocation0], 80
    %s206 = scalar_lea.vmem %s205, 7 [#allocation0]
    %v207 = vld [vmem:[%s206] ss:$-1 sm:$0xff]
    %v208 = vrot.slane %v207, 5
    %209 = vst [vmem:[%s204] sm:$0xff] %v208
    %s210 = scalar_lea.vmem %s205, 8 [#allocation0]
    %s211 = scalar_lea.vmem %s210, 7 [#allocation0]
    %v212 = vld [vmem:[%s211] ss:$-1 sm:$0xff]
    %v213 = vrot.slane %v212, 5
    %v214 = vlaneseq
    %v215 = vshrl.u32 %v214, 7
    %vm216 = vcmp.lt.s32.totalorder %v215, 3
    %217 = vst.msk [vmem:[%s204] sm:$0xff] %vm216, %v213
    %s218 = scalar_lea.vmem [#allocation2], 48
    %s219 = scalar_lea.vmem [#allocation0], 96
    %s220 = scalar_lea.vmem %s219, 7 [#allocation0]
    %v221 = vld [vmem:[%s220] ss:$-1 sm:$0xff]
    %v222 = vrot.slane %v221, 5
    %223 = vst [vmem:[%s218] sm:$0xff] %v222
    %s224 = scalar_lea.vmem %s219, 8 [#allocation0]
    %s225 = scalar_lea.vmem %s224, 7 [#allocation0]
    %v226 = vld [vmem:[%s225] ss:$-1 sm:$0xff]
    %v227 = vrot.slane %v226, 5
    %v228 = vlaneseq
    %v229 = vshrl.u32 %v228, 7
    %vm230 = vcmp.lt.s32.totalorder %v229, 3
    %231 = vst.msk [vmem:[%s218] sm:$0xff] %vm230, %v227
    %s232 = scalar_lea.vmem [#allocation2], 56
    %s233 = scalar_lea.vmem [#allocation0], 112
    %s234 = scalar_lea.vmem %s233, 7 [#allocation0]
    %v235 = vld [vmem:[%s234] ss:$-1 sm:$0xff]
    %v236 = vrot.slane %v235, 5
    %237 = vst [vmem:[%s232] sm:$0xff] %v236
    %s238 = scalar_lea.vmem %s233, 8 [#allocation0]
    %s239 = scalar_lea.vmem %s238, 7 [#allocation0]
    %v240 = vld [vmem:[%s239] ss:$-1 sm:$0xff]
    %v241 = vrot.slane %v240, 5
    %v242 = vlaneseq
    %v243 = vshrl.u32 %v242, 7
    %vm244 = vcmp.lt.s32.totalorder %v243, 3
    %245 = vst.msk [vmem:[%s232] sm:$0xff] %vm244, %v241
    %s247 = ssub.s32 16, 1
    %v248 = vld [vmem:[#allocation2] sm:%s247]
    %s250 = ssub.s32 16, 1
    %251 = vst [vmem:[#allocation3] sm:%s250] %v248
    %s252 = scalar_lea.vmem [#allocation2], 8
    %v253 = vld [vmem:[%s252] sm:%s247]
    %s255 = ssub.s32 16, 1
    %s256 = scalar_lea.vmem [#allocation3], 4
    %257 = vst [vmem:[%s256] sm:%s255] %v253
    %s258 = scalar_lea.vmem [#allocation2], 16
    %v259 = vld [vmem:[%s258] sm:%s247]
    %s261 = ssub.s32 16, 1
    %s262 = scalar_lea.vmem [#allocation3], 8
    %263 = vst [vmem:[%s262] sm:%s261] %v259
    %s264 = scalar_lea.vmem [#allocation2], 24
    %v265 = vld [vmem:[%s264] sm:%s247]
    %s267 = ssub.s32 16, 1
    %s268 = scalar_lea.vmem [#allocation3], 12
    %269 = vst [vmem:[%s268] sm:%s267] %v265
    %s270 = scalar_lea.vmem [#allocation2], 32
    %v271 = vld [vmem:[%s270] sm:%s247]
    %s273 = ssub.s32 16, 1
    %s274 = scalar_lea.vmem [#allocation3], 16
    %275 = vst [vmem:[%s274] sm:%s273] %v271
    %s276 = scalar_lea.vmem [#allocation2], 40
    %v277 = vld [vmem:[%s276] sm:%s247]
    %s279 = ssub.s32 16, 1
    %s280 = scalar_lea.vmem [#allocation3], 20
    %281 = vst [vmem:[%s280] sm:%s279] %v277
    %s282 = scalar_lea.vmem [#allocation2], 48
    %v283 = vld [vmem:[%s282] sm:%s247]
    %s285 = ssub.s32 16, 1
    %s286 = scalar_lea.vmem [#allocation3], 24
    %287 = vst [vmem:[%s286] sm:%s285] %v283
    %s288 = scalar_lea.vmem [#allocation2], 56
    %v289 = vld [vmem:[%s288] sm:%s247]
    %s291 = ssub.s32 16, 1
    %s292 = scalar_lea.vmem [#allocation3], 28
    %293 = vst [vmem:[%s292] sm:%s291] %v289
    // Predicated region
    $region39: #{reverse.1} parent=1 // pred_check
      _
    $region40: #{reverse.1} parent=1 // pred_check_branch
      %295 = sbr.rel (0) target = $region42
    $region41: #{reverse.1} parent=1 // pred_region
      // Predicated region
      $region43: #{reverse.1} parent=41 // pred_check
        _
      $region44: #{reverse.1} parent=41 // pred_check_branch
        %297 = sbr.rel target = $region46
      $region45: #{reverse.1} parent=41 // pred_region
        // Predicated region
        $region58: #{reverse.1} parent=45 // pred_check
          _
        $region59: #{reverse.1} parent=45 // pred_check_branch
          %327 = sbr.rel (0) target = $region61
        $region60: #{reverse.1} parent=45 // pred_region
          loop: start=0, step=1, limit=1
          $region62: #{reverse.1} parent=60 // loop_pre_header
            _
          $region63: #{reverse.1} parent=60 // loop_header
            %s329 = sphi 0, %s333
            %p330 = scmp.ge.s32.totalorder %s329, 1
            %s334 = sphi [#allocation3], [#allocation3]
            %s335 = sphi %s1, %s1
          $region64: #{reverse.1} parent=60 // loop_header_branch
            %332 = sbr.rel (%p330) target = $region68
          $region65: #{reverse.1} parent=60 // loop_body
            _
          $region66: #{reverse.1} parent=60 // loop_footer
            %s333 = sadd.s32 1, %s329
          $region67: #{reverse.1} parent=60 // loop_footer_branch
            %328 = sbr.rel target = $region63
          $region68: #{reverse.1} parent=60 // loop_exit
            _
          %s337 = ssub.s32 16, 1
          loop: start=0, step=1, limit=1
          $region69: #{reverse.1} parent=60 // loop_pre_header
            _
          $region70: #{reverse.1} parent=60 // loop_header
            %s339 = sphi 0, %s343
            %p340 = scmp.ge.s32.totalorder %s339, 1
            %s344 = sphi [#allocation3], [#allocation3]
            %s345 = sphi %s1, %s1
          $region71: #{reverse.1} parent=60 // loop_header_branch
            %342 = sbr.rel (%p340) target = $region75
          $region72: #{reverse.1} parent=60 // loop_body
            %v346 = vld [vmem:[%s344] sm:%s337]
            %347 = vst [vmem:[%s345] sm:%s337] %v346
            %v348 = vld [vmem:[%s344 + $0x4] sm:%s337]
            %349 = vst [vmem:[%s345 + $0x4] sm:%s337] %v348
            %v350 = vld [vmem:[%s344 + $0x8] sm:%s337]
            %351 = vst [vmem:[%s345 + $0x8] sm:%s337] %v350
            %v352 = vld [vmem:[%s344 + $0xc] sm:%s337]
            %353 = vst [vmem:[%s345 + $0xc] sm:%s337] %v352
            %v354 = vld [vmem:[%s344 + $0x10] sm:%s337]
            %355 = vst [vmem:[%s345 + $0x10] sm:%s337] %v354
            %v356 = vld [vmem:[%s344 + $0x14] sm:%s337]
            %357 = vst [vmem:[%s345 + $0x14] sm:%s337] %v356
            %v358 = vld [vmem:[%s344 + $0x18] sm:%s337]
            %359 = vst [vmem:[%s345 + $0x18] sm:%s337] %v358
            %v360 = vld [vmem:[%s344 + $0x1c] sm:%s337]
            %361 = vst [vmem:[%s345 + $0x1c] sm:%s337] %v360
          $region73: #{reverse.1} parent=60 // loop_footer
            %s343 = sadd.s32 1, %s339
          $region74: #{reverse.1} parent=60 // loop_footer_branch
            %338 = sbr.rel target = $region70
          $region75: #{reverse.1} parent=60 // loop_exit
            _
        $region61: #{reverse.1} parent=45 // pred_fallthru
          _
      $region46: #{reverse.1} parent=41 // pred_fallthru
        _
      // Predicated region
      $region47: #{reverse.1} parent=41 // pred_check
        _
      $region48: #{reverse.1} parent=41 // pred_check_branch
        %299 = sbr.rel (0) target = $region50
      $region49: #{reverse.1} parent=41 // pred_region
        %s301 = ssub.s32 16, 1
        loop: start=0, step=1, limit=1
        $region51: #{reverse.1} parent=49 // loop_pre_header
          _
        $region52: #{reverse.1} parent=49 // loop_header
          %s303 = sphi 0, %s307
          %p304 = scmp.ge.s32.totalorder %s303, 1
          %s308 = sphi [#allocation3], [#allocation3]
          %s309 = sphi %s1, %s1
        $region53: #{reverse.1} parent=49 // loop_header_branch
          %306 = sbr.rel (%p304) target = $region57
        $region54: #{reverse.1} parent=49 // loop_body
          %v310 = vld [vmem:[%s308] sm:%s301]
          %311 = vst [vmem:[%s309] sm:%s301] %v310
          %v312 = vld [vmem:[%s308 + $0x4] sm:%s301]
          %313 = vst [vmem:[%s309 + $0x4] sm:%s301] %v312
          %v314 = vld [vmem:[%s308 + $0x8] sm:%s301]
          %315 = vst [vmem:[%s309 + $0x8] sm:%s301] %v314
          %v316 = vld [vmem:[%s308 + $0xc] sm:%s301]
          %317 = vst [vmem:[%s309 + $0xc] sm:%s301] %v316
          %v318 = vld [vmem:[%s308 + $0x10] sm:%s301]
          %319 = vst [vmem:[%s309 + $0x10] sm:%s301] %v318
          %v320 = vld [vmem:[%s308 + $0x14] sm:%s301]
          %321 = vst [vmem:[%s309 + $0x14] sm:%s301] %v320
          %v322 = vld [vmem:[%s308 + $0x18] sm:%s301]
          %323 = vst [vmem:[%s309 + $0x18] sm:%s301] %v322
          %v324 = vld [vmem:[%s308 + $0x1c] sm:%s301]
          %325 = vst [vmem:[%s309 + $0x1c] sm:%s301] %v324
        $region55: #{reverse.1} parent=49 // loop_footer
          %s307 = sadd.s32 1, %s303
        $region56: #{reverse.1} parent=49 // loop_footer_branch
          %302 = sbr.rel target = $region52
        $region57: #{reverse.1} parent=49 // loop_exit
          _
      $region50: #{reverse.1} parent=41 // pred_fallthru
        _
    $region42: #{reverse.1} parent=1 // pred_fallthru
      _
    %362 = vnop

// kernel: _lambda_.4
$region0: #{_lambda_.4}
  #allocation0 [shape = 'u32[]', space=smem, size = 0x4, offset = 0x4, fixed_abs, tag = 'smem constant byte address 0x4 - core index']
  #allocation1 [shape = 'u32[72,128]{1,0:T(1,128)}', space=vmem, size = 0x9000, scoped, tag = 'internal scratch']
  %s0 = inlined_call_operand.vmem [shape: f32[8,4], index: 0, kind: input, shape index: {}]
  %s1 = inlined_call_operand.vmem [shape: f32[8,4], index: 1, kind: input, shape index: {}]
  %s2 = inlined_call_operand.vmem [shape: f32[8,4], index: 2, kind: input, shape index: {}]
  %s3 = inlined_call_operand.vmem [shape: f32[8,4], index: 3, kind: input, shape index: {}]
  %s4 = inlined_call_operand.vmem [shape: f32[2,4,144], index: 4, kind: input, shape index: {}]
  %s5 = inlined_call_operand.vmem [shape: f32[2,4,144], index: 5, kind: input, shape index: {}]
  %s6 = inlined_call_operand.vmem [shape: f32[2,4,40], index: 6, kind: input, shape index: {}]
  %s7 = inlined_call_operand.vmem [shape: f32[2,4,40], index: 7, kind: input, shape index: {}]
  %s8 = inlined_call_operand.vmem [shape: f32[2,8,144], index: 8, kind: output, shape index: {0}]
  %s9 = inlined_call_operand.vmem [shape: f32[2,8,40], index: 9, kind: output, shape index: {1}]
  %10 = xla_tuple %s8, %s9
  %s11 = sld [smem:[#allocation0]]
  $region50: #{_lambda_.4} parent=0
    _
  %s13 = ssub.s32 1, %s11
  %s14 = scalar_select 0, %s13, %s11
  // Predicated region
  $region2: #{_lambda_.4} parent=0 // pred_check
    _
  $region3: #{_lambda_.4} parent=0 // pred_check_branch
    %16 = sbr.rel (0) target = $region5
  $region4: #{_lambda_.4} parent=0 // pred_region
    _
  $region5: #{_lambda_.4} parent=0 // pred_fallthru
    _
  // Predicated region
  $region6: #{_lambda_.4} parent=0 // pred_check
    _
  $region7: #{_lambda_.4} parent=0 // pred_check_branch
    %18 = sbr.rel (0) target = $region9
  $region8: #{_lambda_.4} parent=0 // pred_region
    _
  $region9: #{_lambda_.4} parent=0 // pred_fallthru
    _
  // Predicated region
  $region10: #{_lambda_.4} parent=0 // pred_check
    _
  $region11: #{_lambda_.4} parent=0 // pred_check_branch
    %20 = sbr.rel (0) target = $region13
  $region12: #{_lambda_.4} parent=0 // pred_region
    _
  $region13: #{_lambda_.4} parent=0 // pred_fallthru
    _
  // Predicated region
  $region14: #{_lambda_.4} parent=0 // pred_check
    _
  $region15: #{_lambda_.4} parent=0 // pred_check_branch
    %22 = sbr.rel (0) target = $region17
  $region16: #{_lambda_.4} parent=0 // pred_region
    _
  $region17: #{_lambda_.4} parent=0 // pred_fallthru
    _
  // Predicated region
  $region18: #{_lambda_.4} parent=0 // pred_check
    _
  $region19: #{_lambda_.4} parent=0 // pred_check_branch
    %24 = sbr.rel (0) target = $region21
  $region20: #{_lambda_.4} parent=0 // pred_region
    _
  $region21: #{_lambda_.4} parent=0 // pred_fallthru
    _
  // Predicated region
  $region22: #{_lambda_.4} parent=0 // pred_check
    _
  $region23: #{_lambda_.4} parent=0 // pred_check_branch
    %26 = sbr.rel (0) target = $region25
  $region24: #{_lambda_.4} parent=0 // pred_region
    _
  $region25: #{_lambda_.4} parent=0 // pred_fallthru
    _
  // Predicated region
  $region26: #{_lambda_.4} parent=0 // pred_check
    _
  $region27: #{_lambda_.4} parent=0 // pred_check_branch
    %28 = sbr.rel (0) target = $region29
  $region28: #{_lambda_.4} parent=0 // pred_region
    _
  $region29: #{_lambda_.4} parent=0 // pred_fallthru
    _
  // Predicated region
  $region30: #{_lambda_.4} parent=0 // pred_check
    _
  $region31: #{_lambda_.4} parent=0 // pred_check_branch
    %30 = sbr.rel (0) target = $region33
  $region32: #{_lambda_.4} parent=0 // pred_region
    _
  $region33: #{_lambda_.4} parent=0 // pred_fallthru
    _
  %v32 = vld [vmem:[%s0] sm:$0xff]
  %v33 = vpack.c.bf16 %v32, %v32
  %v34 = vld [vmem:[%s1] sm:$0xff]
  %v35 = vpack.c.bf16 %v34, %v34
  %v36 = vld [vmem:[%s4] sm:$0xff]
  %38 = vst [vmem:[#allocation1] ss:$2 sm:$0xff] %v36
  %v39 = vld.sshfl [vmem:[#allocation1] sm:$0xff pattern:$0x75316420]
  %v40 = vld.sshfl [vmem:[#allocation1 + $0x8] sm:$0xff pattern:$0x75316420]
  %v43 = vpack.c.bf16 %v39, %v39
  %v44 = vpack.c.bf16 %v40, %v40
  %v45 = vld [vmem:[%s5] sm:$0xff]
  %47 = vst [vmem:[#allocation1] ss:$2 sm:$0xff] %v45
  %v48 = vld.sshfl [vmem:[#allocation1] sm:$0xff pattern:$0x75316420]
  %v49 = vld.sshfl [vmem:[#allocation1 + $0x8] sm:$0xff pattern:$0x75316420]
  %v52 = vpack.c.bf16 %v48, %v48
  %v53 = vpack.c.bf16 %v49, %v49
  %vm54 = vcmask 31744
  %v56 = vsel %vm54, %v35, 0
  %vm58 = vcmask 1041408
  %v60 = vsel %vm58, %v52, 0
  %v63 = vsel %vm58, %v53, 0
  %65 = vmatpush.bf16.msra.mxu0 0
  %66 = vmatpush.bf16.msra.mxu0 0
  %67 = vmatpush.bf16.msra.mxu0 0
  %68 = vmatpush.bf16.msra.mxu0 0
  %69 = vmatpush.bf16.msra.mxu0 0
  %70 = vmatpush.bf16.msra.mxu0 0
  %71 = vmatpush.bf16.msra.mxu0 0
  %72 = vmatpush.bf16.msra.mxu0 %v60
  %73 = vmatmul.bf16.gmra.mxu0 %v56
  %v74 = vpop.f32.mrf.mxu0
  %v75 = vadd.f32 0.0, %v74
  %v76 = vpop.f32.mrf.mxu0
  %77 = vdwg.mxu0
  %78 = vmatpush.bf16.msra.mxu0 0
  %79 = vmatpush.bf16.msra.mxu0 0
  %80 = vmatpush.bf16.msra.mxu0 0
  %81 = vmatpush.bf16.msra.mxu0 0
  %82 = vmatpush.bf16.msra.mxu0 0
  %83 = vmatpush.bf16.msra.mxu0 0
  %84 = vmatpush.bf16.msra.mxu0 0
  %85 = vmatpush.bf16.msra.mxu0 %v63
  %86 = vmatmul.bf16.gmra.mxu0 %v56
  %v87 = vpop.f32.mrf.mxu0
  %v88 = vadd.f32 0.0, %v87
  %v89 = vpop.f32.mrf.mxu0
  %90 = vdwg.mxu0
  %v92 = vsel %vm54, %v33, 0
  %v95 = vsel %vm58, %v43, 0
  %v98 = vsel %vm58, %v44, 0
  %100 = vmatpush.bf16.msra.mxu0 0
  %101 = vmatpush.bf16.msra.mxu0 0
  %102 = vmatpush.bf16.msra.mxu0 0
  %103 = vmatpush.bf16.msra.mxu0 0
  %104 = vmatpush.bf16.msra.mxu0 0
  %105 = vmatpush.bf16.msra.mxu0 0
  %106 = vmatpush.bf16.msra.mxu0 0
  %107 = vmatpush.bf16.msra.mxu0 %v95
  %108 = vmatmul.bf16.gmra.mxu0 %v92
  %v109 = vpop.f32.mrf.mxu0
  %v110 = vadd.f32 %v75, %v109
  %v111 = vpop.f32.mrf.mxu0
  %112 = vdwg.mxu0
  %113 = vmatpush.bf16.msra.mxu0 0
  %114 = vmatpush.bf16.msra.mxu0 0
  %115 = vmatpush.bf16.msra.mxu0 0
  %116 = vmatpush.bf16.msra.mxu0 0
  %117 = vmatpush.bf16.msra.mxu0 0
  %118 = vmatpush.bf16.msra.mxu0 0
  %119 = vmatpush.bf16.msra.mxu0 0
  %120 = vmatpush.bf16.msra.mxu0 %v98
  %121 = vmatmul.bf16.gmra.mxu0 %v92
  %v122 = vpop.f32.mrf.mxu0
  %v123 = vadd.f32 %v88, %v122
  %v124 = vpop.f32.mrf.mxu0
  %125 = vdwg.mxu0
  %vm126 = vcmask 130048
  %v127 = vsel %vm126, %v123, 0.0
  %v128 = vadd.f32 %v110, %v127
  %129 = vadd.xlane.f32.xlu0 %v128
  %v130 = vpop.xlane.xlu0 %129
  %v131 = vrcp.pop 144.0
  %v132 = vmul.f32 144.0, %v131
  %v133 = vsub.f32 1.0, %v132
  %v134 = vmul.f32 %v131, %v133
  %v135 = vadd.f32 %v131, %v134
  %vm136 = vweird.f32 %v131
  %v137 = vsel %vm136, %v131, %v135
  %v138 = vmul.f32 %v130, %v137
  %v139 = vsub.f32 %v110, %v138
  %v140 = vsub.f32 %v123, %v138
  %v141 = vmul.f32 %v139, %v139
  %v142 = vmul.f32 %v140, %v140
  %v143 = vsel %vm126, %v142, 0.0
  %v144 = vadd.f32 %v141, %v143
  %145 = vadd.xlane.f32.xlu0 %v144
  %v146 = vpop.xlane.xlu0 %145
  %v147 = vmul.f32 %v146, %v137
  %v148 = vadd.f32 %v147, 1e-05
  %v149 = vrsqrt.pop %v148
  %v150 = vmul.f32 %v149, %v148
  %v151 = vmul.f32 %v150, %v149
  %v152 = vmul.f32 0.5, %v151
  %v153 = vsub.f32 1.5, %v152
  %v154 = vmul.f32 %v149, %v153
  %vm155 = vweird.f32 %v148
  %vm156 = vweird.f32 %v149
  %vm157 = vmor %vm155, %vm156
  %v158 = vsel %vm157, %v149, %v154
  %v159 = vmul.f32 %v139, %v158
  %v160 = vmul.f32 %v140, %v158
  %vm161 = vcmp.ge.f32.partialorder %v159, 0.0
  %vm162 = vcmp.ge.f32.partialorder %v160, 0.0
  %v163 = vmul.f32 %v159, 0.01
  %v164 = vmul.f32 %v160, 0.01
  %v165 = vsel %vm161, %v159, %v163
  %v166 = vsel %vm162, %v160, %v164
  %167 = vst [vmem:[%s8] sm:$0xff] %v165
  %168 = vst.msk [vmem:[%s8 + $0x8] sm:$0xff] %vm126, %v166
  %s169 = scalar_lea.vmem %s4, 8
  %v170 = vld [vmem:[%s169] sm:$0xff]
  %172 = vst [vmem:[#allocation1] ss:$2 sm:$0xff] %v170
  %v173 = vld.sshfl [vmem:[#allocation1] sm:$0xff pattern:$0x75316420]
  %v174 = vld.sshfl [vmem:[#allocation1 + $0x8] sm:$0xff pattern:$0x75316420]
  %v177 = vpack.c.bf16 %v173, %v173
  %v178 = vpack.c.bf16 %v174, %v174
  %s179 = scalar_lea.vmem %s5, 8
  %v180 = vld [vmem:[%s179] sm:$0xff]
  %182 = vst [vmem:[#allocation1] ss:$2 sm:$0xff] %v180
  %v183 = vld.sshfl [vmem:[#allocation1] sm:$0xff pattern:$0x75316420]
  %v184 = vld.sshfl [vmem:[#allocation1 + $0x8] sm:$0xff pattern:$0x75316420]
  %v187 = vpack.c.bf16 %v183, %v183
  %v188 = vpack.c.bf16 %v184, %v184
  %v190 = vsel %vm58, %v187, 0
  %v193 = vsel %vm58, %v188, 0
  %195 = vmatpush.bf16.msra.mxu0 0
  %196 = vmatpush.bf16.msra.mxu0 0
  %197 = vmatpush.bf16.msra.mxu0 0
  %198 = vmatpush.bf16.msra.mxu0 0
  %199 = vmatpush.bf16.msra.mxu0 0
  %200 = vmatpush.bf16.msra.mxu0 0
  %201 = vmatpush.bf16.msra.mxu0 0
  %202 = vmatpush.bf16.msra.mxu0 %v190
  %203 = vmatmul.bf16.gmra.mxu0 %v56
  %v204 = vpop.f32.mrf.mxu0
  %v205 = vadd.f32 0.0, %v204
  %v206 = vpop.f32.mrf.mxu0
  %207 = vdwg.mxu0
  %208 = vmatpush.bf16.msra.mxu0 0
  %209 = vmatpush.bf16.msra.mxu0 0
  %210 = vmatpush.bf16.msra.mxu0 0
  %211 = vmatpush.bf16.msra.mxu0 0
  %212 = vmatpush.bf16.msra.mxu0 0
  %213 = vmatpush.bf16.msra.mxu0 0
  %214 = vmatpush.bf16.msra.mxu0 0
  %215 = vmatpush.bf16.msra.mxu0 %v193
  %216 = vmatmul.bf16.gmra.mxu0 %v56
  %v217 = vpop.f32.mrf.mxu0
  %v218 = vadd.f32 0.0, %v217
  %v219 = vpop.f32.mrf.mxu0
  %220 = vdwg.mxu0
  %v222 = vsel %vm58, %v177, 0
  %v225 = vsel %vm58, %v178, 0
  %227 = vmatpush.bf16.msra.mxu0 0
  %228 = vmatpush.bf16.msra.mxu0 0
  %229 = vmatpush.bf16.msra.mxu0 0
  %230 = vmatpush.bf16.msra.mxu0 0
  %231 = vmatpush.bf16.msra.mxu0 0
  %232 = vmatpush.bf16.msra.mxu0 0
  %233 = vmatpush.bf16.msra.mxu0 0
  %234 = vmatpush.bf16.msra.mxu0 %v222
  %235 = vmatmul.bf16.gmra.mxu0 %v92
  %v236 = vpop.f32.mrf.mxu0
  %v237 = vadd.f32 %v205, %v236
  %v238 = vpop.f32.mrf.mxu0
  %239 = vdwg.mxu0
  %240 = vmatpush.bf16.msra.mxu0 0
  %241 = vmatpush.bf16.msra.mxu0 0
  %242 = vmatpush.bf16.msra.mxu0 0
  %243 = vmatpush.bf16.msra.mxu0 0
  %244 = vmatpush.bf16.msra.mxu0 0
  %245 = vmatpush.bf16.msra.mxu0 0
  %246 = vmatpush.bf16.msra.mxu0 0
  %247 = vmatpush.bf16.msra.mxu0 %v225
  %248 = vmatmul.bf16.gmra.mxu0 %v92
  %v249 = vpop.f32.mrf.mxu0
  %v250 = vadd.f32 %v218, %v249
  %v251 = vpop.f32.mrf.mxu0
  %252 = vdwg.mxu0
  %v253 = vsel %vm126, %v250, 0.0
  %v254 = vadd.f32 %v237, %v253
  %255 = vadd.xlane.f32.xlu0 %v254
  %v256 = vpop.xlane.xlu0 %255
  %v257 = vmul.f32 %v256, %v137
  %v258 = vsub.f32 %v237, %v257
  %v259 = vsub.f32 %v250, %v257
  %v260 = vmul.f32 %v258, %v258
  %v261 = vmul.f32 %v259, %v259
  %v262 = vsel %vm126, %v261, 0.0
  %v263 = vadd.f32 %v260, %v262
  %264 = vadd.xlane.f32.xlu0 %v263
  %v265 = vpop.xlane.xlu0 %264
  %v266 = vmul.f32 %v265, %v137
  %v267 = vadd.f32 %v266, 1e-05
  %v268 = vrsqrt.pop %v267
  %v269 = vmul.f32 %v268, %v267
  %v270 = vmul.f32 %v269, %v268
  %v271 = vmul.f32 0.5, %v270
  %v272 = vsub.f32 1.5, %v271
  %v273 = vmul.f32 %v268, %v272
  %vm274 = vweird.f32 %v267
  %vm275 = vweird.f32 %v268
  %vm276 = vmor %vm274, %vm275
  %v277 = vsel %vm276, %v268, %v273
  %v278 = vmul.f32 %v258, %v277
  %v279 = vmul.f32 %v259, %v277
  %vm280 = vcmp.ge.f32.partialorder %v278, 0.0
  %vm281 = vcmp.ge.f32.partialorder %v279, 0.0
  %v282 = vmul.f32 %v278, 0.01
  %v283 = vmul.f32 %v279, 0.01
  %v284 = vsel %vm280, %v278, %v282
  %v285 = vsel %vm281, %v279, %v283
  %s286 = scalar_lea.vmem %s8, 16
  %287 = vst [vmem:[%s286] sm:$0xff] %v284
  %288 = vst.msk [vmem:[%s286 + $0x8] sm:$0xff] %vm126, %v285
  %v289 = vld [vmem:[%s2] sm:$0xff]
  %v290 = vpack.c.bf16 %v289, %v289
  %v291 = vld [vmem:[%s3] sm:$0xff]
  %v292 = vpack.c.bf16 %v291, %v291
  %v293 = vld [vmem:[%s6] sm:$0xf]
  %v294 = vpack.c.bf16 %v293, %v293
  %v295 = vld [vmem:[%s7] sm:$0xf]
  %v296 = vpack.c.bf16 %v295, %v295
  %v298 = vsel %vm54, %v292, 0
  %v301 = vsel %vm58, %v296, 0
  %303 = vmatpush.bf16.msra.mxu0 0
  %304 = vmatpush.bf16.msra.mxu0 0
  %305 = vmatpush.bf16.msra.mxu0 0
  %306 = vmatpush.bf16.msra.mxu0 0
  %307 = vmatpush.bf16.msra.mxu0 0
  %308 = vmatpush.bf16.msra.mxu0 0
  %309 = vmatpush.bf16.msra.mxu0 0
  %310 = vmatpush.bf16.msra.mxu0 %v301
  %311 = vmatmul.bf16.gmra.mxu0 %v298
  %v312 = vpop.f32.mrf.mxu0
  %v313 = vadd.f32 0.0, %v312
  %v314 = vpop.f32.mrf.mxu0
  %315 = vdwg.mxu0
  %v317 = vsel %vm54, %v290, 0
  %v320 = vsel %vm58, %v294, 0
  %322 = vmatpush.bf16.msra.mxu0 0
  %323 = vmatpush.bf16.msra.mxu0 0
  %324 = vmatpush.bf16.msra.mxu0 0
  %325 = vmatpush.bf16.msra.mxu0 0
  %326 = vmatpush.bf16.msra.mxu0 0
  %327 = vmatpush.bf16.msra.mxu0 0
  %328 = vmatpush.bf16.msra.mxu0 0
  %329 = vmatpush.bf16.msra.mxu0 %v320
  %330 = vmatmul.bf16.gmra.mxu0 %v317
  %v331 = vpop.f32.mrf.mxu0
  %v332 = vadd.f32 %v313, %v331
  %v333 = vpop.f32.mrf.mxu0
  %334 = vdwg.mxu0
  %vm335 = vcmask 326656
  %v336 = vsel %vm335, %v332, 0.0
  %337 = vadd.xlane.f32.xlu0 %v336
  %v338 = vpop.xlane.xlu0 %337
  %v339 = vrcp.pop 40.0
  %v340 = vmul.f32 40.0, %v339
  %v341 = vsub.f32 1.0, %v340
  %v342 = vmul.f32 %v339, %v341
  %v343 = vadd.f32 %v339, %v342
  %vm344 = vweird.f32 %v339
  %v345 = vsel %vm344, %v339, %v343
  %v346 = vmul.f32 %v338, %v345
  %v347 = vsub.f32 %v332, %v346
  %v348 = vmul.f32 %v347, %v347
  %v349 = vsel %vm335, %v348, 0.0
  %350 = vadd.xlane.f32.xlu0 %v349
  %v351 = vpop.xlane.xlu0 %350
  %v352 = vmul.f32 %v351, %v345
  %v353 = vadd.f32 %v352, 1e-05
  %v354 = vrsqrt.pop %v353
  %v355 = vmul.f32 %v354, %v353
  %v356 = vmul.f32 %v355, %v354
  %v357 = vmul.f32 0.5, %v356
  %v358 = vsub.f32 1.5, %v357
  %v359 = vmul.f32 %v354, %v358
  %vm360 = vweird.f32 %v353
  %vm361 = vweird.f32 %v354
  %vm362 = vmor %vm360, %vm361
  %v363 = vsel %vm362, %v354, %v359
  %v364 = vmul.f32 %v347, %v363
  %vm365 = vcmp.ge.f32.partialorder %v364, 0.0
  %v366 = vmul.f32 %v364, 0.01
  %v367 = vsel %vm365, %v364, %v366
  %368 = vst.msk [vmem:[%s9] sm:$0xff] %vm335, %v367
  %s369 = scalar_lea.vmem %s6, 4
  %v370 = vld [vmem:[%s369] sm:$0xf]
  %v371 = vpack.c.bf16 %v370, %v370
  %s372 = scalar_lea.vmem %s7, 4
  %v373 = vld [vmem:[%s372] sm:$0xf]
  %v374 = vpack.c.bf16 %v373, %v373
  %v376 = vsel %vm58, %v374, 0
  %378 = vmatpush.bf16.msra.mxu0 0
  %379 = vmatpush.bf16.msra.mxu0 0
  %380 = vmatpush.bf16.msra.mxu0 0
  %381 = vmatpush.bf16.msra.mxu0 0
  %382 = vmatpush.bf16.msra.mxu0 0
  %383 = vmatpush.bf16.msra.mxu0 0
  %384 = vmatpush.bf16.msra.mxu0 0
  %385 = vmatpush.bf16.msra.mxu0 %v376
  %386 = vmatmul.bf16.gmra.mxu0 %v298
  %v387 = vpop.f32.mrf.mxu0
  %v388 = vadd.f32 0.0, %v387
  %v389 = vpop.f32.mrf.mxu0
  %390 = vdwg.mxu0
  %v392 = vsel %vm58, %v371, 0
  %394 = vmatpush.bf16.msra.mxu0 0
  %395 = vmatpush.bf16.msra.mxu0 0
  %396 = vmatpush.bf16.msra.mxu0 0
  %397 = vmatpush.bf16.msra.mxu0 0
  %398 = vmatpush.bf16.msra.mxu0 0
  %399 = vmatpush.bf16.msra.mxu0 0
  %400 = vmatpush.bf16.msra.mxu0 0
  %401 = vmatpush.bf16.msra.mxu0 %v392
  %402 = vmatmul.bf16.gmra.mxu0 %v317
  %v403 = vpop.f32.mrf.mxu0
  %v404 = vadd.f32 %v388, %v403
  %v405 = vpop.f32.mrf.mxu0
  %406 = vdwg.mxu0
  %v407 = vsel %vm335, %v404, 0.0
  %408 = vadd.xlane.f32.xlu0 %v407
  %v409 = vpop.xlane.xlu0 %408
  %v410 = vmul.f32 %v409, %v345
  %v411 = vsub.f32 %v404, %v410
  %v412 = vmul.f32 %v411, %v411
  %v413 = vsel %vm335, %v412, 0.0
  %414 = vadd.xlane.f32.xlu0 %v413
  %v415 = vpop.xlane.xlu0 %414
  %v416 = vmul.f32 %v415, %v345
  %v417 = vadd.f32 %v416, 1e-05
  %v418 = vrsqrt.pop %v417
  %v419 = vmul.f32 %v418, %v417
  %v420 = vmul.f32 %v419, %v418
  %v421 = vmul.f32 0.5, %v420
  %v422 = vsub.f32 1.5, %v421
  %v423 = vmul.f32 %v418, %v422
  %vm424 = vweird.f32 %v417
  %vm425 = vweird.f32 %v418
  %vm426 = vmor %vm424, %vm425
  %v427 = vsel %vm426, %v418, %v423
  %v428 = vmul.f32 %v411, %v427
  %vm429 = vcmp.ge.f32.partialorder %v428, 0.0
  %v430 = vmul.f32 %v428, 0.01
  %v431 = vsel %vm429, %v428, %v430
  %s432 = scalar_lea.vmem %s9, 8
  %433 = vst.msk [vmem:[%s432] sm:$0xff] %vm335, %v431
  // Predicated region
  $region34: #{_lambda_.4} parent=0 // pred_check
    _
  $region35: #{_lambda_.4} parent=0 // pred_check_branch
    %435 = sbr.rel (0) target = $region37
  $region36: #{_lambda_.4} parent=0 // pred_region
    _
  $region37: #{_lambda_.4} parent=0 // pred_fallthru
    _
  // Predicated region
  $region38: #{_lambda_.4} parent=0 // pred_check
    _
  $region39: #{_lambda_.4} parent=0 // pred_check_branch
    %437 = sbr.rel (0) target = $region41
  $region40: #{_lambda_.4} parent=0 // pred_region
    _
  $region41: #{_lambda_.4} parent=0 // pred_fallthru
    _
  // Predicated region
  $region42: #{_lambda_.4} parent=0 // pred_check
    _
  $region43: #{_lambda_.4} parent=0 // pred_check_branch
    %439 = sbr.rel (0) target = $region45
  $region44: #{_lambda_.4} parent=0 // pred_region
    _
  $region45: #{_lambda_.4} parent=0 // pred_fallthru
    _
  // Predicated region
  $region46: #{_lambda_.4} parent=0 // pred_check
    _
  $region47: #{_lambda_.4} parent=0 // pred_check_branch
    %441 = sbr.rel (0) target = $region49
  $region48: #{_lambda_.4} parent=0 // pred_region
    _
  $region49: #{_lambda_.4} parent=0 // pred_fallthru
    _

// kernel: tile.9
$region0: #{tile.9}
  %s0 = inlined_call_operand.vmem [shape: f32[2,4,2,8,2,8], index: 0, kind: input, shape index: {}]
  %s1 = inlined_call_operand.vmem [shape: f32[2,4,256], index: 1, kind: output, shape index: {}]
  $region1: #{tile.9} parent=0
    #allocation0 [shape = 'u8[16384]{0}', space=vmem, size = 0x4000, scoped, tag = 'scoped mem for output reshape']
    #allocation1 [shape = 'u8[524288]{0}', space=vmem, size = 0x80000, scoped, tag = 'scoped mem for input reshape']
    %s3 = ssub.s32 4, 1
    %s4 = scalar_lea.vmem %s0, 254
    %v5 = vld [vmem:[%s4] sm:%s3]
    %s6 = scalar_lea.vmem [#allocation1], 1016
    %7 = vst [vmem:[%s6] sm:%s3] %v5
    %s8 = scalar_lea.vmem %s0, 252
    %v9 = vld [vmem:[%s8] sm:%s3]
    %s10 = scalar_lea.vmem [#allocation1], 1008
    %11 = vst [vmem:[%s10] sm:%s3] %v9
    %s12 = scalar_lea.vmem %s0, 250
    %v13 = vld [vmem:[%s12] sm:%s3]
    %s14 = scalar_lea.vmem [#allocation1], 1000
    %15 = vst [vmem:[%s14] sm:%s3] %v13
    %s16 = scalar_lea.vmem %s0, 248
    %v17 = vld [vmem:[%s16] sm:%s3]
    %s18 = scalar_lea.vmem [#allocation1], 992
    %19 = vst [vmem:[%s18] sm:%s3] %v17
    %s20 = scalar_lea.vmem %s0, 246
    %v21 = vld [vmem:[%s20] sm:%s3]
    %s22 = scalar_lea.vmem [#allocation1], 984
    %23 = vst [vmem:[%s22] sm:%s3] %v21
    %s24 = scalar_lea.vmem %s0, 244
    %v25 = vld [vmem:[%s24] sm:%s3]
    %s26 = scalar_lea.vmem [#allocation1], 976
    %27 = vst [vmem:[%s26] sm:%s3] %v25
    %s28 = scalar_lea.vmem %s0, 242
    %v29 = vld [vmem:[%s28] sm:%s3]
    %s30 = scalar_lea.vmem [#allocation1], 968
    %31 = vst [vmem:[%s30] sm:%s3] %v29
    %s32 = scalar_lea.vmem %s0, 240
    %v33 = vld [vmem:[%s32] sm:%s3]
    %s34 = scalar_lea.vmem [#allocation1], 960
    %35 = vst [vmem:[%s34] sm:%s3] %v33
    %s36 = scalar_lea.vmem %s0, 238
    %v37 = vld [vmem:[%s36] sm:%s3]
    %s38 = scalar_lea.vmem [#allocation1], 952
    %39 = vst [vmem:[%s38] sm:%s3] %v37
    %s40 = scalar_lea.vmem %s0, 236
    %v41 = vld [vmem:[%s40] sm:%s3]
    %s42 = scalar_lea.vmem [#allocation1], 944
    %43 = vst [vmem:[%s42] sm:%s3] %v41
    %s44 = scalar_lea.vmem %s0, 234
    %v45 = vld [vmem:[%s44] sm:%s3]
    %s46 = scalar_lea.vmem [#allocation1], 936
    %47 = vst [vmem:[%s46] sm:%s3] %v45
    %s48 = scalar_lea.vmem %s0, 232
    %v49 = vld [vmem:[%s48] sm:%s3]
    %s50 = scalar_lea.vmem [#allocation1], 928
    %51 = vst [vmem:[%s50] sm:%s3] %v49
    %s52 = scalar_lea.vmem %s0, 230
    %v53 = vld [vmem:[%s52] sm:%s3]
    %s54 = scalar_lea.vmem [#allocation1], 920
    %55 = vst [vmem:[%s54] sm:%s3] %v53
    %s56 = scalar_lea.vmem %s0, 228
    %v57 = vld [vmem:[%s56] sm:%s3]
    %s58 = scalar_lea.vmem [#allocation1], 912
    %59 = vst [vmem:[%s58] sm:%s3] %v57
    %s60 = scalar_lea.vmem %s0, 226
    %v61 = vld [vmem:[%s60] sm:%s3]
    %s62 = scalar_lea.vmem [#allocation1], 904
    %63 = vst [vmem:[%s62] sm:%s3] %v61
    %s64 = scalar_lea.vmem %s0, 224
    %v65 = vld [vmem:[%s64] sm:%s3]
    %s66 = scalar_lea.vmem [#allocation1], 896
    %67 = vst [vmem:[%s66] sm:%s3] %v65
    %s68 = scalar_lea.vmem %s0, 222
    %v69 = vld [vmem:[%s68] sm:%s3]
    %s70 = scalar_lea.vmem [#allocation1], 888
    %71 = vst [vmem:[%s70] sm:%s3] %v69
    %s72 = scalar_lea.vmem %s0, 220
    %v73 = vld [vmem:[%s72] sm:%s3]
    %s74 = scalar_lea.vmem [#allocation1], 880
    %75 = vst [vmem:[%s74] sm:%s3] %v73
    %s76 = scalar_lea.vmem %s0, 218
    %v77 = vld [vmem:[%s76] sm:%s3]
    %s78 = scalar_lea.vmem [#allocation1], 872
    %79 = vst [vmem:[%s78] sm:%s3] %v77
    %s80 = scalar_lea.vmem %s0, 216
    %v81 = vld [vmem:[%s80] sm:%s3]
    %s82 = scalar_lea.vmem [#allocation1], 864
    %83 = vst [vmem:[%s82] sm:%s3] %v81
    %s84 = scalar_lea.vmem %s0, 214
    %v85 = vld [vmem:[%s84] sm:%s3]
    %s86 = scalar_lea.vmem [#allocation1], 856
    %87 = vst [vmem:[%s86] sm:%s3] %v85
    %s88 = scalar_lea.vmem %s0, 212
    %v89 = vld [vmem:[%s88] sm:%s3]
    %s90 = scalar_lea.vmem [#allocation1], 848
    %91 = vst [vmem:[%s90] sm:%s3] %v89
    %s92 = scalar_lea.vmem %s0, 210
    %v93 = vld [vmem:[%s92] sm:%s3]
    %s94 = scalar_lea.vmem [#allocation1], 840
    %95 = vst [vmem:[%s94] sm:%s3] %v93
    %s96 = scalar_lea.vmem %s0, 208
    %v97 = vld [vmem:[%s96] sm:%s3]
    %s98 = scalar_lea.vmem [#allocation1], 832
    %99 = vst [vmem:[%s98] sm:%s3] %v97
    %s100 = scalar_lea.vmem %s0, 206
    %v101 = vld [vmem:[%s100] sm:%s3]
    %s102 = scalar_lea.vmem [#allocation1], 824
    %103 = vst [vmem:[%s102] sm:%s3] %v101
    %s104 = scalar_lea.vmem %s0, 204
    %v105 = vld [vmem:[%s104] sm:%s3]
    %s106 = scalar_lea.vmem [#allocation1], 816
    %107 = vst [vmem:[%s106] sm:%s3] %v105
    %s108 = scalar_lea.vmem %s0, 202
    %v109 = vld [vmem:[%s108] sm:%s3]
    %s110 = scalar_lea.vmem [#allocation1], 808
    %111 = vst [vmem:[%s110] sm:%s3] %v109
    %s112 = scalar_lea.vmem %s0, 200
    %v113 = vld [vmem:[%s112] sm:%s3]
    %s114 = scalar_lea.vmem [#allocation1], 800
    %115 = vst [vmem:[%s114] sm:%s3] %v113
    %s116 = scalar_lea.vmem %s0, 198
    %v117 = vld [vmem:[%s116] sm:%s3]
    %s118 = scalar_lea.vmem [#allocation1], 792
    %119 = vst [vmem:[%s118] sm:%s3] %v117
    %s120 = scalar_lea.vmem %s0, 196
    %v121 = vld [vmem:[%s120] sm:%s3]
    %s122 = scalar_lea.vmem [#allocation1], 784
    %123 = vst [vmem:[%s122] sm:%s3] %v121
    %s124 = scalar_lea.vmem %s0, 194
    %v125 = vld [vmem:[%s124] sm:%s3]
    %s126 = scalar_lea.vmem [#allocation1], 776
    %127 = vst [vmem:[%s126] sm:%s3] %v125
    %s128 = scalar_lea.vmem %s0, 192
    %v129 = vld [vmem:[%s128] sm:%s3]
    %s130 = scalar_lea.vmem [#allocation1], 768
    %131 = vst [vmem:[%s130] sm:%s3] %v129
    %s132 = scalar_lea.vmem %s0, 190
    %v133 = vld [vmem:[%s132] sm:%s3]
    %s134 = scalar_lea.vmem [#allocation1], 760
    %135 = vst [vmem:[%s134] sm:%s3] %v133
    %s136 = scalar_lea.vmem %s0, 188
    %v137 = vld [vmem:[%s136] sm:%s3]
    %s138 = scalar_lea.vmem [#allocation1], 752
    %139 = vst [vmem:[%s138] sm:%s3] %v137
    %s140 = scalar_lea.vmem %s0, 186
    %v141 = vld [vmem:[%s140] sm:%s3]
    %s142 = scalar_lea.vmem [#allocation1], 744
    %143 = vst [vmem:[%s142] sm:%s3] %v141
    %s144 = scalar_lea.vmem %s0, 184
    %v145 = vld [vmem:[%s144] sm:%s3]
    %s146 = scalar_lea.vmem [#allocation1], 736
    %147 = vst [vmem:[%s146] sm:%s3] %v145
    %s148 = scalar_lea.vmem %s0, 182
    %v149 = vld [vmem:[%s148] sm:%s3]
    %s150 = scalar_lea.vmem [#allocation1], 728
    %151 = vst [vmem:[%s150] sm:%s3] %v149
    %s152 = scalar_lea.vmem %s0, 180
    %v153 = vld [vmem:[%s152] sm:%s3]
    %s154 = scalar_lea.vmem [#allocation1], 720
    %155 = vst [vmem:[%s154] sm:%s3] %v153
    %s156 = scalar_lea.vmem %s0, 178
    %v157 = vld [vmem:[%s156] sm:%s3]
    %s158 = scalar_lea.vmem [#allocation1], 712
    %159 = vst [vmem:[%s158] sm:%s3] %v157
    %s160 = scalar_lea.vmem %s0, 176
    %v161 = vld [vmem:[%s160] sm:%s3]
    %s162 = scalar_lea.vmem [#allocation1], 704
    %163 = vst [vmem:[%s162] sm:%s3] %v161
    %s164 = scalar_lea.vmem %s0, 174
    %v165 = vld [vmem:[%s164] sm:%s3]
    %s166 = scalar_lea.vmem [#allocation1], 696
    %167 = vst [vmem:[%s166] sm:%s3] %v165
    %s168 = scalar_lea.vmem %s0, 172
    %v169 = vld [vmem:[%s168] sm:%s3]
    %s170 = scalar_lea.vmem [#allocation1], 688
    %171 = vst [vmem:[%s170] sm:%s3] %v169
    %s172 = scalar_lea.vmem %s0, 170
    %v173 = vld [vmem:[%s172] sm:%s3]
    %s174 = scalar_lea.vmem [#allocation1], 680
    %175 = vst [vmem:[%s174] sm:%s3] %v173
    %s176 = scalar_lea.vmem %s0, 168
    %v177 = vld [vmem:[%s176] sm:%s3]
    %s178 = scalar_lea.vmem [#allocation1], 672
    %179 = vst [vmem:[%s178] sm:%s3] %v177
    %s180 = scalar_lea.vmem %s0, 166
    %v181 = vld [vmem:[%s180] sm:%s3]
    %s182 = scalar_lea.vmem [#allocation1], 664
    %183 = vst [vmem:[%s182] sm:%s3] %v181
    %s184 = scalar_lea.vmem %s0, 164
    %v185 = vld [vmem:[%s184] sm:%s3]
    %s186 = scalar_lea.vmem [#allocation1], 656
    %187 = vst [vmem:[%s186] sm:%s3] %v185
    %s188 = scalar_lea.vmem %s0, 162
    %v189 = vld [vmem:[%s188] sm:%s3]
    %s190 = scalar_lea.vmem [#allocation1], 648
    %191 = vst [vmem:[%s190] sm:%s3] %v189
    %s192 = scalar_lea.vmem %s0, 160
    %v193 = vld [vmem:[%s192] sm:%s3]
    %s194 = scalar_lea.vmem [#allocation1], 640
    %195 = vst [vmem:[%s194] sm:%s3] %v193
    %s196 = scalar_lea.vmem %s0, 158
    %v197 = vld [vmem:[%s196] sm:%s3]
    %s198 = scalar_lea.vmem [#allocation1], 632
    %199 = vst [vmem:[%s198] sm:%s3] %v197
    %s200 = scalar_lea.vmem %s0, 156
    %v201 = vld [vmem:[%s200] sm:%s3]
    %s202 = scalar_lea.vmem [#allocation1], 624
    %203 = vst [vmem:[%s202] sm:%s3] %v201
    %s204 = scalar_lea.vmem %s0, 154
    %v205 = vld [vmem:[%s204] sm:%s3]
    %s206 = scalar_lea.vmem [#allocation1], 616
    %207 = vst [vmem:[%s206] sm:%s3] %v205
    %s208 = scalar_lea.vmem %s0, 152
    %v209 = vld [vmem:[%s208] sm:%s3]
    %s210 = scalar_lea.vmem [#allocation1], 608
    %211 = vst [vmem:[%s210] sm:%s3] %v209
    %s212 = scalar_lea.vmem %s0, 150
    %v213 = vld [vmem:[%s212] sm:%s3]
    %s214 = scalar_lea.vmem [#allocation1], 600
    %215 = vst [vmem:[%s214] sm:%s3] %v213
    %s216 = scalar_lea.vmem %s0, 148
    %v217 = vld [vmem:[%s216] sm:%s3]
    %s218 = scalar_lea.vmem [#allocation1], 592
    %219 = vst [vmem:[%s218] sm:%s3] %v217
    %s220 = scalar_lea.vmem %s0, 146
    %v221 = vld [vmem:[%s220] sm:%s3]
    %s222 = scalar_lea.vmem [#allocation1], 584
    %223 = vst [vmem:[%s222] sm:%s3] %v221
    %s224 = scalar_lea.vmem %s0, 144
    %v225 = vld [vmem:[%s224] sm:%s3]
    %s226 = scalar_lea.vmem [#allocation1], 576
    %227 = vst [vmem:[%s226] sm:%s3] %v225
    %s228 = scalar_lea.vmem %s0, 142
    %v229 = vld [vmem:[%s228] sm:%s3]
    %s230 = scalar_lea.vmem [#allocation1], 568
    %231 = vst [vmem:[%s230] sm:%s3] %v229
    %s232 = scalar_lea.vmem %s0, 140
    %v233 = vld [vmem:[%s232] sm:%s3]
    %s234 = scalar_lea.vmem [#allocation1], 560
    %235 = vst [vmem:[%s234] sm:%s3] %v233
    %s236 = scalar_lea.vmem %s0, 138
    %v237 = vld [vmem:[%s236] sm:%s3]
    %s238 = scalar_lea.vmem [#allocation1], 552
    %239 = vst [vmem:[%s238] sm:%s3] %v237
    %s240 = scalar_lea.vmem %s0, 136
    %v241 = vld [vmem:[%s240] sm:%s3]
    %s242 = scalar_lea.vmem [#allocation1], 544
    %243 = vst [vmem:[%s242] sm:%s3] %v241
    %s244 = scalar_lea.vmem %s0, 134
    %v245 = vld [vmem:[%s244] sm:%s3]
    %s246 = scalar_lea.vmem [#allocation1], 536
    %247 = vst [vmem:[%s246] sm:%s3] %v245
    %s248 = scalar_lea.vmem %s0, 132
    %v249 = vld [vmem:[%s248] sm:%s3]
    %s250 = scalar_lea.vmem [#allocation1], 528
    %251 = vst [vmem:[%s250] sm:%s3] %v249
    %s252 = scalar_lea.vmem %s0, 130
    %v253 = vld [vmem:[%s252] sm:%s3]
    %s254 = scalar_lea.vmem [#allocation1], 520
    %255 = vst [vmem:[%s254] sm:%s3] %v253
    %s256 = scalar_lea.vmem %s0, 128
    %v257 = vld [vmem:[%s256] sm:%s3]
    %s258 = scalar_lea.vmem [#allocation1], 512
    %259 = vst [vmem:[%s258] sm:%s3] %v257
    %s260 = scalar_lea.vmem %s0, 126
    %v261 = vld [vmem:[%s260] sm:%s3]
    %s262 = scalar_lea.vmem [#allocation1], 504
    %263 = vst [vmem:[%s262] sm:%s3] %v261
    %s264 = scalar_lea.vmem %s0, 124
    %v265 = vld [vmem:[%s264] sm:%s3]
    %s266 = scalar_lea.vmem [#allocation1], 496
    %267 = vst [vmem:[%s266] sm:%s3] %v265
    %s268 = scalar_lea.vmem %s0, 122
    %v269 = vld [vmem:[%s268] sm:%s3]
    %s270 = scalar_lea.vmem [#allocation1], 488
    %271 = vst [vmem:[%s270] sm:%s3] %v269
    %s272 = scalar_lea.vmem %s0, 120
    %v273 = vld [vmem:[%s272] sm:%s3]
    %s274 = scalar_lea.vmem [#allocation1], 480
    %275 = vst [vmem:[%s274] sm:%s3] %v273
    %s276 = scalar_lea.vmem %s0, 118
    %v277 = vld [vmem:[%s276] sm:%s3]
    %s278 = scalar_lea.vmem [#allocation1], 472
    %279 = vst [vmem:[%s278] sm:%s3] %v277
    %s280 = scalar_lea.vmem %s0, 116
    %v281 = vld [vmem:[%s280] sm:%s3]
    %s282 = scalar_lea.vmem [#allocation1], 464
    %283 = vst [vmem:[%s282] sm:%s3] %v281
    %s284 = scalar_lea.vmem %s0, 114
    %v285 = vld [vmem:[%s284] sm:%s3]
    %s286 = scalar_lea.vmem [#allocation1], 456
    %287 = vst [vmem:[%s286] sm:%s3] %v285
    %s288 = scalar_lea.vmem %s0, 112
    %v289 = vld [vmem:[%s288] sm:%s3]
    %s290 = scalar_lea.vmem [#allocation1], 448
    %291 = vst [vmem:[%s290] sm:%s3] %v289
    %s292 = scalar_lea.vmem %s0, 110
    %v293 = vld [vmem:[%s292] sm:%s3]
    %s294 = scalar_lea.vmem [#allocation1], 440
    %295 = vst [vmem:[%s294] sm:%s3] %v293
    %s296 = scalar_lea.vmem %s0, 108
    %v297 = vld [vmem:[%s296] sm:%s3]
    %s298 = scalar_lea.vmem [#allocation1], 432
    %299 = vst [vmem:[%s298] sm:%s3] %v297
    %s300 = scalar_lea.vmem %s0, 106
    %v301 = vld [vmem:[%s300] sm:%s3]
    %s302 = scalar_lea.vmem [#allocation1], 424
    %303 = vst [vmem:[%s302] sm:%s3] %v301
    %s304 = scalar_lea.vmem %s0, 104
    %v305 = vld [vmem:[%s304] sm:%s3]
    %s306 = scalar_lea.vmem [#allocation1], 416
    %307 = vst [vmem:[%s306] sm:%s3] %v305
    %s308 = scalar_lea.vmem %s0, 102
    %v309 = vld [vmem:[%s308] sm:%s3]
    %s310 = scalar_lea.vmem [#allocation1], 408
    %311 = vst [vmem:[%s310] sm:%s3] %v309
    %s312 = scalar_lea.vmem %s0, 100
    %v313 = vld [vmem:[%s312] sm:%s3]
    %s314 = scalar_lea.vmem [#allocation1], 400
    %315 = vst [vmem:[%s314] sm:%s3] %v313
    %s316 = scalar_lea.vmem %s0, 98
    %v317 = vld [vmem:[%s316] sm:%s3]
    %s318 = scalar_lea.vmem [#allocation1], 392
    %319 = vst [vmem:[%s318] sm:%s3] %v317
    %s320 = scalar_lea.vmem %s0, 96
    %v321 = vld [vmem:[%s320] sm:%s3]
    %s322 = scalar_lea.vmem [#allocation1], 384
    %323 = vst [vmem:[%s322] sm:%s3] %v321
    %s324 = scalar_lea.vmem %s0, 94
    %v325 = vld [vmem:[%s324] sm:%s3]
    %s326 = scalar_lea.vmem [#allocation1], 376
    %327 = vst [vmem:[%s326] sm:%s3] %v325
    %s328 = scalar_lea.vmem %s0, 92
    %v329 = vld [vmem:[%s328] sm:%s3]
    %s330 = scalar_lea.vmem [#allocation1], 368
    %331 = vst [vmem:[%s330] sm:%s3] %v329
    %s332 = scalar_lea.vmem %s0, 90
    %v333 = vld [vmem:[%s332] sm:%s3]
    %s334 = scalar_lea.vmem [#allocation1], 360
    %335 = vst [vmem:[%s334] sm:%s3] %v333
    %s336 = scalar_lea.vmem %s0, 88
    %v337 = vld [vmem:[%s336] sm:%s3]
    %s338 = scalar_lea.vmem [#allocation1], 352
    %339 = vst [vmem:[%s338] sm:%s3] %v337
    %s340 = scalar_lea.vmem %s0, 86
    %v341 = vld [vmem:[%s340] sm:%s3]
    %s342 = scalar_lea.vmem [#allocation1], 344
    %343 = vst [vmem:[%s342] sm:%s3] %v341
    %s344 = scalar_lea.vmem %s0, 84
    %v345 = vld [vmem:[%s344] sm:%s3]
    %s346 = scalar_lea.vmem [#allocation1], 336
    %347 = vst [vmem:[%s346] sm:%s3] %v345
    %s348 = scalar_lea.vmem %s0, 82
    %v349 = vld [vmem:[%s348] sm:%s3]
    %s350 = scalar_lea.vmem [#allocation1], 328
    %351 = vst [vmem:[%s350] sm:%s3] %v349
    %s352 = scalar_lea.vmem %s0, 80
    %v353 = vld [vmem:[%s352] sm:%s3]
    %s354 = scalar_lea.vmem [#allocation1], 320
    %355 = vst [vmem:[%s354] sm:%s3] %v353
    %s356 = scalar_lea.vmem %s0, 78
    %v357 = vld [vmem:[%s356] sm:%s3]
    %s358 = scalar_lea.vmem [#allocation1], 312
    %359 = vst [vmem:[%s358] sm:%s3] %v357
    %s360 = scalar_lea.vmem %s0, 76
    %v361 = vld [vmem:[%s360] sm:%s3]
    %s362 = scalar_lea.vmem [#allocation1], 304
    %363 = vst [vmem:[%s362] sm:%s3] %v361
    %s364 = scalar_lea.vmem %s0, 74
    %v365 = vld [vmem:[%s364] sm:%s3]
    %s366 = scalar_lea.vmem [#allocation1], 296
    %367 = vst [vmem:[%s366] sm:%s3] %v365
    %s368 = scalar_lea.vmem %s0, 72
    %v369 = vld [vmem:[%s368] sm:%s3]
    %s370 = scalar_lea.vmem [#allocation1], 288
    %371 = vst [vmem:[%s370] sm:%s3] %v369
    %s372 = scalar_lea.vmem %s0, 70
    %v373 = vld [vmem:[%s372] sm:%s3]
    %s374 = scalar_lea.vmem [#allocation1], 280
    %375 = vst [vmem:[%s374] sm:%s3] %v373
    %s376 = scalar_lea.vmem %s0, 68
    %v377 = vld [vmem:[%s376] sm:%s3]
    %s378 = scalar_lea.vmem [#allocation1], 272
    %379 = vst [vmem:[%s378] sm:%s3] %v377
    %s380 = scalar_lea.vmem %s0, 66
    %v381 = vld [vmem:[%s380] sm:%s3]
    %s382 = scalar_lea.vmem [#allocation1], 264
    %383 = vst [vmem:[%s382] sm:%s3] %v381
    %s384 = scalar_lea.vmem %s0, 64
    %v385 = vld [vmem:[%s384] sm:%s3]
    %s386 = scalar_lea.vmem [#allocation1], 256
    %387 = vst [vmem:[%s386] sm:%s3] %v385
    %s388 = scalar_lea.vmem %s0, 62
    %v389 = vld [vmem:[%s388] sm:%s3]
    %s390 = scalar_lea.vmem [#allocation1], 248
    %391 = vst [vmem:[%s390] sm:%s3] %v389
    %s392 = scalar_lea.vmem %s0, 60
    %v393 = vld [vmem:[%s392] sm:%s3]
    %s394 = scalar_lea.vmem [#allocation1], 240
    %395 = vst [vmem:[%s394] sm:%s3] %v393
    %s396 = scalar_lea.vmem %s0, 58
    %v397 = vld [vmem:[%s396] sm:%s3]
    %s398 = scalar_lea.vmem [#allocation1], 232
    %399 = vst [vmem:[%s398] sm:%s3] %v397
    %s400 = scalar_lea.vmem %s0, 56
    %v401 = vld [vmem:[%s400] sm:%s3]
    %s402 = scalar_lea.vmem [#allocation1], 224
    %403 = vst [vmem:[%s402] sm:%s3] %v401
    %s404 = scalar_lea.vmem %s0, 54
    %v405 = vld [vmem:[%s404] sm:%s3]
    %s406 = scalar_lea.vmem [#allocation1], 216
    %407 = vst [vmem:[%s406] sm:%s3] %v405
    %s408 = scalar_lea.vmem %s0, 52
    %v409 = vld [vmem:[%s408] sm:%s3]
    %s410 = scalar_lea.vmem [#allocation1], 208
    %411 = vst [vmem:[%s410] sm:%s3] %v409
    %s412 = scalar_lea.vmem %s0, 50
    %v413 = vld [vmem:[%s412] sm:%s3]
    %s414 = scalar_lea.vmem [#allocation1], 200
    %415 = vst [vmem:[%s414] sm:%s3] %v413
    %s416 = scalar_lea.vmem %s0, 48
    %v417 = vld [vmem:[%s416] sm:%s3]
    %s418 = scalar_lea.vmem [#allocation1], 192
    %419 = vst [vmem:[%s418] sm:%s3] %v417
    %s420 = scalar_lea.vmem %s0, 46
    %v421 = vld [vmem:[%s420] sm:%s3]
    %s422 = scalar_lea.vmem [#allocation1], 184
    %423 = vst [vmem:[%s422] sm:%s3] %v421
    %s424 = scalar_lea.vmem %s0, 44
    %v425 = vld [vmem:[%s424] sm:%s3]
    %s426 = scalar_lea.vmem [#allocation1], 176
    %427 = vst [vmem:[%s426] sm:%s3] %v425
    %s428 = scalar_lea.vmem %s0, 42
    %v429 = vld [vmem:[%s428] sm:%s3]
    %s430 = scalar_lea.vmem [#allocation1], 168
    %431 = vst [vmem:[%s430] sm:%s3] %v429
    %s432 = scalar_lea.vmem %s0, 40
    %v433 = vld [vmem:[%s432] sm:%s3]
    %s434 = scalar_lea.vmem [#allocation1], 160
    %435 = vst [vmem:[%s434] sm:%s3] %v433
    %s436 = scalar_lea.vmem %s0, 38
    %v437 = vld [vmem:[%s436] sm:%s3]
    %s438 = scalar_lea.vmem [#allocation1], 152
    %439 = vst [vmem:[%s438] sm:%s3] %v437
    %s440 = scalar_lea.vmem %s0, 36
    %v441 = vld [vmem:[%s440] sm:%s3]
    %s442 = scalar_lea.vmem [#allocation1], 144
    %443 = vst [vmem:[%s442] sm:%s3] %v441
    %s444 = scalar_lea.vmem %s0, 34
    %v445 = vld [vmem:[%s444] sm:%s3]
    %s446 = scalar_lea.vmem [#allocation1], 136
    %447 = vst [vmem:[%s446] sm:%s3] %v445
    %s448 = scalar_lea.vmem %s0, 32
    %v449 = vld [vmem:[%s448] sm:%s3]
    %s450 = scalar_lea.vmem [#allocation1], 128
    %451 = vst [vmem:[%s450] sm:%s3] %v449
    %s452 = scalar_lea.vmem %s0, 30
    %v453 = vld [vmem:[%s452] sm:%s3]
    %s454 = scalar_lea.vmem [#allocation1], 120
    %455 = vst [vmem:[%s454] sm:%s3] %v453
    %s456 = scalar_lea.vmem %s0, 28
    %v457 = vld [vmem:[%s456] sm:%s3]
    %s458 = scalar_lea.vmem [#allocation1], 112
    %459 = vst [vmem:[%s458] sm:%s3] %v457
    %s460 = scalar_lea.vmem %s0, 26
    %v461 = vld [vmem:[%s460] sm:%s3]
    %s462 = scalar_lea.vmem [#allocation1], 104
    %463 = vst [vmem:[%s462] sm:%s3] %v461
    %s464 = scalar_lea.vmem %s0, 24
    %v465 = vld [vmem:[%s464] sm:%s3]
    %s466 = scalar_lea.vmem [#allocation1], 96
    %467 = vst [vmem:[%s466] sm:%s3] %v465
    %s468 = scalar_lea.vmem %s0, 22
    %v469 = vld [vmem:[%s468] sm:%s3]
    %s470 = scalar_lea.vmem [#allocation1], 88
    %471 = vst [vmem:[%s470] sm:%s3] %v469
    %s472 = scalar_lea.vmem %s0, 20
    %v473 = vld [vmem:[%s472] sm:%s3]
    %s474 = scalar_lea.vmem [#allocation1], 80
    %475 = vst [vmem:[%s474] sm:%s3] %v473
    %s476 = scalar_lea.vmem %s0, 18
    %v477 = vld [vmem:[%s476] sm:%s3]
    %s478 = scalar_lea.vmem [#allocation1], 72
    %479 = vst [vmem:[%s478] sm:%s3] %v477
    %s480 = scalar_lea.vmem %s0, 16
    %v481 = vld [vmem:[%s480] sm:%s3]
    %s482 = scalar_lea.vmem [#allocation1], 64
    %483 = vst [vmem:[%s482] sm:%s3] %v481
    %s484 = scalar_lea.vmem %s0, 14
    %v485 = vld [vmem:[%s484] sm:%s3]
    %s486 = scalar_lea.vmem [#allocation1], 56
    %487 = vst [vmem:[%s486] sm:%s3] %v485
    %s488 = scalar_lea.vmem %s0, 12
    %v489 = vld [vmem:[%s488] sm:%s3]
    %s490 = scalar_lea.vmem [#allocation1], 48
    %491 = vst [vmem:[%s490] sm:%s3] %v489
    %s492 = scalar_lea.vmem %s0, 10
    %v493 = vld [vmem:[%s492] sm:%s3]
    %s494 = scalar_lea.vmem [#allocation1], 40
    %495 = vst [vmem:[%s494] sm:%s3] %v493
    %s496 = scalar_lea.vmem %s0, 8
    %v497 = vld [vmem:[%s496] sm:%s3]
    %s498 = scalar_lea.vmem [#allocation1], 32
    %499 = vst [vmem:[%s498] sm:%s3] %v497
    %s500 = scalar_lea.vmem %s0, 6
    %v501 = vld [vmem:[%s500] sm:%s3]
    %s502 = scalar_lea.vmem [#allocation1], 24
    %503 = vst [vmem:[%s502] sm:%s3] %v501
    %s504 = scalar_lea.vmem %s0, 4
    %v505 = vld [vmem:[%s504] sm:%s3]
    %s506 = scalar_lea.vmem [#allocation1], 16
    %507 = vst [vmem:[%s506] sm:%s3] %v505
    %s508 = scalar_lea.vmem %s0, 2
    %v509 = vld [vmem:[%s508] sm:%s3]
    %s510 = scalar_lea.vmem [#allocation1], 8
    %511 = vst [vmem:[%s510] sm:%s3] %v509
    %v512 = vld [vmem:[%s0] sm:%s3]
    %513 = vst [vmem:[#allocation1] sm:%s3] %v512
    %v514 = vld [vmem:[#allocation1] sm:$0x1]
    %s515 = scalar_lea.vmem [#allocation1], 63
    %v516 = vld [vmem:[%s515] sm:$0x2]
    %vm517 = vcmask 1041409
    %v518 = vsel %vm517, %v516, %v514
    %s519 = scalar_lea.vmem [#allocation1], 126
    %v520 = vld [vmem:[%s519] sm:$0x4]
    %vm521 = vcmask 1042434
    %v522 = vsel %vm521, %v520, %v518
    %s523 = scalar_lea.vmem [#allocation1], 189
    %v524 = vld [vmem:[%s523] sm:$0x8]
    %vm525 = vcmask 1043459
    %v526 = vsel %vm525, %v524, %v522
    %s527 = scalar_lea.vmem [#allocation1], 252
    %v528 = vld [vmem:[%s527] sm:$0x10]
    %vm529 = vcmask 1044484
    %v530 = vsel %vm529, %v528, %v526
    %s531 = scalar_lea.vmem [#allocation1], 315
    %v532 = vld [vmem:[%s531] sm:$0x20]
    %vm533 = vcmask 1045509
    %v534 = vsel %vm533, %v532, %v530
    %s535 = scalar_lea.vmem [#allocation1], 378
    %v536 = vld [vmem:[%s535] sm:$0x40]
    %vm537 = vcmask 1046534
    %v538 = vsel %vm537, %v536, %v534
    %s539 = scalar_lea.vmem [#allocation1], 441
    %v540 = vld [vmem:[%s539] sm:$0x80]
    %vm541 = vcmask 1047559
    %v542 = vsel %vm541, %v540, %v538
    %vm543 = vcmask 64512
    %544 = vst.msk [vmem:[#allocation0] ss:$8 sm:$0x3] %vm543, %v542
    %s545 = scalar_lea.vmem [#allocation0], 4294967281
    %546 = vst.msk [vmem:[%s545] ss:$8 sm:$0xc] %vm543, %v542
    %s547 = scalar_lea.vmem [#allocation0], 4294967266
    %548 = vst.msk [vmem:[%s547] ss:$8 sm:$0x30] %vm543, %v542
    %s549 = scalar_lea.vmem [#allocation0], 4294967251
    %550 = vst.msk [vmem:[%s549] ss:$8 sm:$0xc0] %vm543, %v542
    %s551 = scalar_lea.vmem [#allocation1], 512
    %v552 = vld [vmem:[%s551] sm:$0x1]
    %s553 = scalar_lea.vmem [#allocation1], 575
    %v554 = vld [vmem:[%s553] sm:$0x2]
    %vm555 = vcmask 1041409
    %v556 = vsel %vm555, %v554, %v552
    %s557 = scalar_lea.vmem [#allocation1], 638
    %v558 = vld [vmem:[%s557] sm:$0x4]
    %vm559 = vcmask 1042434
    %v560 = vsel %vm559, %v558, %v556
    %s561 = scalar_lea.vmem [#allocation1], 701
    %v562 = vld [vmem:[%s561] sm:$0x8]
    %vm563 = vcmask 1043459
    %v564 = vsel %vm563, %v562, %v560
    %s565 = scalar_lea.vmem [#allocation1], 764
    %v566 = vld [vmem:[%s565] sm:$0x10]
    %vm567 = vcmask 1044484
    %v568 = vsel %vm567, %v566, %v564
    %s569 = scalar_lea.vmem [#allocation1], 827
    %v570 = vld [vmem:[%s569] sm:$0x20]
    %vm571 = vcmask 1045509
    %v572 = vsel %vm571, %v570, %v568
    %s573 = scalar_lea.vmem [#allocation1], 890
    %v574 = vld [vmem:[%s573] sm:$0x40]
    %vm575 = vcmask 1046534
    %v576 = vsel %vm575, %v574, %v572
    %s577 = scalar_lea.vmem [#allocation1], 953
    %v578 = vld [vmem:[%s577] sm:$0x80]
    %vm579 = vcmask 1047559
    %v580 = vsel %vm579, %v578, %v576
    %vm581 = vcmask 64512
    %s582 = scalar_lea.vmem [#allocation0], 16
    %583 = vst.msk [vmem:[%s582] ss:$8 sm:$0x3] %vm581, %v580
    %s584 = scalar_lea.vmem [#allocation0], 1
    %585 = vst.msk [vmem:[%s584] ss:$8 sm:$0xc] %vm581, %v580
    %s586 = scalar_lea.vmem [#allocation0], 4294967282
    %587 = vst.msk [vmem:[%s586] ss:$8 sm:$0x30] %vm581, %v580
    %s588 = scalar_lea.vmem [#allocation0], 4294967267
    %589 = vst.msk [vmem:[%s588] ss:$8 sm:$0xc0] %vm581, %v580
    %s590 = scalar_lea.vmem [#allocation1], 57
    %v591 = vld [vmem:[%s590] sm:$0x1]
    %s592 = scalar_lea.vmem [#allocation1], 184
    %v593 = vld [vmem:[%s592] sm:$0x2]
    %vm594 = vcmask 1041409
    %v595 = vsel %vm594, %v593, %v591
    %s596 = scalar_lea.vmem [#allocation1], 311
    %v597 = vld [vmem:[%s596] sm:$0x4]
    %vm598 = vcmask 1042434
    %v599 = vsel %vm598, %v597, %v595
    %s600 = scalar_lea.vmem [#allocation1], 438
    %v601 = vld [vmem:[%s600] sm:$0x8]
    %vm602 = vcmask 1043459
    %v603 = vsel %vm602, %v601, %v599
    %s604 = scalar_lea.vmem [#allocation1], 117
    %v605 = vld [vmem:[%s604] sm:$0x10]
    %vm606 = vcmask 1044484
    %v607 = vsel %vm606, %v605, %v603
    %s608 = scalar_lea.vmem [#allocation1], 244
    %v609 = vld [vmem:[%s608] sm:$0x20]
    %vm610 = vcmask 1045509
    %v611 = vsel %vm610, %v609, %v607
    %s612 = scalar_lea.vmem [#allocation1], 371
    %v613 = vld [vmem:[%s612] sm:$0x40]
    %vm614 = vcmask 1046534
    %v615 = vsel %vm614, %v613, %v611
    %s616 = scalar_lea.vmem [#allocation1], 498
    %v617 = vld [vmem:[%s616] sm:$0x80]
    %vm618 = vcmask 1047559
    %v619 = vsel %vm618, %v617, %v615
    %620 = vrot.lane.b32.xlu0 %v619, 120
    %v621 = vpop.permute.xlu0 %620
    %vm622 = vcmask 1048512
    %623 = vst.msk [vmem:[#allocation0] sm:$0xf] %vm622, %v621
    %s624 = scalar_lea.vmem [#allocation0], 4
    %625 = vst.msk [vmem:[%s624] sm:$0xf0] %vm622, %v621
    %s626 = scalar_lea.vmem [#allocation1], 569
    %v627 = vld [vmem:[%s626] sm:$0x1]
    %s628 = scalar_lea.vmem [#allocation1], 696
    %v629 = vld [vmem:[%s628] sm:$0x2]
    %vm630 = vcmask 1041409
    %v631 = vsel %vm630, %v629, %v627
    %s632 = scalar_lea.vmem [#allocation1], 823
    %v633 = vld [vmem:[%s632] sm:$0x4]
    %vm634 = vcmask 1042434
    %v635 = vsel %vm634, %v633, %v631
    %s636 = scalar_lea.vmem [#allocation1], 950
    %v637 = vld [vmem:[%s636] sm:$0x8]
    %vm638 = vcmask 1043459
    %v639 = vsel %vm638, %v637, %v635
    %s640 = scalar_lea.vmem [#allocation1], 629
    %v641 = vld [vmem:[%s640] sm:$0x10]
    %vm642 = vcmask 1044484
    %v643 = vsel %vm642, %v641, %v639
    %s644 = scalar_lea.vmem [#allocation1], 756
    %v645 = vld [vmem:[%s644] sm:$0x20]
    %vm646 = vcmask 1045509
    %v647 = vsel %vm646, %v645, %v643
    %s648 = scalar_lea.vmem [#allocation1], 883
    %v649 = vld [vmem:[%s648] sm:$0x40]
    %vm650 = vcmask 1046534
    %v651 = vsel %vm650, %v649, %v647
    %s652 = scalar_lea.vmem [#allocation1], 1010
    %v653 = vld [vmem:[%s652] sm:$0x80]
    %vm654 = vcmask 1047559
    %v655 = vsel %vm654, %v653, %v651
    %656 = vrot.lane.b32.xlu0 %v655, 120
    %v657 = vpop.permute.xlu0 %656
    %vm658 = vcmask 1048512
    %s659 = scalar_lea.vmem [#allocation0], 16
    %660 = vst.msk [vmem:[%s659] sm:$0xf] %vm658, %v657
    %s661 = scalar_lea.vmem [#allocation0], 20
    %662 = vst.msk [vmem:[%s661] sm:$0xf0] %vm658, %v657
    %s663 = scalar_lea.vmem [#allocation1], 56
    %v664 = vld [vmem:[%s663] sm:$0x1]
    %s665 = scalar_lea.vmem [#allocation1], 183
    %v666 = vld [vmem:[%s665] sm:$0x2]
    %vm667 = vcmask 1041409
    %v668 = vsel %vm667, %v666, %v664
    %s669 = scalar_lea.vmem [#allocation1], 310
    %v670 = vld [vmem:[%s669] sm:$0x4]
    %vm671 = vcmask 1042434
    %v672 = vsel %vm671, %v670, %v668
    %s673 = scalar_lea.vmem [#allocation1], 437
    %v674 = vld [vmem:[%s673] sm:$0x8]
    %vm675 = vcmask 1043459
    %v676 = vsel %vm675, %v674, %v672
    %s677 = scalar_lea.vmem [#allocation1], 116
    %v678 = vld [vmem:[%s677] sm:$0x10]
    %vm679 = vcmask 1044484
    %v680 = vsel %vm679, %v678, %v676
    %s681 = scalar_lea.vmem [#allocation1], 243
    %v682 = vld [vmem:[%s681] sm:$0x20]
    %vm683 = vcmask 1045509
    %v684 = vsel %vm683, %v682, %v680
    %s685 = scalar_lea.vmem [#allocation1], 370
    %v686 = vld [vmem:[%s685] sm:$0x40]
    %vm687 = vcmask 1046534
    %v688 = vsel %vm687, %v686, %v684
    %s689 = scalar_lea.vmem [#allocation1], 497
    %v690 = vld [vmem:[%s689] sm:$0x80]
    %vm691 = vcmask 1047559
    %v692 = vsel %vm691, %v690, %v688
    %693 = vrot.lane.b32.xlu0 %v692, 112
    %v694 = vpop.permute.xlu0 %693
    %vm695 = vcmask 982912
    %696 = vst.msk [vmem:[#allocation0] sm:$0xf] %vm695, %v694
    %s697 = scalar_lea.vmem [#allocation0], 4
    %698 = vst.msk [vmem:[%s697] sm:$0xf0] %vm695, %v694
    %s699 = scalar_lea.vmem [#allocation1], 568
    %v700 = vld [vmem:[%s699] sm:$0x1]
    %s701 = scalar_lea.vmem [#allocation1], 695
    %v702 = vld [vmem:[%s701] sm:$0x2]
    %vm703 = vcmask 1041409
    %v704 = vsel %vm703, %v702, %v700
    %s705 = scalar_lea.vmem [#allocation1], 822
    %v706 = vld [vmem:[%s705] sm:$0x4]
    %vm707 = vcmask 1042434
    %v708 = vsel %vm707, %v706, %v704
    %s709 = scalar_lea.vmem [#allocation1], 949
    %v710 = vld [vmem:[%s709] sm:$0x8]
    %vm711 = vcmask 1043459
    %v712 = vsel %vm711, %v710, %v708
    %s713 = scalar_lea.vmem [#allocation1], 628
    %v714 = vld [vmem:[%s713] sm:$0x10]
    %vm715 = vcmask 1044484
    %v716 = vsel %vm715, %v714, %v712
    %s717 = scalar_lea.vmem [#allocation1], 755
    %v718 = vld [vmem:[%s717] sm:$0x20]
    %vm719 = vcmask 1045509
    %v720 = vsel %vm719, %v718, %v716
    %s721 = scalar_lea.vmem [#allocation1], 882
    %v722 = vld [vmem:[%s721] sm:$0x40]
    %vm723 = vcmask 1046534
    %v724 = vsel %vm723, %v722, %v720
    %s725 = scalar_lea.vmem [#allocation1], 1009
    %v726 = vld [vmem:[%s725] sm:$0x80]
    %vm727 = vcmask 1047559
    %v728 = vsel %vm727, %v726, %v724
    %729 = vrot.lane.b32.xlu0 %v728, 112
    %v730 = vpop.permute.xlu0 %729
    %vm731 = vcmask 982912
    %s732 = scalar_lea.vmem [#allocation0], 16
    %733 = vst.msk [vmem:[%s732] sm:$0xf] %vm731, %v730
    %s734 = scalar_lea.vmem [#allocation0], 20
    %735 = vst.msk [vmem:[%s734] sm:$0xf0] %vm731, %v730
    %s736 = scalar_lea.vmem [#allocation1], 49
    %v737 = vld [vmem:[%s736] sm:$0x1]
    %s738 = scalar_lea.vmem [#allocation1], 176
    %v739 = vld [vmem:[%s738] sm:$0x2]
    %vm740 = vcmask 1041409
    %v741 = vsel %vm740, %v739, %v737
    %s742 = scalar_lea.vmem [#allocation1], 303
    %v743 = vld [vmem:[%s742] sm:$0x4]
    %vm744 = vcmask 1042434
    %v745 = vsel %vm744, %v743, %v741
    %s746 = scalar_lea.vmem [#allocation1], 430
    %v747 = vld [vmem:[%s746] sm:$0x8]
    %vm748 = vcmask 1043459
    %v749 = vsel %vm748, %v747, %v745
    %s750 = scalar_lea.vmem [#allocation1], 109
    %v751 = vld [vmem:[%s750] sm:$0x10]
    %vm752 = vcmask 1044484
    %v753 = vsel %vm752, %v751, %v749
    %s754 = scalar_lea.vmem [#allocation1], 236
    %v755 = vld [vmem:[%s754] sm:$0x20]
    %vm756 = vcmask 1045509
    %v757 = vsel %vm756, %v755, %v753
    %s758 = scalar_lea.vmem [#allocation1], 363
    %v759 = vld [vmem:[%s758] sm:$0x40]
    %vm760 = vcmask 1046534
    %v761 = vsel %vm760, %v759, %v757
    %s762 = scalar_lea.vmem [#allocation1], 490
    %v763 = vld [vmem:[%s762] sm:$0x80]
    %vm764 = vcmask 1047559
    %v765 = vsel %vm764, %v763, %v761
    %766 = vrot.lane.b32.xlu0 %v765, 104
    %v767 = vpop.permute.xlu0 %766
    %vm768 = vcmask 917312
    %769 = vst.msk [vmem:[#allocation0] sm:$0xf] %vm768, %v767
    %s770 = scalar_lea.vmem [#allocation0], 4
    %771 = vst.msk [vmem:[%s770] sm:$0xf0] %vm768, %v767
    %s772 = scalar_lea.vmem [#allocation1], 561
    %v773 = vld [vmem:[%s772] sm:$0x1]
    %s774 = scalar_lea.vmem [#allocation1], 688
    %v775 = vld [vmem:[%s774] sm:$0x2]
    %vm776 = vcmask 1041409
    %v777 = vsel %vm776, %v775, %v773
    %s778 = scalar_lea.vmem [#allocation1], 815
    %v779 = vld [vmem:[%s778] sm:$0x4]
    %vm780 = vcmask 1042434
    %v781 = vsel %vm780, %v779, %v777
    %s782 = scalar_lea.vmem [#allocation1], 942
    %v783 = vld [vmem:[%s782] sm:$0x8]
    %vm784 = vcmask 1043459
    %v785 = vsel %vm784, %v783, %v781
    %s786 = scalar_lea.vmem [#allocation1], 621
    %v787 = vld [vmem:[%s786] sm:$0x10]
    %vm788 = vcmask 1044484
    %v789 = vsel %vm788, %v787, %v785
    %s790 = scalar_lea.vmem [#allocation1], 748
    %v791 = vld [vmem:[%s790] sm:$0x20]
    %vm792 = vcmask 1045509
    %v793 = vsel %vm792, %v791, %v789
    %s794 = scalar_lea.vmem [#allocation1], 875
    %v795 = vld [vmem:[%s794] sm:$0x40]
    %vm796 = vcmask 1046534
    %v797 = vsel %vm796, %v795, %v793
    %s798 = scalar_lea.vmem [#allocation1], 1002
    %v799 = vld [vmem:[%s798] sm:$0x80]
    %vm800 = vcmask 1047559
    %v801 = vsel %vm800, %v799, %v797
    %802 = vrot.lane.b32.xlu0 %v801, 104
    %v803 = vpop.permute.xlu0 %802
    %vm804 = vcmask 917312
    %s805 = scalar_lea.vmem [#allocation0], 16
    %806 = vst.msk [vmem:[%s805] sm:$0xf] %vm804, %v803
    %s807 = scalar_lea.vmem [#allocation0], 20
    %808 = vst.msk [vmem:[%s807] sm:$0xf0] %vm804, %v803
    %s809 = scalar_lea.vmem [#allocation1], 48
    %v810 = vld [vmem:[%s809] sm:$0x1]
    %s811 = scalar_lea.vmem [#allocation1], 175
    %v812 = vld [vmem:[%s811] sm:$0x2]
    %vm813 = vcmask 1041409
    %v814 = vsel %vm813, %v812, %v810
    %s815 = scalar_lea.vmem [#allocation1], 302
    %v816 = vld [vmem:[%s815] sm:$0x4]
    %vm817 = vcmask 1042434
    %v818 = vsel %vm817, %v816, %v814
    %s819 = scalar_lea.vmem [#allocation1], 429
    %v820 = vld [vmem:[%s819] sm:$0x8]
    %vm821 = vcmask 1043459
    %v822 = vsel %vm821, %v820, %v818
    %s823 = scalar_lea.vmem [#allocation1], 108
    %v824 = vld [vmem:[%s823] sm:$0x10]
    %vm825 = vcmask 1044484
    %v826 = vsel %vm825, %v824, %v822
    %s827 = scalar_lea.vmem [#allocation1], 235
    %v828 = vld [vmem:[%s827] sm:$0x20]
    %vm829 = vcmask 1045509
    %v830 = vsel %vm829, %v828, %v826
    %s831 = scalar_lea.vmem [#allocation1], 362
    %v832 = vld [vmem:[%s831] sm:$0x40]
    %vm833 = vcmask 1046534
    %v834 = vsel %vm833, %v832, %v830
    %s835 = scalar_lea.vmem [#allocation1], 489
    %v836 = vld [vmem:[%s835] sm:$0x80]
    %vm837 = vcmask 1047559
    %v838 = vsel %vm837, %v836, %v834
    %839 = vrot.lane.b32.xlu0 %v838, 96
    %v840 = vpop.permute.xlu0 %839
    %vm841 = vcmask 851712
    %842 = vst.msk [vmem:[#allocation0] sm:$0xf] %vm841, %v840
    %s843 = scalar_lea.vmem [#allocation0], 4
    %844 = vst.msk [vmem:[%s843] sm:$0xf0] %vm841, %v840
    %s845 = scalar_lea.vmem [#allocation1], 560
    %v846 = vld [vmem:[%s845] sm:$0x1]
    %s847 = scalar_lea.vmem [#allocation1], 687
    %v848 = vld [vmem:[%s847] sm:$0x2]
    %vm849 = vcmask 1041409
    %v850 = vsel %vm849, %v848, %v846
    %s851 = scalar_lea.vmem [#allocation1], 814
    %v852 = vld [vmem:[%s851] sm:$0x4]
    %vm853 = vcmask 1042434
    %v854 = vsel %vm853, %v852, %v850
    %s855 = scalar_lea.vmem [#allocation1], 941
    %v856 = vld [vmem:[%s855] sm:$0x8]
    %vm857 = vcmask 1043459
    %v858 = vsel %vm857, %v856, %v854
    %s859 = scalar_lea.vmem [#allocation1], 620
    %v860 = vld [vmem:[%s859] sm:$0x10]
    %vm861 = vcmask 1044484
    %v862 = vsel %vm861, %v860, %v858
    %s863 = scalar_lea.vmem [#allocation1], 747
    %v864 = vld [vmem:[%s863] sm:$0x20]
    %vm865 = vcmask 1045509
    %v866 = vsel %vm865, %v864, %v862
    %s867 = scalar_lea.vmem [#allocation1], 874
    %v868 = vld [vmem:[%s867] sm:$0x40]
    %vm869 = vcmask 1046534
    %v870 = vsel %vm869, %v868, %v866
    %s871 = scalar_lea.vmem [#allocation1], 1001
    %v872 = vld [vmem:[%s871] sm:$0x80]
    %vm873 = vcmask 1047559
    %v874 = vsel %vm873, %v872, %v870
    %875 = vrot.lane.b32.xlu0 %v874, 96
    %v876 = vpop.permute.xlu0 %875
    %vm877 = vcmask 851712
    %s878 = scalar_lea.vmem [#allocation0], 16
    %879 = vst.msk [vmem:[%s878] sm:$0xf] %vm877, %v876
    %s880 = scalar_lea.vmem [#allocation0], 20
    %881 = vst.msk [vmem:[%s880] sm:$0xf0] %vm877, %v876
    %s882 = scalar_lea.vmem [#allocation1], 41
    %v883 = vld [vmem:[%s882] sm:$0x1]
    %s884 = scalar_lea.vmem [#allocation1], 168
    %v885 = vld [vmem:[%s884] sm:$0x2]
    %vm886 = vcmask 1041409
    %v887 = vsel %vm886, %v885, %v883
    %s888 = scalar_lea.vmem [#allocation1], 295
    %v889 = vld [vmem:[%s888] sm:$0x4]
    %vm890 = vcmask 1042434
    %v891 = vsel %vm890, %v889, %v887
    %s892 = scalar_lea.vmem [#allocation1], 422
    %v893 = vld [vmem:[%s892] sm:$0x8]
    %vm894 = vcmask 1043459
    %v895 = vsel %vm894, %v893, %v891
    %s896 = scalar_lea.vmem [#allocation1], 101
    %v897 = vld [vmem:[%s896] sm:$0x10]
    %vm898 = vcmask 1044484
    %v899 = vsel %vm898, %v897, %v895
    %s900 = scalar_lea.vmem [#allocation1], 228
    %v901 = vld [vmem:[%s900] sm:$0x20]
    %vm902 = vcmask 1045509
    %v903 = vsel %vm902, %v901, %v899
    %s904 = scalar_lea.vmem [#allocation1], 355
    %v905 = vld [vmem:[%s904] sm:$0x40]
    %vm906 = vcmask 1046534
    %v907 = vsel %vm906, %v905, %v903
    %s908 = scalar_lea.vmem [#allocation1], 482
    %v909 = vld [vmem:[%s908] sm:$0x80]
    %vm910 = vcmask 1047559
    %v911 = vsel %vm910, %v909, %v907
    %912 = vrot.lane.b32.xlu0 %v911, 88
    %v913 = vpop.permute.xlu0 %912
    %vm914 = vcmask 786112
    %915 = vst.msk [vmem:[#allocation0] sm:$0xf] %vm914, %v913
    %s916 = scalar_lea.vmem [#allocation0], 4
    %917 = vst.msk [vmem:[%s916] sm:$0xf0] %vm914, %v913
    %s918 = scalar_lea.vmem [#allocation1], 553
    %v919 = vld [vmem:[%s918] sm:$0x1]
    %s920 = scalar_lea.vmem [#allocation1], 680
    %v921 = vld [vmem:[%s920] sm:$0x2]
    %vm922 = vcmask 1041409
    %v923 = vsel %vm922, %v921, %v919
    %s924 = scalar_lea.vmem [#allocation1], 807
    %v925 = vld [vmem:[%s924] sm:$0x4]
    %vm926 = vcmask 1042434
    %v927 = vsel %vm926, %v925, %v923
    %s928 = scalar_lea.vmem [#allocation1], 934
    %v929 = vld [vmem:[%s928] sm:$0x8]
    %vm930 = vcmask 1043459
    %v931 = vsel %vm930, %v929, %v927
    %s932 = scalar_lea.vmem [#allocation1], 613
    %v933 = vld [vmem:[%s932] sm:$0x10]
    %vm934 = vcmask 1044484
    %v935 = vsel %vm934, %v933, %v931
    %s936 = scalar_lea.vmem [#allocation1], 740
    %v937 = vld [vmem:[%s936] sm:$0x20]
    %vm938 = vcmask 1045509
    %v939 = vsel %vm938, %v937, %v935
    %s940 = scalar_lea.vmem [#allocation1], 867
    %v941 = vld [vmem:[%s940] sm:$0x40]
    %vm942 = vcmask 1046534
    %v943 = vsel %vm942, %v941, %v939
    %s944 = scalar_lea.vmem [#allocation1], 994
    %v945 = vld [vmem:[%s944] sm:$0x80]
    %vm946 = vcmask 1047559
    %v947 = vsel %vm946, %v945, %v943
    %948 = vrot.lane.b32.xlu0 %v947, 88
    %v949 = vpop.permute.xlu0 %948
    %vm950 = vcmask 786112
    %s951 = scalar_lea.vmem [#allocation0], 16
    %952 = vst.msk [vmem:[%s951] sm:$0xf] %vm950, %v949
    %s953 = scalar_lea.vmem [#allocation0], 20
    %954 = vst.msk [vmem:[%s953] sm:$0xf0] %vm950, %v949
    %s955 = scalar_lea.vmem [#allocation1], 40
    %v956 = vld [vmem:[%s955] sm:$0x1]
    %s957 = scalar_lea.vmem [#allocation1], 167
    %v958 = vld [vmem:[%s957] sm:$0x2]
    %vm959 = vcmask 1041409
    %v960 = vsel %vm959, %v958, %v956
    %s961 = scalar_lea.vmem [#allocation1], 294
    %v962 = vld [vmem:[%s961] sm:$0x4]
    %vm963 = vcmask 1042434
    %v964 = vsel %vm963, %v962, %v960
    %s965 = scalar_lea.vmem [#allocation1], 421
    %v966 = vld [vmem:[%s965] sm:$0x8]
    %vm967 = vcmask 1043459
    %v968 = vsel %vm967, %v966, %v964
    %s969 = scalar_lea.vmem [#allocation1], 100
    %v970 = vld [vmem:[%s969] sm:$0x10]
    %vm971 = vcmask 1044484
    %v972 = vsel %vm971, %v970, %v968
    %s973 = scalar_lea.vmem [#allocation1], 227
    %v974 = vld [vmem:[%s973] sm:$0x20]
    %vm975 = vcmask 1045509
    %v976 = vsel %vm975, %v974, %v972
    %s977 = scalar_lea.vmem [#allocation1], 354
    %v978 = vld [vmem:[%s977] sm:$0x40]
    %vm979 = vcmask 1046534
    %v980 = vsel %vm979, %v978, %v976
    %s981 = scalar_lea.vmem [#allocation1], 481
    %v982 = vld [vmem:[%s981] sm:$0x80]
    %vm983 = vcmask 1047559
    %v984 = vsel %vm983, %v982, %v980
    %985 = vrot.lane.b32.xlu0 %v984, 80
    %v986 = vpop.permute.xlu0 %985
    %vm987 = vcmask 720512
    %988 = vst.msk [vmem:[#allocation0] sm:$0xf] %vm987, %v986
    %s989 = scalar_lea.vmem [#allocation0], 4
    %990 = vst.msk [vmem:[%s989] sm:$0xf0] %vm987, %v986
    %s991 = scalar_lea.vmem [#allocation1], 552
    %v992 = vld [vmem:[%s991] sm:$0x1]
    %s993 = scalar_lea.vmem [#allocation1], 679
    %v994 = vld [vmem:[%s993] sm:$0x2]
    %vm995 = vcmask 1041409
    %v996 = vsel %vm995, %v994, %v992
    %s997 = scalar_lea.vmem [#allocation1], 806
    %v998 = vld [vmem:[%s997] sm:$0x4]
    %vm999 = vcmask 1042434
    %v1000 = vsel %vm999, %v998, %v996
    %s1001 = scalar_lea.vmem [#allocation1], 933
    %v1002 = vld [vmem:[%s1001] sm:$0x8]
    %vm1003 = vcmask 1043459
    %v1004 = vsel %vm1003, %v1002, %v1000
    %s1005 = scalar_lea.vmem [#allocation1], 612
    %v1006 = vld [vmem:[%s1005] sm:$0x10]
    %vm1007 = vcmask 1044484
    %v1008 = vsel %vm1007, %v1006, %v1004
    %s1009 = scalar_lea.vmem [#allocation1], 739
    %v1010 = vld [vmem:[%s1009] sm:$0x20]
    %vm1011 = vcmask 1045509
    %v1012 = vsel %vm1011, %v1010, %v1008
    %s1013 = scalar_lea.vmem [#allocation1], 866
    %v1014 = vld [vmem:[%s1013] sm:$0x40]
    %vm1015 = vcmask 1046534
    %v1016 = vsel %vm1015, %v1014, %v1012
    %s1017 = scalar_lea.vmem [#allocation1], 993
    %v1018 = vld [vmem:[%s1017] sm:$0x80]
    %vm1019 = vcmask 1047559
    %v1020 = vsel %vm1019, %v1018, %v1016
    %1021 = vrot.lane.b32.xlu0 %v1020, 80
    %v1022 = vpop.permute.xlu0 %1021
    %vm1023 = vcmask 720512
    %s1024 = scalar_lea.vmem [#allocation0], 16
    %1025 = vst.msk [vmem:[%s1024] sm:$0xf] %vm1023, %v1022
    %s1026 = scalar_lea.vmem [#allocation0], 20
    %1027 = vst.msk [vmem:[%s1026] sm:$0xf0] %vm1023, %v1022
    %s1028 = scalar_lea.vmem [#allocation1], 33
    %v1029 = vld [vmem:[%s1028] sm:$0x1]
    %s1030 = scalar_lea.vmem [#allocation1], 160
    %v1031 = vld [vmem:[%s1030] sm:$0x2]
    %vm1032 = vcmask 1041409
    %v1033 = vsel %vm1032, %v1031, %v1029
    %s1034 = scalar_lea.vmem [#allocation1], 287
    %v1035 = vld [vmem:[%s1034] sm:$0x4]
    %vm1036 = vcmask 1042434
    %v1037 = vsel %vm1036, %v1035, %v1033
    %s1038 = scalar_lea.vmem [#allocation1], 414
    %v1039 = vld [vmem:[%s1038] sm:$0x8]
    %vm1040 = vcmask 1043459
    %v1041 = vsel %vm1040, %v1039, %v1037
    %s1042 = scalar_lea.vmem [#allocation1], 93
    %v1043 = vld [vmem:[%s1042] sm:$0x10]
    %vm1044 = vcmask 1044484
    %v1045 = vsel %vm1044, %v1043, %v1041
    %s1046 = scalar_lea.vmem [#allocation1], 220
    %v1047 = vld [vmem:[%s1046] sm:$0x20]
    %vm1048 = vcmask 1045509
    %v1049 = vsel %vm1048, %v1047, %v1045
    %s1050 = scalar_lea.vmem [#allocation1], 347
    %v1051 = vld [vmem:[%s1050] sm:$0x40]
    %vm1052 = vcmask 1046534
    %v1053 = vsel %vm1052, %v1051, %v1049
    %s1054 = scalar_lea.vmem [#allocation1], 474
    %v1055 = vld [vmem:[%s1054] sm:$0x80]
    %vm1056 = vcmask 1047559
    %v1057 = vsel %vm1056, %v1055, %v1053
    %1058 = vrot.lane.b32.xlu0 %v1057, 72
    %v1059 = vpop.permute.xlu0 %1058
    %vm1060 = vcmask 654912
    %1061 = vst.msk [vmem:[#allocation0] sm:$0xf] %vm1060, %v1059
    %s1062 = scalar_lea.vmem [#allocation0], 4
    %1063 = vst.msk [vmem:[%s1062] sm:$0xf0] %vm1060, %v1059
    %s1064 = scalar_lea.vmem [#allocation1], 545
    %v1065 = vld [vmem:[%s1064] sm:$0x1]
    %s1066 = scalar_lea.vmem [#allocation1], 672
    %v1067 = vld [vmem:[%s1066] sm:$0x2]
    %vm1068 = vcmask 1041409
    %v1069 = vsel %vm1068, %v1067, %v1065
    %s1070 = scalar_lea.vmem [#allocation1], 799
    %v1071 = vld [vmem:[%s1070] sm:$0x4]
    %vm1072 = vcmask 1042434
    %v1073 = vsel %vm1072, %v1071, %v1069
    %s1074 = scalar_lea.vmem [#allocation1], 926
    %v1075 = vld [vmem:[%s1074] sm:$0x8]
    %vm1076 = vcmask 1043459
    %v1077 = vsel %vm1076, %v1075, %v1073
    %s1078 = scalar_lea.vmem [#allocation1], 605
    %v1079 = vld [vmem:[%s1078] sm:$0x10]
    %vm1080 = vcmask 1044484
    %v1081 = vsel %vm1080, %v1079, %v1077
    %s1082 = scalar_lea.vmem [#allocation1], 732
    %v1083 = vld [vmem:[%s1082] sm:$0x20]
    %vm1084 = vcmask 1045509
    %v1085 = vsel %vm1084, %v1083, %v1081
    %s1086 = scalar_lea.vmem [#allocation1], 859
    %v1087 = vld [vmem:[%s1086] sm:$0x40]
    %vm1088 = vcmask 1046534
    %v1089 = vsel %vm1088, %v1087, %v1085
    %s1090 = scalar_lea.vmem [#allocation1], 986
    %v1091 = vld [vmem:[%s1090] sm:$0x80]
    %vm1092 = vcmask 1047559
    %v1093 = vsel %vm1092, %v1091, %v1089
    %1094 = vrot.lane.b32.xlu0 %v1093, 72
    %v1095 = vpop.permute.xlu0 %1094
    %vm1096 = vcmask 654912
    %s1097 = scalar_lea.vmem [#allocation0], 16
    %1098 = vst.msk [vmem:[%s1097] sm:$0xf] %vm1096, %v1095
    %s1099 = scalar_lea.vmem [#allocation0], 20
    %1100 = vst.msk [vmem:[%s1099] sm:$0xf0] %vm1096, %v1095
    %s1101 = scalar_lea.vmem [#allocation1], 32
    %v1102 = vld [vmem:[%s1101] sm:$0x1]
    %s1103 = scalar_lea.vmem [#allocation1], 159
    %v1104 = vld [vmem:[%s1103] sm:$0x2]
    %vm1105 = vcmask 1041409
    %v1106 = vsel %vm1105, %v1104, %v1102
    %s1107 = scalar_lea.vmem [#allocation1], 286
    %v1108 = vld [vmem:[%s1107] sm:$0x4]
    %vm1109 = vcmask 1042434
    %v1110 = vsel %vm1109, %v1108, %v1106
    %s1111 = scalar_lea.vmem [#allocation1], 413
    %v1112 = vld [vmem:[%s1111] sm:$0x8]
    %vm1113 = vcmask 1043459
    %v1114 = vsel %vm1113, %v1112, %v1110
    %s1115 = scalar_lea.vmem [#allocation1], 92
    %v1116 = vld [vmem:[%s1115] sm:$0x10]
    %vm1117 = vcmask 1044484
    %v1118 = vsel %vm1117, %v1116, %v1114
    %s1119 = scalar_lea.vmem [#allocation1], 219
    %v1120 = vld [vmem:[%s1119] sm:$0x20]
    %vm1121 = vcmask 1045509
    %v1122 = vsel %vm1121, %v1120, %v1118
    %s1123 = scalar_lea.vmem [#allocation1], 346
    %v1124 = vld [vmem:[%s1123] sm:$0x40]
    %vm1125 = vcmask 1046534
    %v1126 = vsel %vm1125, %v1124, %v1122
    %s1127 = scalar_lea.vmem [#allocation1], 473
    %v1128 = vld [vmem:[%s1127] sm:$0x80]
    %vm1129 = vcmask 1047559
    %v1130 = vsel %vm1129, %v1128, %v1126
    %1131 = vrot.lane.b32.xlu0 %v1130, 64
    %v1132 = vpop.permute.xlu0 %1131
    %vm1133 = vcmask 589312
    %1134 = vst.msk [vmem:[#allocation0] sm:$0xf] %vm1133, %v1132
    %s1135 = scalar_lea.vmem [#allocation0], 4
    %1136 = vst.msk [vmem:[%s1135] sm:$0xf0] %vm1133, %v1132
    %s1137 = scalar_lea.vmem [#allocation1], 544
    %v1138 = vld [vmem:[%s1137] sm:$0x1]
    %s1139 = scalar_lea.vmem [#allocation1], 671
    %v1140 = vld [vmem:[%s1139] sm:$0x2]
    %vm1141 = vcmask 1041409
    %v1142 = vsel %vm1141, %v1140, %v1138
    %s1143 = scalar_lea.vmem [#allocation1], 798
    %v1144 = vld [vmem:[%s1143] sm:$0x4]
    %vm1145 = vcmask 1042434
    %v1146 = vsel %vm1145, %v1144, %v1142
    %s1147 = scalar_lea.vmem [#allocation1], 925
    %v1148 = vld [vmem:[%s1147] sm:$0x8]
    %vm1149 = vcmask 1043459
    %v1150 = vsel %vm1149, %v1148, %v1146
    %s1151 = scalar_lea.vmem [#allocation1], 604
    %v1152 = vld [vmem:[%s1151] sm:$0x10]
    %vm1153 = vcmask 1044484
    %v1154 = vsel %vm1153, %v1152, %v1150
    %s1155 = scalar_lea.vmem [#allocation1], 731
    %v1156 = vld [vmem:[%s1155] sm:$0x20]
    %vm1157 = vcmask 1045509
    %v1158 = vsel %vm1157, %v1156, %v1154
    %s1159 = scalar_lea.vmem [#allocation1], 858
    %v1160 = vld [vmem:[%s1159] sm:$0x40]
    %vm1161 = vcmask 1046534
    %v1162 = vsel %vm1161, %v1160, %v1158
    %s1163 = scalar_lea.vmem [#allocation1], 985
    %v1164 = vld [vmem:[%s1163] sm:$0x80]
    %vm1165 = vcmask 1047559
    %v1166 = vsel %vm1165, %v1164, %v1162
    %1167 = vrot.lane.b32.xlu0 %v1166, 64
    %v1168 = vpop.permute.xlu0 %1167
    %vm1169 = vcmask 589312
    %s1170 = scalar_lea.vmem [#allocation0], 16
    %1171 = vst.msk [vmem:[%s1170] sm:$0xf] %vm1169, %v1168
    %s1172 = scalar_lea.vmem [#allocation0], 20
    %1173 = vst.msk [vmem:[%s1172] sm:$0xf0] %vm1169, %v1168
    %s1174 = scalar_lea.vmem [#allocation1], 25
    %v1175 = vld [vmem:[%s1174] sm:$0x1]
    %s1176 = scalar_lea.vmem [#allocation1], 152
    %v1177 = vld [vmem:[%s1176] sm:$0x2]
    %vm1178 = vcmask 1041409
    %v1179 = vsel %vm1178, %v1177, %v1175
    %s1180 = scalar_lea.vmem [#allocation1], 279
    %v1181 = vld [vmem:[%s1180] sm:$0x4]
    %vm1182 = vcmask 1042434
    %v1183 = vsel %vm1182, %v1181, %v1179
    %s1184 = scalar_lea.vmem [#allocation1], 406
    %v1185 = vld [vmem:[%s1184] sm:$0x8]
    %vm1186 = vcmask 1043459
    %v1187 = vsel %vm1186, %v1185, %v1183
    %s1188 = scalar_lea.vmem [#allocation1], 85
    %v1189 = vld [vmem:[%s1188] sm:$0x10]
    %vm1190 = vcmask 1044484
    %v1191 = vsel %vm1190, %v1189, %v1187
    %s1192 = scalar_lea.vmem [#allocation1], 212
    %v1193 = vld [vmem:[%s1192] sm:$0x20]
    %vm1194 = vcmask 1045509
    %v1195 = vsel %vm1194, %v1193, %v1191
    %s1196 = scalar_lea.vmem [#allocation1], 339
    %v1197 = vld [vmem:[%s1196] sm:$0x40]
    %vm1198 = vcmask 1046534
    %v1199 = vsel %vm1198, %v1197, %v1195
    %s1200 = scalar_lea.vmem [#allocation1], 466
    %v1201 = vld [vmem:[%s1200] sm:$0x80]
    %vm1202 = vcmask 1047559
    %v1203 = vsel %vm1202, %v1201, %v1199
    %1204 = vrot.lane.b32.xlu0 %v1203, 56
    %v1205 = vpop.permute.xlu0 %1204
    %vm1206 = vcmask 523712
    %1207 = vst.msk [vmem:[#allocation0] sm:$0xf] %vm1206, %v1205
    %s1208 = scalar_lea.vmem [#allocation0], 4
    %1209 = vst.msk [vmem:[%s1208] sm:$0xf0] %vm1206, %v1205
    %s1210 = scalar_lea.vmem [#allocation1], 537
    %v1211 = vld [vmem:[%s1210] sm:$0x1]
    %s1212 = scalar_lea.vmem [#allocation1], 664
    %v1213 = vld [vmem:[%s1212] sm:$0x2]
    %vm1214 = vcmask 1041409
    %v1215 = vsel %vm1214, %v1213, %v1211
    %s1216 = scalar_lea.vmem [#allocation1], 791
    %v1217 = vld [vmem:[%s1216] sm:$0x4]
    %vm1218 = vcmask 1042434
    %v1219 = vsel %vm1218, %v1217, %v1215
    %s1220 = scalar_lea.vmem [#allocation1], 918
    %v1221 = vld [vmem:[%s1220] sm:$0x8]
    %vm1222 = vcmask 1043459
    %v1223 = vsel %vm1222, %v1221, %v1219
    %s1224 = scalar_lea.vmem [#allocation1], 597
    %v1225 = vld [vmem:[%s1224] sm:$0x10]
    %vm1226 = vcmask 1044484
    %v1227 = vsel %vm1226, %v1225, %v1223
    %s1228 = scalar_lea.vmem [#allocation1], 724
    %v1229 = vld [vmem:[%s1228] sm:$0x20]
    %vm1230 = vcmask 1045509
    %v1231 = vsel %vm1230, %v1229, %v1227
    %s1232 = scalar_lea.vmem [#allocation1], 851
    %v1233 = vld [vmem:[%s1232] sm:$0x40]
    %vm1234 = vcmask 1046534
    %v1235 = vsel %vm1234, %v1233, %v1231
    %s1236 = scalar_lea.vmem [#allocation1], 978
    %v1237 = vld [vmem:[%s1236] sm:$0x80]
    %vm1238 = vcmask 1047559
    %v1239 = vsel %vm1238, %v1237, %v1235
    %1240 = vrot.lane.b32.xlu0 %v1239, 56
    %v1241 = vpop.permute.xlu0 %1240
    %vm1242 = vcmask 523712
    %s1243 = scalar_lea.vmem [#allocation0], 16
    %1244 = vst.msk [vmem:[%s1243] sm:$0xf] %vm1242, %v1241
    %s1245 = scalar_lea.vmem [#allocation0], 20
    %1246 = vst.msk [vmem:[%s1245] sm:$0xf0] %vm1242, %v1241
    %s1247 = scalar_lea.vmem [#allocation1], 24
    %v1248 = vld [vmem:[%s1247] sm:$0x1]
    %s1249 = scalar_lea.vmem [#allocation1], 151
    %v1250 = vld [vmem:[%s1249] sm:$0x2]
    %vm1251 = vcmask 1041409
    %v1252 = vsel %vm1251, %v1250, %v1248
    %s1253 = scalar_lea.vmem [#allocation1], 278
    %v1254 = vld [vmem:[%s1253] sm:$0x4]
    %vm1255 = vcmask 1042434
    %v1256 = vsel %vm1255, %v1254, %v1252
    %s1257 = scalar_lea.vmem [#allocation1], 405
    %v1258 = vld [vmem:[%s1257] sm:$0x8]
    %vm1259 = vcmask 1043459
    %v1260 = vsel %vm1259, %v1258, %v1256
    %s1261 = scalar_lea.vmem [#allocation1], 84
    %v1262 = vld [vmem:[%s1261] sm:$0x10]
    %vm1263 = vcmask 1044484
    %v1264 = vsel %vm1263, %v1262, %v1260
    %s1265 = scalar_lea.vmem [#allocation1], 211
    %v1266 = vld [vmem:[%s1265] sm:$0x20]
    %vm1267 = vcmask 1045509
    %v1268 = vsel %vm1267, %v1266, %v1264
    %s1269 = scalar_lea.vmem [#allocation1], 338
    %v1270 = vld [vmem:[%s1269] sm:$0x40]
    %vm1271 = vcmask 1046534
    %v1272 = vsel %vm1271, %v1270, %v1268
    %s1273 = scalar_lea.vmem [#allocation1], 465
    %v1274 = vld [vmem:[%s1273] sm:$0x80]
    %vm1275 = vcmask 1047559
    %v1276 = vsel %vm1275, %v1274, %v1272
    %1277 = vrot.lane.b32.xlu0 %v1276, 48
    %v1278 = vpop.permute.xlu0 %1277
    %vm1279 = vcmask 458112
    %1280 = vst.msk [vmem:[#allocation0] sm:$0xf] %vm1279, %v1278
    %s1281 = scalar_lea.vmem [#allocation0], 4
    %1282 = vst.msk [vmem:[%s1281] sm:$0xf0] %vm1279, %v1278
    %s1283 = scalar_lea.vmem [#allocation1], 536
    %v1284 = vld [vmem:[%s1283] sm:$0x1]
    %s1285 = scalar_lea.vmem [#allocation1], 663
    %v1286 = vld [vmem:[%s1285] sm:$0x2]
    %vm1287 = vcmask 1041409
    %v1288 = vsel %vm1287, %v1286, %v1284
    %s1289 = scalar_lea.vmem [#allocation1], 790
    %v1290 = vld [vmem:[%s1289] sm:$0x4]
    %vm1291 = vcmask 1042434
    %v1292 = vsel %vm1291, %v1290, %v1288
    %s1293 = scalar_lea.vmem [#allocation1], 917
    %v1294 = vld [vmem:[%s1293] sm:$0x8]
    %vm1295 = vcmask 1043459
    %v1296 = vsel %vm1295, %v1294, %v1292
    %s1297 = scalar_lea.vmem [#allocation1], 596
    %v1298 = vld [vmem:[%s1297] sm:$0x10]
    %vm1299 = vcmask 1044484
    %v1300 = vsel %vm1299, %v1298, %v1296
    %s1301 = scalar_lea.vmem [#allocation1], 723
    %v1302 = vld [vmem:[%s1301] sm:$0x20]
    %vm1303 = vcmask 1045509
    %v1304 = vsel %vm1303, %v1302, %v1300
    %s1305 = scalar_lea.vmem [#allocation1], 850
    %v1306 = vld [vmem:[%s1305] sm:$0x40]
    %vm1307 = vcmask 1046534
    %v1308 = vsel %vm1307, %v1306, %v1304
    %s1309 = scalar_lea.vmem [#allocation1], 977
    %v1310 = vld [vmem:[%s1309] sm:$0x80]
    %vm1311 = vcmask 1047559
    %v1312 = vsel %vm1311, %v1310, %v1308
    %1313 = vrot.lane.b32.xlu0 %v1312, 48
    %v1314 = vpop.permute.xlu0 %1313
    %vm1315 = vcmask 458112
    %s1316 = scalar_lea.vmem [#allocation0], 16
    %1317 = vst.msk [vmem:[%s1316] sm:$0xf] %vm1315, %v1314
    %s1318 = scalar_lea.vmem [#allocation0], 20
    %1319 = vst.msk [vmem:[%s1318] sm:$0xf0] %vm1315, %v1314
    %s1320 = scalar_lea.vmem [#allocation1], 17
    %v1321 = vld [vmem:[%s1320] sm:$0x1]
    %s1322 = scalar_lea.vmem [#allocation1], 144
    %v1323 = vld [vmem:[%s1322] sm:$0x2]
    %vm1324 = vcmask 1041409
    %v1325 = vsel %vm1324, %v1323, %v1321
    %s1326 = scalar_lea.vmem [#allocation1], 271
    %v1327 = vld [vmem:[%s1326] sm:$0x4]
    %vm1328 = vcmask 1042434
    %v1329 = vsel %vm1328, %v1327, %v1325
    %s1330 = scalar_lea.vmem [#allocation1], 398
    %v1331 = vld [vmem:[%s1330] sm:$0x8]
    %vm1332 = vcmask 1043459
    %v1333 = vsel %vm1332, %v1331, %v1329
    %s1334 = scalar_lea.vmem [#allocation1], 77
    %v1335 = vld [vmem:[%s1334] sm:$0x10]
    %vm1336 = vcmask 1044484
    %v1337 = vsel %vm1336, %v1335, %v1333
    %s1338 = scalar_lea.vmem [#allocation1], 204
    %v1339 = vld [vmem:[%s1338] sm:$0x20]
    %vm1340 = vcmask 1045509
    %v1341 = vsel %vm1340, %v1339, %v1337
    %s1342 = scalar_lea.vmem [#allocation1], 331
    %v1343 = vld [vmem:[%s1342] sm:$0x40]
    %vm1344 = vcmask 1046534
    %v1345 = vsel %vm1344, %v1343, %v1341
    %s1346 = scalar_lea.vmem [#allocation1], 458
    %v1347 = vld [vmem:[%s1346] sm:$0x80]
    %vm1348 = vcmask 1047559
    %v1349 = vsel %vm1348, %v1347, %v1345
    %1350 = vrot.lane.b32.xlu0 %v1349, 40
    %v1351 = vpop.permute.xlu0 %1350
    %vm1352 = vcmask 392512
    %1353 = vst.msk [vmem:[#allocation0] sm:$0xf] %vm1352, %v1351
    %s1354 = scalar_lea.vmem [#allocation0], 4
    %1355 = vst.msk [vmem:[%s1354] sm:$0xf0] %vm1352, %v1351
    %s1356 = scalar_lea.vmem [#allocation1], 529
    %v1357 = vld [vmem:[%s1356] sm:$0x1]
    %s1358 = scalar_lea.vmem [#allocation1], 656
    %v1359 = vld [vmem:[%s1358] sm:$0x2]
    %vm1360 = vcmask 1041409
    %v1361 = vsel %vm1360, %v1359, %v1357
    %s1362 = scalar_lea.vmem [#allocation1], 783
    %v1363 = vld [vmem:[%s1362] sm:$0x4]
    %vm1364 = vcmask 1042434
    %v1365 = vsel %vm1364, %v1363, %v1361
    %s1366 = scalar_lea.vmem [#allocation1], 910
    %v1367 = vld [vmem:[%s1366] sm:$0x8]
    %vm1368 = vcmask 1043459
    %v1369 = vsel %vm1368, %v1367, %v1365
    %s1370 = scalar_lea.vmem [#allocation1], 589
    %v1371 = vld [vmem:[%s1370] sm:$0x10]
    %vm1372 = vcmask 1044484
    %v1373 = vsel %vm1372, %v1371, %v1369
    %s1374 = scalar_lea.vmem [#allocation1], 716
    %v1375 = vld [vmem:[%s1374] sm:$0x20]
    %vm1376 = vcmask 1045509
    %v1377 = vsel %vm1376, %v1375, %v1373
    %s1378 = scalar_lea.vmem [#allocation1], 843
    %v1379 = vld [vmem:[%s1378] sm:$0x40]
    %vm1380 = vcmask 1046534
    %v1381 = vsel %vm1380, %v1379, %v1377
    %s1382 = scalar_lea.vmem [#allocation1], 970
    %v1383 = vld [vmem:[%s1382] sm:$0x80]
    %vm1384 = vcmask 1047559
    %v1385 = vsel %vm1384, %v1383, %v1381
    %1386 = vrot.lane.b32.xlu0 %v1385, 40
    %v1387 = vpop.permute.xlu0 %1386
    %vm1388 = vcmask 392512
    %s1389 = scalar_lea.vmem [#allocation0], 16
    %1390 = vst.msk [vmem:[%s1389] sm:$0xf] %vm1388, %v1387
    %s1391 = scalar_lea.vmem [#allocation0], 20
    %1392 = vst.msk [vmem:[%s1391] sm:$0xf0] %vm1388, %v1387
    %s1393 = scalar_lea.vmem [#allocation1], 16
    %v1394 = vld [vmem:[%s1393] sm:$0x1]
    %s1395 = scalar_lea.vmem [#allocation1], 143
    %v1396 = vld [vmem:[%s1395] sm:$0x2]
    %vm1397 = vcmask 1041409
    %v1398 = vsel %vm1397, %v1396, %v1394
    %s1399 = scalar_lea.vmem [#allocation1], 270
    %v1400 = vld [vmem:[%s1399] sm:$0x4]
    %vm1401 = vcmask 1042434
    %v1402 = vsel %vm1401, %v1400, %v1398
    %s1403 = scalar_lea.vmem [#allocation1], 397
    %v1404 = vld [vmem:[%s1403] sm:$0x8]
    %vm1405 = vcmask 1043459
    %v1406 = vsel %vm1405, %v1404, %v1402
    %s1407 = scalar_lea.vmem [#allocation1], 76
    %v1408 = vld [vmem:[%s1407] sm:$0x10]
    %vm1409 = vcmask 1044484
    %v1410 = vsel %vm1409, %v1408, %v1406
    %s1411 = scalar_lea.vmem [#allocation1], 203
    %v1412 = vld [vmem:[%s1411] sm:$0x20]
    %vm1413 = vcmask 1045509
    %v1414 = vsel %vm1413, %v1412, %v1410
    %s1415 = scalar_lea.vmem [#allocation1], 330
    %v1416 = vld [vmem:[%s1415] sm:$0x40]
    %vm1417 = vcmask 1046534
    %v1418 = vsel %vm1417, %v1416, %v1414
    %s1419 = scalar_lea.vmem [#allocation1], 457
    %v1420 = vld [vmem:[%s1419] sm:$0x80]
    %vm1421 = vcmask 1047559
    %v1422 = vsel %vm1421, %v1420, %v1418
    %1423 = vrot.lane.b32.xlu0 %v1422, 32
    %v1424 = vpop.permute.xlu0 %1423
    %vm1425 = vcmask 326912
    %1426 = vst.msk [vmem:[#allocation0] sm:$0xf] %vm1425, %v1424
    %s1427 = scalar_lea.vmem [#allocation0], 4
    %1428 = vst.msk [vmem:[%s1427] sm:$0xf0] %vm1425, %v1424
    %s1429 = scalar_lea.vmem [#allocation1], 528
    %v1430 = vld [vmem:[%s1429] sm:$0x1]
    %s1431 = scalar_lea.vmem [#allocation1], 655
    %v1432 = vld [vmem:[%s1431] sm:$0x2]
    %vm1433 = vcmask 1041409
    %v1434 = vsel %vm1433, %v1432, %v1430
    %s1435 = scalar_lea.vmem [#allocation1], 782
    %v1436 = vld [vmem:[%s1435] sm:$0x4]
    %vm1437 = vcmask 1042434
    %v1438 = vsel %vm1437, %v1436, %v1434
    %s1439 = scalar_lea.vmem [#allocation1], 909
    %v1440 = vld [vmem:[%s1439] sm:$0x8]
    %vm1441 = vcmask 1043459
    %v1442 = vsel %vm1441, %v1440, %v1438
    %s1443 = scalar_lea.vmem [#allocation1], 588
    %v1444 = vld [vmem:[%s1443] sm:$0x10]
    %vm1445 = vcmask 1044484
    %v1446 = vsel %vm1445, %v1444, %v1442
    %s1447 = scalar_lea.vmem [#allocation1], 715
    %v1448 = vld [vmem:[%s1447] sm:$0x20]
    %vm1449 = vcmask 1045509
    %v1450 = vsel %vm1449, %v1448, %v1446
    %s1451 = scalar_lea.vmem [#allocation1], 842
    %v1452 = vld [vmem:[%s1451] sm:$0x40]
    %vm1453 = vcmask 1046534
    %v1454 = vsel %vm1453, %v1452, %v1450
    %s1455 = scalar_lea.vmem [#allocation1], 969
    %v1456 = vld [vmem:[%s1455] sm:$0x80]
    %vm1457 = vcmask 1047559
    %v1458 = vsel %vm1457, %v1456, %v1454
    %1459 = vrot.lane.b32.xlu0 %v1458, 32
    %v1460 = vpop.permute.xlu0 %1459
    %vm1461 = vcmask 326912
    %s1462 = scalar_lea.vmem [#allocation0], 16
    %1463 = vst.msk [vmem:[%s1462] sm:$0xf] %vm1461, %v1460
    %s1464 = scalar_lea.vmem [#allocation0], 20
    %1465 = vst.msk [vmem:[%s1464] sm:$0xf0] %vm1461, %v1460
    %s1466 = scalar_lea.vmem [#allocation1], 9
    %v1467 = vld [vmem:[%s1466] sm:$0x1]
    %s1468 = scalar_lea.vmem [#allocation1], 136
    %v1469 = vld [vmem:[%s1468] sm:$0x2]
    %vm1470 = vcmask 1041409
    %v1471 = vsel %vm1470, %v1469, %v1467
    %s1472 = scalar_lea.vmem [#allocation1], 263
    %v1473 = vld [vmem:[%s1472] sm:$0x4]
    %vm1474 = vcmask 1042434
    %v1475 = vsel %vm1474, %v1473, %v1471
    %s1476 = scalar_lea.vmem [#allocation1], 390
    %v1477 = vld [vmem:[%s1476] sm:$0x8]
    %vm1478 = vcmask 1043459
    %v1479 = vsel %vm1478, %v1477, %v1475
    %s1480 = scalar_lea.vmem [#allocation1], 69
    %v1481 = vld [vmem:[%s1480] sm:$0x10]
    %vm1482 = vcmask 1044484
    %v1483 = vsel %vm1482, %v1481, %v1479
    %s1484 = scalar_lea.vmem [#allocation1], 196
    %v1485 = vld [vmem:[%s1484] sm:$0x20]
    %vm1486 = vcmask 1045509
    %v1487 = vsel %vm1486, %v1485, %v1483
    %s1488 = scalar_lea.vmem [#allocation1], 323
    %v1489 = vld [vmem:[%s1488] sm:$0x40]
    %vm1490 = vcmask 1046534
    %v1491 = vsel %vm1490, %v1489, %v1487
    %s1492 = scalar_lea.vmem [#allocation1], 450
    %v1493 = vld [vmem:[%s1492] sm:$0x80]
    %vm1494 = vcmask 1047559
    %v1495 = vsel %vm1494, %v1493, %v1491
    %1496 = vrot.lane.b32.xlu0 %v1495, 24
    %v1497 = vpop.permute.xlu0 %1496
    %vm1498 = vcmask 261312
    %1499 = vst.msk [vmem:[#allocation0] sm:$0xf] %vm1498, %v1497
    %s1500 = scalar_lea.vmem [#allocation0], 4
    %1501 = vst.msk [vmem:[%s1500] sm:$0xf0] %vm1498, %v1497
    %s1502 = scalar_lea.vmem [#allocation1], 521
    %v1503 = vld [vmem:[%s1502] sm:$0x1]
    %s1504 = scalar_lea.vmem [#allocation1], 648
    %v1505 = vld [vmem:[%s1504] sm:$0x2]
    %vm1506 = vcmask 1041409
    %v1507 = vsel %vm1506, %v1505, %v1503
    %s1508 = scalar_lea.vmem [#allocation1], 775
    %v1509 = vld [vmem:[%s1508] sm:$0x4]
    %vm1510 = vcmask 1042434
    %v1511 = vsel %vm1510, %v1509, %v1507
    %s1512 = scalar_lea.vmem [#allocation1], 902
    %v1513 = vld [vmem:[%s1512] sm:$0x8]
    %vm1514 = vcmask 1043459
    %v1515 = vsel %vm1514, %v1513, %v1511
    %s1516 = scalar_lea.vmem [#allocation1], 581
    %v1517 = vld [vmem:[%s1516] sm:$0x10]
    %vm1518 = vcmask 1044484
    %v1519 = vsel %vm1518, %v1517, %v1515
    %s1520 = scalar_lea.vmem [#allocation1], 708
    %v1521 = vld [vmem:[%s1520] sm:$0x20]
    %vm1522 = vcmask 1045509
    %v1523 = vsel %vm1522, %v1521, %v1519
    %s1524 = scalar_lea.vmem [#allocation1], 835
    %v1525 = vld [vmem:[%s1524] sm:$0x40]
    %vm1526 = vcmask 1046534
    %v1527 = vsel %vm1526, %v1525, %v1523
    %s1528 = scalar_lea.vmem [#allocation1], 962
    %v1529 = vld [vmem:[%s1528] sm:$0x80]
    %vm1530 = vcmask 1047559
    %v1531 = vsel %vm1530, %v1529, %v1527
    %1532 = vrot.lane.b32.xlu0 %v1531, 24
    %v1533 = vpop.permute.xlu0 %1532
    %vm1534 = vcmask 261312
    %s1535 = scalar_lea.vmem [#allocation0], 16
    %1536 = vst.msk [vmem:[%s1535] sm:$0xf] %vm1534, %v1533
    %s1537 = scalar_lea.vmem [#allocation0], 20
    %1538 = vst.msk [vmem:[%s1537] sm:$0xf0] %vm1534, %v1533
    %s1539 = scalar_lea.vmem [#allocation1], 8
    %v1540 = vld [vmem:[%s1539] sm:$0x1]
    %s1541 = scalar_lea.vmem [#allocation1], 135
    %v1542 = vld [vmem:[%s1541] sm:$0x2]
    %vm1543 = vcmask 1041409
    %v1544 = vsel %vm1543, %v1542, %v1540
    %s1545 = scalar_lea.vmem [#allocation1], 262
    %v1546 = vld [vmem:[%s1545] sm:$0x4]
    %vm1547 = vcmask 1042434
    %v1548 = vsel %vm1547, %v1546, %v1544
    %s1549 = scalar_lea.vmem [#allocation1], 389
    %v1550 = vld [vmem:[%s1549] sm:$0x8]
    %vm1551 = vcmask 1043459
    %v1552 = vsel %vm1551, %v1550, %v1548
    %s1553 = scalar_lea.vmem [#allocation1], 68
    %v1554 = vld [vmem:[%s1553] sm:$0x10]
    %vm1555 = vcmask 1044484
    %v1556 = vsel %vm1555, %v1554, %v1552
    %s1557 = scalar_lea.vmem [#allocation1], 195
    %v1558 = vld [vmem:[%s1557] sm:$0x20]
    %vm1559 = vcmask 1045509
    %v1560 = vsel %vm1559, %v1558, %v1556
    %s1561 = scalar_lea.vmem [#allocation1], 322
    %v1562 = vld [vmem:[%s1561] sm:$0x40]
    %vm1563 = vcmask 1046534
    %v1564 = vsel %vm1563, %v1562, %v1560
    %s1565 = scalar_lea.vmem [#allocation1], 449
    %v1566 = vld [vmem:[%s1565] sm:$0x80]
    %vm1567 = vcmask 1047559
    %v1568 = vsel %vm1567, %v1566, %v1564
    %1569 = vrot.lane.b32.xlu0 %v1568, 16
    %v1570 = vpop.permute.xlu0 %1569
    %vm1571 = vcmask 195712
    %1572 = vst.msk [vmem:[#allocation0] sm:$0xf] %vm1571, %v1570
    %s1573 = scalar_lea.vmem [#allocation0], 4
    %1574 = vst.msk [vmem:[%s1573] sm:$0xf0] %vm1571, %v1570
    %s1575 = scalar_lea.vmem [#allocation1], 520
    %v1576 = vld [vmem:[%s1575] sm:$0x1]
    %s1577 = scalar_lea.vmem [#allocation1], 647
    %v1578 = vld [vmem:[%s1577] sm:$0x2]
    %vm1579 = vcmask 1041409
    %v1580 = vsel %vm1579, %v1578, %v1576
    %s1581 = scalar_lea.vmem [#allocation1], 774
    %v1582 = vld [vmem:[%s1581] sm:$0x4]
    %vm1583 = vcmask 1042434
    %v1584 = vsel %vm1583, %v1582, %v1580
    %s1585 = scalar_lea.vmem [#allocation1], 901
    %v1586 = vld [vmem:[%s1585] sm:$0x8]
    %vm1587 = vcmask 1043459
    %v1588 = vsel %vm1587, %v1586, %v1584
    %s1589 = scalar_lea.vmem [#allocation1], 580
    %v1590 = vld [vmem:[%s1589] sm:$0x10]
    %vm1591 = vcmask 1044484
    %v1592 = vsel %vm1591, %v1590, %v1588
    %s1593 = scalar_lea.vmem [#allocation1], 707
    %v1594 = vld [vmem:[%s1593] sm:$0x20]
    %vm1595 = vcmask 1045509
    %v1596 = vsel %vm1595, %v1594, %v1592
    %s1597 = scalar_lea.vmem [#allocation1], 834
    %v1598 = vld [vmem:[%s1597] sm:$0x40]
    %vm1599 = vcmask 1046534
    %v1600 = vsel %vm1599, %v1598, %v1596
    %s1601 = scalar_lea.vmem [#allocation1], 961
    %v1602 = vld [vmem:[%s1601] sm:$0x80]
    %vm1603 = vcmask 1047559
    %v1604 = vsel %vm1603, %v1602, %v1600
    %1605 = vrot.lane.b32.xlu0 %v1604, 16
    %v1606 = vpop.permute.xlu0 %1605
    %vm1607 = vcmask 195712
    %s1608 = scalar_lea.vmem [#allocation0], 16
    %1609 = vst.msk [vmem:[%s1608] sm:$0xf] %vm1607, %v1606
    %s1610 = scalar_lea.vmem [#allocation0], 20
    %1611 = vst.msk [vmem:[%s1610] sm:$0xf0] %vm1607, %v1606
    %s1612 = scalar_lea.vmem [#allocation1], 1
    %v1613 = vld [vmem:[%s1612] sm:$0x1]
    %s1614 = scalar_lea.vmem [#allocation1], 128
    %v1615 = vld [vmem:[%s1614] sm:$0x2]
    %vm1616 = vcmask 1041409
    %v1617 = vsel %vm1616, %v1615, %v1613
    %s1618 = scalar_lea.vmem [#allocation1], 255
    %v1619 = vld [vmem:[%s1618] sm:$0x4]
    %vm1620 = vcmask 1042434
    %v1621 = vsel %vm1620, %v1619, %v1617
    %s1622 = scalar_lea.vmem [#allocation1], 382
    %v1623 = vld [vmem:[%s1622] sm:$0x8]
    %vm1624 = vcmask 1043459
    %v1625 = vsel %vm1624, %v1623, %v1621
    %s1626 = scalar_lea.vmem [#allocation1], 61
    %v1627 = vld [vmem:[%s1626] sm:$0x10]
    %vm1628 = vcmask 1044484
    %v1629 = vsel %vm1628, %v1627, %v1625
    %s1630 = scalar_lea.vmem [#allocation1], 188
    %v1631 = vld [vmem:[%s1630] sm:$0x20]
    %vm1632 = vcmask 1045509
    %v1633 = vsel %vm1632, %v1631, %v1629
    %s1634 = scalar_lea.vmem [#allocation1], 315
    %v1635 = vld [vmem:[%s1634] sm:$0x40]
    %vm1636 = vcmask 1046534
    %v1637 = vsel %vm1636, %v1635, %v1633
    %s1638 = scalar_lea.vmem [#allocation1], 442
    %v1639 = vld [vmem:[%s1638] sm:$0x80]
    %vm1640 = vcmask 1047559
    %v1641 = vsel %vm1640, %v1639, %v1637
    %1642 = vrot.lane.b32.xlu0 %v1641, 8
    %v1643 = vpop.permute.xlu0 %1642
    %vm1644 = vcmask 130112
    %1645 = vst.msk [vmem:[#allocation0] sm:$0xf] %vm1644, %v1643
    %s1646 = scalar_lea.vmem [#allocation0], 4
    %1647 = vst.msk [vmem:[%s1646] sm:$0xf0] %vm1644, %v1643
    %s1648 = scalar_lea.vmem [#allocation1], 513
    %v1649 = vld [vmem:[%s1648] sm:$0x1]
    %s1650 = scalar_lea.vmem [#allocation1], 640
    %v1651 = vld [vmem:[%s1650] sm:$0x2]
    %vm1652 = vcmask 1041409
    %v1653 = vsel %vm1652, %v1651, %v1649
    %s1654 = scalar_lea.vmem [#allocation1], 767
    %v1655 = vld [vmem:[%s1654] sm:$0x4]
    %vm1656 = vcmask 1042434
    %v1657 = vsel %vm1656, %v1655, %v1653
    %s1658 = scalar_lea.vmem [#allocation1], 894
    %v1659 = vld [vmem:[%s1658] sm:$0x8]
    %vm1660 = vcmask 1043459
    %v1661 = vsel %vm1660, %v1659, %v1657
    %s1662 = scalar_lea.vmem [#allocation1], 573
    %v1663 = vld [vmem:[%s1662] sm:$0x10]
    %vm1664 = vcmask 1044484
    %v1665 = vsel %vm1664, %v1663, %v1661
    %s1666 = scalar_lea.vmem [#allocation1], 700
    %v1667 = vld [vmem:[%s1666] sm:$0x20]
    %vm1668 = vcmask 1045509
    %v1669 = vsel %vm1668, %v1667, %v1665
    %s1670 = scalar_lea.vmem [#allocation1], 827
    %v1671 = vld [vmem:[%s1670] sm:$0x40]
    %vm1672 = vcmask 1046534
    %v1673 = vsel %vm1672, %v1671, %v1669
    %s1674 = scalar_lea.vmem [#allocation1], 954
    %v1675 = vld [vmem:[%s1674] sm:$0x80]
    %vm1676 = vcmask 1047559
    %v1677 = vsel %vm1676, %v1675, %v1673
    %1678 = vrot.lane.b32.xlu0 %v1677, 8
    %v1679 = vpop.permute.xlu0 %1678
    %vm1680 = vcmask 130112
    %s1681 = scalar_lea.vmem [#allocation0], 16
    %1682 = vst.msk [vmem:[%s1681] sm:$0xf] %vm1680, %v1679
    %s1683 = scalar_lea.vmem [#allocation0], 20
    %1684 = vst.msk [vmem:[%s1683] sm:$0xf0] %vm1680, %v1679
    %s1686 = ssub.s32 16, 1
    %v1687 = vld [vmem:[#allocation0] sm:%s1686]
    %s1689 = ssub.s32 16, 1
    %1690 = vst [vmem:[%s1] sm:%s1689] %v1687
    %s1691 = scalar_lea.vmem [#allocation0], 8
    %v1692 = vld [vmem:[%s1691] sm:%s1686]
    %s1694 = ssub.s32 16, 1
    %s1695 = scalar_lea.vmem %s1, 4
    %1696 = vst [vmem:[%s1695] sm:%s1694] %v1692
    %s1697 = scalar_lea.vmem [#allocation0], 16
    %v1698 = vld [vmem:[%s1697] sm:%s1686]
    %s1700 = ssub.s32 16, 1
    %s1701 = scalar_lea.vmem %s1, 8
    %1702 = vst [vmem:[%s1701] sm:%s1700] %v1698
    %s1703 = scalar_lea.vmem [#allocation0], 24
    %v1704 = vld [vmem:[%s1703] sm:%s1686]
    %s1706 = ssub.s32 16, 1
    %s1707 = scalar_lea.vmem %s1, 12
    %1708 = vst [vmem:[%s1707] sm:%s1706] %v1704

// kernel: reverse.0
$region0: #{reverse.0}
  %s0 = inlined_call_operand.vmem [shape: f32[2,4,16,7], index: 0, kind: input, shape index: {}]
  %s1 = inlined_call_operand.vmem [shape: f32[2,4,16,7], index: 1, kind: output, shape index: {}]
  $region1: #{reverse.0} parent=0
    #allocation0 [shape = 'u8[65536]{0}', space=vmem, size = 0x10000, scoped, tag = 'operand span for operand 0']
    #allocation1 [shape = 'u8[32768]{0}', space=vmem, size = 0x8000, scoped, tag = 'operand span for operand 1']
    %s2 = scalar_lea.vmem [#allocation0], 8
    // Predicated region
    $region2: #{reverse.0} parent=1 // pred_check
      _
    $region3: #{reverse.0} parent=1 // pred_check_branch
      %4 = sbr.rel (0) target = $region5
    $region4: #{reverse.0} parent=1 // pred_region
      // Predicated region
      $region6: #{reverse.0} parent=4 // pred_check
        _
      $region7: #{reverse.0} parent=4 // pred_check_branch
        %6 = sbr.rel (0) target = $region9
      $region8: #{reverse.0} parent=4 // pred_region
        // Predicated region
        $region21: #{reverse.0} parent=8 // pred_check
          _
        $region22: #{reverse.0} parent=8 // pred_check_branch
          %36 = sbr.rel (0) target = $region24
        $region23: #{reverse.0} parent=8 // pred_region
          loop: start=0, step=1, limit=1
          $region25: #{reverse.0} parent=23 // loop_pre_header
            _
          $region26: #{reverse.0} parent=23 // loop_header
            %s38 = sphi 0, %s42
            %p39 = scmp.ge.s32.totalorder %s38, 1
            %s43 = sphi %s0, %s0
            %s44 = sphi %s2, %s2
          $region27: #{reverse.0} parent=23 // loop_header_branch
            %41 = sbr.rel (%p39) target = $region31
          $region28: #{reverse.0} parent=23 // loop_body
            %v45 = vld [vmem:[%s43] sm:$0xff]
            %46 = vst [vmem:[%s44] sm:$0xff] %v45
            %v47 = vld [vmem:[%s43 + $0x8] sm:$0xff]
            %48 = vst [vmem:[%s44 + $0x10] sm:$0xff] %v47
            %v49 = vld [vmem:[%s43 + $0x10] sm:$0xff]
            %50 = vst [vmem:[%s44 + $0x20] sm:$0xff] %v49
            %v51 = vld [vmem:[%s43 + $0x18] sm:$0xff]
            %52 = vst [vmem:[%s44 + $0x30] sm:$0xff] %v51
            %v53 = vld [vmem:[%s43 + $0x20] sm:$0xff]
            %54 = vst [vmem:[%s44 + $0x40] sm:$0xff] %v53
            %v55 = vld [vmem:[%s43 + $0x28] sm:$0xff]
            %56 = vst [vmem:[%s44 + $0x50] sm:$0xff] %v55
            %v57 = vld [vmem:[%s43 + $0x30] sm:$0xff]
            %58 = vst [vmem:[%s44 + $0x60] sm:$0xff] %v57
            %v59 = vld [vmem:[%s43 + $0x38] sm:$0xff]
            %60 = vst [vmem:[%s44 + $0x70] sm:$0xff] %v59
          $region29: #{reverse.0} parent=23 // loop_footer
            %s42 = sadd.s32 1, %s38
          $region30: #{reverse.0} parent=23 // loop_footer_branch
            %37 = sbr.rel target = $region26
          $region31: #{reverse.0} parent=23 // loop_exit
            _
        $region24: #{reverse.0} parent=8 // pred_fallthru
          _
        // Predicated region
        $region32: #{reverse.0} parent=8 // pred_check
          _
        $region33: #{reverse.0} parent=8 // pred_check_branch
          %62 = sbr.rel target = $region35
        $region34: #{reverse.0} parent=8 // pred_region
          _
        $region35: #{reverse.0} parent=8 // pred_fallthru
          _
      $region9: #{reverse.0} parent=4 // pred_fallthru
        _
      // Predicated region
      $region10: #{reverse.0} parent=4 // pred_check
        _
      $region11: #{reverse.0} parent=4 // pred_check_branch
        %8 = sbr.rel target = $region13
      $region12: #{reverse.0} parent=4 // pred_region
        %s10 = ssub.s32 256, 1
        loop: start=0, step=1, limit=1
        $region14: #{reverse.0} parent=12 // loop_pre_header
          _
        $region15: #{reverse.0} parent=12 // loop_header
          %s12 = sphi 0, %s16
          %p13 = scmp.ge.s32.totalorder %s12, 1
          %s17 = sphi %s0, %s0
          %s18 = sphi %s2, %s2
        $region16: #{reverse.0} parent=12 // loop_header_branch
          %15 = sbr.rel (%p13) target = $region20
        $region17: #{reverse.0} parent=12 // loop_body
          %v19 = vld [vmem:[%s17] sm:%s10]
          %20 = vst [vmem:[%s18] sm:%s10] %v19
          %v21 = vld [vmem:[%s17 + $0x8] sm:%s10]
          %22 = vst [vmem:[%s18 + $0x10] sm:%s10] %v21
          %v23 = vld [vmem:[%s17 + $0x10] sm:%s10]
          %24 = vst [vmem:[%s18 + $0x20] sm:%s10] %v23
          %v25 = vld [vmem:[%s17 + $0x18] sm:%s10]
          %26 = vst [vmem:[%s18 + $0x30] sm:%s10] %v25
          %v27 = vld [vmem:[%s17 + $0x20] sm:%s10]
          %28 = vst [vmem:[%s18 + $0x40] sm:%s10] %v27
          %v29 = vld [vmem:[%s17 + $0x28] sm:%s10]
          %30 = vst [vmem:[%s18 + $0x50] sm:%s10] %v29
          %v31 = vld [vmem:[%s17 + $0x30] sm:%s10]
          %32 = vst [vmem:[%s18 + $0x60] sm:%s10] %v31
          %v33 = vld [vmem:[%s17 + $0x38] sm:%s10]
          %34 = vst [vmem:[%s18 + $0x70] sm:%s10] %v33
        $region18: #{reverse.0} parent=12 // loop_footer
          %s16 = sadd.s32 1, %s12
        $region19: #{reverse.0} parent=12 // loop_footer_branch
          %11 = sbr.rel target = $region15
        $region20: #{reverse.0} parent=12 // loop_exit
          _
      $region13: #{reverse.0} parent=4 // pred_fallthru
        _
    $region5: #{reverse.0} parent=1 // pred_fallthru
      _
    %63 = vnop
    %s64 = scalar_lea.vmem [#allocation0], 7
    %v65 = vld [vmem:[%s64] ss:$-1 sm:$0xff]
    %v66 = vrot.slane %v65, 1
    %67 = vst [vmem:[#allocation1] sm:$0xff] %v66
    %s68 = scalar_lea.vmem [#allocation0], 8
    %s69 = scalar_lea.vmem %s68, 7 [#allocation0]
    %v70 = vld [vmem:[%s69] ss:$-1 sm:$0xff]
    %v71 = vrot.slane %v70, 1
    %v72 = vlaneseq
    %v73 = vshrl.u32 %v72, 7
    %vm74 = vcmp.lt.s32.totalorder %v73, 7
    %75 = vst.msk [vmem:[#allocation1] sm:$0xff] %vm74, %v71
    %s76 = scalar_lea.vmem [#allocation1], 8
    %s77 = scalar_lea.vmem [#allocation0], 16
    %s78 = scalar_lea.vmem %s77, 7 [#allocation0]
    %v79 = vld [vmem:[%s78] ss:$-1 sm:$0xff]
    %v80 = vrot.slane %v79, 1
    %81 = vst [vmem:[%s76] sm:$0xff] %v80
    %s82 = scalar_lea.vmem %s77, 8 [#allocation0]
    %s83 = scalar_lea.vmem %s82, 7 [#allocation0]
    %v84 = vld [vmem:[%s83] ss:$-1 sm:$0xff]
    %v85 = vrot.slane %v84, 1
    %v86 = vlaneseq
    %v87 = vshrl.u32 %v86, 7
    %vm88 = vcmp.lt.s32.totalorder %v87, 7
    %89 = vst.msk [vmem:[%s76] sm:$0xff] %vm88, %v85
    %s90 = scalar_lea.vmem [#allocation1], 16
    %s91 = scalar_lea.vmem [#allocation0], 32
    %s92 = scalar_lea.vmem %s91, 7 [#allocation0]
    %v93 = vld [vmem:[%s92] ss:$-1 sm:$0xff]
    %v94 = vrot.slane %v93, 1
    %95 = vst [vmem:[%s90] sm:$0xff] %v94
    %s96 = scalar_lea.vmem %s91, 8 [#allocation0]
    %s97 = scalar_lea.vmem %s96, 7 [#allocation0]
    %v98 = vld [vmem:[%s97] ss:$-1 sm:$0xff]
    %v99 = vrot.slane %v98, 1
    %v100 = vlaneseq
    %v101 = vshrl.u32 %v100, 7
    %vm102 = vcmp.lt.s32.totalorder %v101, 7
    %103 = vst.msk [vmem:[%s90] sm:$0xff] %vm102, %v99
    %s104 = scalar_lea.vmem [#allocation1], 24
    %s105 = scalar_lea.vmem [#allocation0], 48
    %s106 = scalar_lea.vmem %s105, 7 [#allocation0]
    %v107 = vld [vmem:[%s106] ss:$-1 sm:$0xff]
    %v108 = vrot.slane %v107, 1
    %109 = vst [vmem:[%s104] sm:$0xff] %v108
    %s110 = scalar_lea.vmem %s105, 8 [#allocation0]
    %s111 = scalar_lea.vmem %s110, 7 [#allocation0]
    %v112 = vld [vmem:[%s111] ss:$-1 sm:$0xff]
    %v113 = vrot.slane %v112, 1
    %v114 = vlaneseq
    %v115 = vshrl.u32 %v114, 7
    %vm116 = vcmp.lt.s32.totalorder %v115, 7
    %117 = vst.msk [vmem:[%s104] sm:$0xff] %vm116, %v113
    %s118 = scalar_lea.vmem [#allocation1], 32
    %s119 = scalar_lea.vmem [#allocation0], 64
    %s120 = scalar_lea.vmem %s119, 7 [#allocation0]
    %v121 = vld [vmem:[%s120] ss:$-1 sm:$0xff]
    %v122 = vrot.slane %v121, 1
    %123 = vst [vmem:[%s118] sm:$0xff] %v122
    %s124 = scalar_lea.vmem %s119, 8 [#allocation0]
    %s125 = scalar_lea.vmem %s124, 7 [#allocation0]
    %v126 = vld [vmem:[%s125] ss:$-1 sm:$0xff]
    %v127 = vrot.slane %v126, 1
    %v128 = vlaneseq
    %v129 = vshrl.u32 %v128, 7
    %vm130 = vcmp.lt.s32.totalorder %v129, 7
    %131 = vst.msk [vmem:[%s118] sm:$0xff] %vm130, %v127
    %s132 = scalar_lea.vmem [#allocation1], 40
    %s133 = scalar_lea.vmem [#allocation0], 80
    %s134 = scalar_lea.vmem %s133, 7 [#allocation0]
    %v135 = vld [vmem:[%s134] ss:$-1 sm:$0xff]
    %v136 = vrot.slane %v135, 1
    %137 = vst [vmem:[%s132] sm:$0xff] %v136
    %s138 = scalar_lea.vmem %s133, 8 [#allocation0]
    %s139 = scalar_lea.vmem %s138, 7 [#allocation0]
    %v140 = vld [vmem:[%s139] ss:$-1 sm:$0xff]
    %v141 = vrot.slane %v140, 1
    %v142 = vlaneseq
    %v143 = vshrl.u32 %v142, 7
    %vm144 = vcmp.lt.s32.totalorder %v143, 7
    %145 = vst.msk [vmem:[%s132] sm:$0xff] %vm144, %v141
    %s146 = scalar_lea.vmem [#allocation1], 48
    %s147 = scalar_lea.vmem [#allocation0], 96
    %s148 = scalar_lea.vmem %s147, 7 [#allocation0]
    %v149 = vld [vmem:[%s148] ss:$-1 sm:$0xff]
    %v150 = vrot.slane %v149, 1
    %151 = vst [vmem:[%s146] sm:$0xff] %v150
    %s152 = scalar_lea.vmem %s147, 8 [#allocation0]
    %s153 = scalar_lea.vmem %s152, 7 [#allocation0]
    %v154 = vld [vmem:[%s153] ss:$-1 sm:$0xff]
    %v155 = vrot.slane %v154, 1
    %v156 = vlaneseq
    %v157 = vshrl.u32 %v156, 7
    %vm158 = vcmp.lt.s32.totalorder %v157, 7
    %159 = vst.msk [vmem:[%s146] sm:$0xff] %vm158, %v155
    %s160 = scalar_lea.vmem [#allocation1], 56
    %s161 = scalar_lea.vmem [#allocation0], 112
    %s162 = scalar_lea.vmem %s161, 7 [#allocation0]
    %v163 = vld [vmem:[%s162] ss:$-1 sm:$0xff]
    %v164 = vrot.slane %v163, 1
    %165 = vst [vmem:[%s160] sm:$0xff] %v164
    %s166 = scalar_lea.vmem %s161, 8 [#allocation0]
    %s167 = scalar_lea.vmem %s166, 7 [#allocation0]
    %v168 = vld [vmem:[%s167] ss:$-1 sm:$0xff]
    %v169 = vrot.slane %v168, 1
    %v170 = vlaneseq
    %v171 = vshrl.u32 %v170, 7
    %vm172 = vcmp.lt.s32.totalorder %v171, 7
    %173 = vst.msk [vmem:[%s160] sm:$0xff] %vm172, %v169
    // Predicated region
    $region36: #{reverse.0} parent=1 // pred_check
      _
    $region37: #{reverse.0} parent=1 // pred_check_branch
      %175 = sbr.rel (0) target = $region39
    $region38: #{reverse.0} parent=1 // pred_region
      // Predicated region
      $region40: #{reverse.0} parent=38 // pred_check
        _
      $region41: #{reverse.0} parent=38 // pred_check_branch
        %177 = sbr.rel (0) target = $region43
      $region42: #{reverse.0} parent=38 // pred_region
        // Predicated region
        $region55: #{reverse.0} parent=42 // pred_check
          _
        $region56: #{reverse.0} parent=42 // pred_check_branch
          %207 = sbr.rel (0) target = $region58
        $region57: #{reverse.0} parent=42 // pred_region
          loop: start=0, step=1, limit=1
          $region59: #{reverse.0} parent=57 // loop_pre_header
            _
          $region60: #{reverse.0} parent=57 // loop_header
            %s209 = sphi 0, %s213
            %p210 = scmp.ge.s32.totalorder %s209, 1
            %s214 = sphi [#allocation1], [#allocation1]
            %s215 = sphi %s1, %s1
          $region61: #{reverse.0} parent=57 // loop_header_branch
            %212 = sbr.rel (%p210) target = $region65
          $region62: #{reverse.0} parent=57 // loop_body
            %v216 = vld [vmem:[%s214] sm:$0xff]
            %217 = vst [vmem:[%s215] sm:$0xff] %v216
            %v218 = vld [vmem:[%s214 + $0x8] sm:$0xff]
            %219 = vst [vmem:[%s215 + $0x8] sm:$0xff] %v218
            %v220 = vld [vmem:[%s214 + $0x10] sm:$0xff]
            %221 = vst [vmem:[%s215 + $0x10] sm:$0xff] %v220
            %v222 = vld [vmem:[%s214 + $0x18] sm:$0xff]
            %223 = vst [vmem:[%s215 + $0x18] sm:$0xff] %v222
            %v224 = vld [vmem:[%s214 + $0x20] sm:$0xff]
            %225 = vst [vmem:[%s215 + $0x20] sm:$0xff] %v224
            %v226 = vld [vmem:[%s214 + $0x28] sm:$0xff]
            %227 = vst [vmem:[%s215 + $0x28] sm:$0xff] %v226
            %v228 = vld [vmem:[%s214 + $0x30] sm:$0xff]
            %229 = vst [vmem:[%s215 + $0x30] sm:$0xff] %v228
            %v230 = vld [vmem:[%s214 + $0x38] sm:$0xff]
            %231 = vst [vmem:[%s215 + $0x38] sm:$0xff] %v230
          $region63: #{reverse.0} parent=57 // loop_footer
            %s213 = sadd.s32 1, %s209
          $region64: #{reverse.0} parent=57 // loop_footer_branch
            %208 = sbr.rel target = $region60
          $region65: #{reverse.0} parent=57 // loop_exit
            _
        $region58: #{reverse.0} parent=42 // pred_fallthru
          _
        // Predicated region
        $region66: #{reverse.0} parent=42 // pred_check
          _
        $region67: #{reverse.0} parent=42 // pred_check_branch
          %233 = sbr.rel target = $region69
        $region68: #{reverse.0} parent=42 // pred_region
          _
        $region69: #{reverse.0} parent=42 // pred_fallthru
          _
      $region43: #{reverse.0} parent=38 // pred_fallthru
        _
      // Predicated region
      $region44: #{reverse.0} parent=38 // pred_check
        _
      $region45: #{reverse.0} parent=38 // pred_check_branch
        %179 = sbr.rel target = $region47
      $region46: #{reverse.0} parent=38 // pred_region
        %s181 = ssub.s32 256, 1
        loop: start=0, step=1, limit=1
        $region48: #{reverse.0} parent=46 // loop_pre_header
          _
        $region49: #{reverse.0} parent=46 // loop_header
          %s183 = sphi 0, %s187
          %p184 = scmp.ge.s32.totalorder %s183, 1
          %s188 = sphi [#allocation1], [#allocation1]
          %s189 = sphi %s1, %s1
        $region50: #{reverse.0} parent=46 // loop_header_branch
          %186 = sbr.rel (%p184) target = $region54
        $region51: #{reverse.0} parent=46 // loop_body
          %v190 = vld [vmem:[%s188] sm:%s181]
          %191 = vst [vmem:[%s189] sm:%s181] %v190
          %v192 = vld [vmem:[%s188 + $0x8] sm:%s181]
          %193 = vst [vmem:[%s189 + $0x8] sm:%s181] %v192
          %v194 = vld [vmem:[%s188 + $0x10] sm:%s181]
          %195 = vst [vmem:[%s189 + $0x10] sm:%s181] %v194
          %v196 = vld [vmem:[%s188 + $0x18] sm:%s181]
          %197 = vst [vmem:[%s189 + $0x18] sm:%s181] %v196
          %v198 = vld [vmem:[%s188 + $0x20] sm:%s181]
          %199 = vst [vmem:[%s189 + $0x20] sm:%s181] %v198
          %v200 = vld [vmem:[%s188 + $0x28] sm:%s181]
          %201 = vst [vmem:[%s189 + $0x28] sm:%s181] %v200
          %v202 = vld [vmem:[%s188 + $0x30] sm:%s181]
          %203 = vst [vmem:[%s189 + $0x30] sm:%s181] %v202
          %v204 = vld [vmem:[%s188 + $0x38] sm:%s181]
          %205 = vst [vmem:[%s189 + $0x38] sm:%s181] %v204
        $region52: #{reverse.0} parent=46 // loop_footer
          %s187 = sadd.s32 1, %s183
        $region53: #{reverse.0} parent=46 // loop_footer_branch
          %182 = sbr.rel target = $region49
        $region54: #{reverse.0} parent=46 // loop_exit
          _
      $region47: #{reverse.0} parent=38 // pred_fallthru
        _
    $region39: #{reverse.0} parent=1 // pred_fallthru
      _
    %234 = vnop

// kernel: _lambda_.5
$region0: #{_lambda_.5}
  #allocation0 [shape = 'u32[]', space=smem, size = 0x4, offset = 0x4, fixed_abs, tag = 'smem constant byte address 0x4 - core index']
  #allocation1 [shape = 'u32[72,128]{1,0:T(1,128)}', space=vmem, size = 0x9000, scoped, tag = 'internal scratch']
  %s0 = inlined_call_operand.vmem [shape: f32[8,4], index: 0, kind: input, shape index: {}]
  %s1 = inlined_call_operand.vmem [shape: f32[2,4,256], index: 1, kind: input, shape index: {}]
  %s2 = inlined_call_operand.vmem [shape: f32[2,4,256], index: 2, kind: input, shape index: {}]
  %s3 = inlined_call_operand.vmem [shape: f32[2,4,256], index: 3, kind: input, shape index: {}]
  %s4 = inlined_call_operand.vmem [shape: f32[2,8,256], index: 4, kind: input, shape index: {}]
  %s5 = inlined_call_operand.vmem [shape: f32[2,8,256], index: 5, kind: output, shape index: {}]
  %s6 = sld [smem:[#allocation0]]
  $region30: #{_lambda_.5} parent=0
    _
  %s8 = ssub.s32 1, %s6
  %s9 = scalar_select 0, %s8, %s6
  // Predicated region
  $region2: #{_lambda_.5} parent=0 // pred_check
    _
  $region3: #{_lambda_.5} parent=0 // pred_check_branch
    %11 = sbr.rel (0) target = $region5
  $region4: #{_lambda_.5} parent=0 // pred_region
    _
  $region5: #{_lambda_.5} parent=0 // pred_fallthru
    _
  // Predicated region
  $region6: #{_lambda_.5} parent=0 // pred_check
    _
  $region7: #{_lambda_.5} parent=0 // pred_check_branch
    %13 = sbr.rel (0) target = $region9
  $region8: #{_lambda_.5} parent=0 // pred_region
    _
  $region9: #{_lambda_.5} parent=0 // pred_fallthru
    _
  // Predicated region
  $region10: #{_lambda_.5} parent=0 // pred_check
    _
  $region11: #{_lambda_.5} parent=0 // pred_check_branch
    %15 = sbr.rel (0) target = $region13
  $region12: #{_lambda_.5} parent=0 // pred_region
    _
  $region13: #{_lambda_.5} parent=0 // pred_fallthru
    _
  // Predicated region
  $region14: #{_lambda_.5} parent=0 // pred_check
    _
  $region15: #{_lambda_.5} parent=0 // pred_check_branch
    %17 = sbr.rel (0) target = $region17
  $region16: #{_lambda_.5} parent=0 // pred_region
    _
  $region17: #{_lambda_.5} parent=0 // pred_fallthru
    _
  // Predicated region
  $region18: #{_lambda_.5} parent=0 // pred_check
    _
  $region19: #{_lambda_.5} parent=0 // pred_check_branch
    %19 = sbr.rel (0) target = $region21
  $region20: #{_lambda_.5} parent=0 // pred_region
    _
  $region21: #{_lambda_.5} parent=0 // pred_fallthru
    _
  %v21 = vld [vmem:[%s0] sm:$0xff]
  %v22 = vpack.c.bf16 %v21, %v21
  %v23 = vld [vmem:[%s1] sm:$0xff]
  %v24 = vld [vmem:[%s2] sm:$0xff]
  %v25 = vadd.f32 %v23, %v24
  %v26 = vld [vmem:[%s3] sm:$0xff]
  %v27 = vadd.f32 %v25, %v26
  %29 = vst [vmem:[#allocation1] ss:$2 sm:$0xff] %v27
  %v30 = vld.sshfl [vmem:[#allocation1] sm:$0xff pattern:$0x75316420]
  %v31 = vld.sshfl [vmem:[#allocation1 + $0x8] sm:$0xff pattern:$0x75316420]
  %v34 = vpack.c.bf16 %v30, %v30
  %v35 = vpack.c.bf16 %v31, %v31
  %vm36 = vcmask 31744
  %v38 = vsel %vm36, %v22, 0
  %vm40 = vcmask 1041408
  %v42 = vsel %vm40, %v34, 0
  %v45 = vsel %vm40, %v35, 0
  %47 = vmatpush.bf16.msra.mxu0 0
  %48 = vmatpush.bf16.msra.mxu0 0
  %49 = vmatpush.bf16.msra.mxu0 0
  %50 = vmatpush.bf16.msra.mxu0 0
  %51 = vmatpush.bf16.msra.mxu0 0
  %52 = vmatpush.bf16.msra.mxu0 0
  %53 = vmatpush.bf16.msra.mxu0 0
  %54 = vmatpush.bf16.msra.mxu0 %v42
  %55 = vmatmul.bf16.gmra.mxu0 %v38
  %v56 = vpop.f32.mrf.mxu0
  %v57 = vadd.f32 0.0, %v56
  %v58 = vpop.f32.mrf.mxu0
  %59 = vdwg.mxu0
  %60 = vmatpush.bf16.msra.mxu0 0
  %61 = vmatpush.bf16.msra.mxu0 0
  %62 = vmatpush.bf16.msra.mxu0 0
  %63 = vmatpush.bf16.msra.mxu0 0
  %64 = vmatpush.bf16.msra.mxu0 0
  %65 = vmatpush.bf16.msra.mxu0 0
  %66 = vmatpush.bf16.msra.mxu0 0
  %67 = vmatpush.bf16.msra.mxu0 %v45
  %68 = vmatmul.bf16.gmra.mxu0 %v38
  %v69 = vpop.f32.mrf.mxu0
  %v70 = vadd.f32 0.0, %v69
  %v71 = vpop.f32.mrf.mxu0
  %72 = vdwg.mxu0
  %v73 = vld [vmem:[%s4] sm:$0xff]
  %v74 = vld [vmem:[%s4 + $0x8] sm:$0xff]
  %v75 = vadd.f32 %v73, %v57
  %v76 = vadd.f32 %v74, %v70
  %v77 = vadd.f32 %v75, %v76
  %78 = vadd.xlane.f32.xlu0 %v77
  %v79 = vpop.xlane.xlu0 %78
  %v80 = vrcp.pop 256.0
  %v81 = vmul.f32 256.0, %v80
  %v82 = vsub.f32 1.0, %v81
  %v83 = vmul.f32 %v80, %v82
  %v84 = vadd.f32 %v80, %v83
  %vm85 = vweird.f32 %v80
  %v86 = vsel %vm85, %v80, %v84
  %v87 = vmul.f32 %v79, %v86
  %v88 = vsub.f32 %v75, %v87
  %v89 = vsub.f32 %v76, %v87
  %v90 = vmul.f32 %v88, %v88
  %v91 = vmul.f32 %v89, %v89
  %v92 = vadd.f32 %v90, %v91
  %93 = vadd.xlane.f32.xlu0 %v92
  %v94 = vpop.xlane.xlu0 %93
  %v95 = vmul.f32 %v94, %v86
  %v96 = vadd.f32 %v95, 1e-05
  %v97 = vrsqrt.pop %v96
  %v98 = vmul.f32 %v97, %v96
  %v99 = vmul.f32 %v98, %v97
  %v100 = vmul.f32 0.5, %v99
  %v101 = vsub.f32 1.5, %v100
  %v102 = vmul.f32 %v97, %v101
  %vm103 = vweird.f32 %v96
  %vm104 = vweird.f32 %v97
  %vm105 = vmor %vm103, %vm104
  %v106 = vsel %vm105, %v97, %v102
  %v107 = vmul.f32 %v88, %v106
  %v108 = vmul.f32 %v89, %v106
  %109 = vst [vmem:[%s5] sm:$0xff] %v107
  %110 = vst [vmem:[%s5 + $0x8] sm:$0xff] %v108
  %s111 = scalar_lea.vmem %s1, 8
  %v112 = vld [vmem:[%s111] sm:$0xff]
  %s113 = scalar_lea.vmem %s2, 8
  %v114 = vld [vmem:[%s113] sm:$0xff]
  %v115 = vadd.f32 %v112, %v114
  %s116 = scalar_lea.vmem %s3, 8
  %v117 = vld [vmem:[%s116] sm:$0xff]
  %v118 = vadd.f32 %v115, %v117
  %120 = vst [vmem:[#allocation1] ss:$2 sm:$0xff] %v118
  %v121 = vld.sshfl [vmem:[#allocation1] sm:$0xff pattern:$0x75316420]
  %v122 = vld.sshfl [vmem:[#allocation1 + $0x8] sm:$0xff pattern:$0x75316420]
  %v125 = vpack.c.bf16 %v121, %v121
  %v126 = vpack.c.bf16 %v122, %v122
  %v128 = vsel %vm40, %v125, 0
  %v131 = vsel %vm40, %v126, 0
  %133 = vmatpush.bf16.msra.mxu0 0
  %134 = vmatpush.bf16.msra.mxu0 0
  %135 = vmatpush.bf16.msra.mxu0 0
  %136 = vmatpush.bf16.msra.mxu0 0
  %137 = vmatpush.bf16.msra.mxu0 0
  %138 = vmatpush.bf16.msra.mxu0 0
  %139 = vmatpush.bf16.msra.mxu0 0
  %140 = vmatpush.bf16.msra.mxu0 %v128
  %141 = vmatmul.bf16.gmra.mxu0 %v38
  %v142 = vpop.f32.mrf.mxu0
  %v143 = vadd.f32 0.0, %v142
  %v144 = vpop.f32.mrf.mxu0
  %145 = vdwg.mxu0
  %146 = vmatpush.bf16.msra.mxu0 0
  %147 = vmatpush.bf16.msra.mxu0 0
  %148 = vmatpush.bf16.msra.mxu0 0
  %149 = vmatpush.bf16.msra.mxu0 0
  %150 = vmatpush.bf16.msra.mxu0 0
  %151 = vmatpush.bf16.msra.mxu0 0
  %152 = vmatpush.bf16.msra.mxu0 0
  %153 = vmatpush.bf16.msra.mxu0 %v131
  %154 = vmatmul.bf16.gmra.mxu0 %v38
  %v155 = vpop.f32.mrf.mxu0
  %v156 = vadd.f32 0.0, %v155
  %v157 = vpop.f32.mrf.mxu0
  %158 = vdwg.mxu0
  %s159 = scalar_lea.vmem %s4, 16
  %v160 = vld [vmem:[%s159] sm:$0xff]
  %v161 = vld [vmem:[%s159 + $0x8] sm:$0xff]
  %v162 = vadd.f32 %v160, %v143
  %v163 = vadd.f32 %v161, %v156
  %v164 = vadd.f32 %v162, %v163
  %165 = vadd.xlane.f32.xlu0 %v164
  %v166 = vpop.xlane.xlu0 %165
  %v167 = vmul.f32 %v166, %v86
  %v168 = vsub.f32 %v162, %v167
  %v169 = vsub.f32 %v163, %v167
  %v170 = vmul.f32 %v168, %v168
  %v171 = vmul.f32 %v169, %v169
  %v172 = vadd.f32 %v170, %v171
  %173 = vadd.xlane.f32.xlu0 %v172
  %v174 = vpop.xlane.xlu0 %173
  %v175 = vmul.f32 %v174, %v86
  %v176 = vadd.f32 %v175, 1e-05
  %v177 = vrsqrt.pop %v176
  %v178 = vmul.f32 %v177, %v176
  %v179 = vmul.f32 %v178, %v177
  %v180 = vmul.f32 0.5, %v179
  %v181 = vsub.f32 1.5, %v180
  %v182 = vmul.f32 %v177, %v181
  %vm183 = vweird.f32 %v176
  %vm184 = vweird.f32 %v177
  %vm185 = vmor %vm183, %vm184
  %v186 = vsel %vm185, %v177, %v182
  %v187 = vmul.f32 %v168, %v186
  %v188 = vmul.f32 %v169, %v186
  %s189 = scalar_lea.vmem %s5, 16
  %190 = vst [vmem:[%s189] sm:$0xff] %v187
  %191 = vst [vmem:[%s189 + $0x8] sm:$0xff] %v188
  // Predicated region
  $region22: #{_lambda_.5} parent=0 // pred_check
    _
  $region23: #{_lambda_.5} parent=0 // pred_check_branch
    %193 = sbr.rel (0) target = $region25
  $region24: #{_lambda_.5} parent=0 // pred_region
    _
  $region25: #{_lambda_.5} parent=0 // pred_fallthru
    _
  // Predicated region
  $region26: #{_lambda_.5} parent=0 // pred_check
    _
  $region27: #{_lambda_.5} parent=0 // pred_check_branch
    %195 = sbr.rel (0) target = $region29
  $region28: #{_lambda_.5} parent=0 // pred_region
    _
  $region29: #{_lambda_.5} parent=0 // pred_fallthru
    _

</llo_original>
